<compile_context>
chip_gen: v7x
topology: tpu7x:2x2x1
jax: 0.10.0
libtpu: 0.0.40
codegen_flags: <defaults>
</compile_context>

<pallas_src>
import functools
import math

import jax
import jax.numpy as jnp
from jax.experimental import pallas as pl
from jax.experimental.pallas import tpu as pltpu


def _mha_new_kernel(x_ref, osa_ref, wqkv_ref, wo_ref,
                    w1_ref, b1_ref, w2_ref, b2_ref, out_ref, *,
                    n_heads, key_dim, val_dim, n_osa, n_hidden, row_block):
    Bblk, N, D = x_ref.shape
    H, Kd, Vd = n_heads, key_dim, val_dim
    cdt = x_ref.dtype                       # MXU operand dtype (f32, or bf16 on the fast path)

    wqkv = wqkv_ref[...]                    # (H, D, 2*Kd + Vd), resident across grid steps
    wo = wo_ref[...]                        # (H, Vd, E), resident

    for bb in range(Bblk):                  # static unroll over batches in this block
        x = x_ref[bb]                                                # (N, D)
        xb = jnp.broadcast_to(x[None], (H, N, D))                    # hoisted, once per batch

        # Fused, head-batched Q|K|V projection (single MXU pass, f32 accumulation).
        qkv = jnp.einsum('hnd,hdk->hnk', xb, wqkv,
                         preferred_element_type=jnp.float32)         # (H, N, 2Kd+Vd)
        q = qkv[..., :Kd].astype(cdt)                                # (H, N, Kd)
        k = qkv[..., Kd:2 * Kd].astype(cdt)                          # (H, N, Kd)
        v = qkv[..., 2 * Kd:].astype(cdt)                            # (H, N, Vd)

        # Row-blocked compatibility / score_aggr / softmax / attn@V.
        r0 = 0
        while r0 < N:                                                # static Python loop
            rb = min(row_block, N - r0)
            q_blk = q[:, r0:r0 + rb, :]                              # (H, rb, Kd)

            # Unscaled per-head compatibility logits (as in the module), head-batched.
            comp_qk = jnp.einsum('hrk,hmk->hrm', q_blk, k,
                                 preferred_element_type=jnp.float32)           # (H, rb, N)
            osa_blk = osa_ref[:, bb, r0:r0 + rb, :].astype(jnp.float32)        # (C_osa, rb, N)

            chans = [comp_qk[c] for c in range(H)] + [osa_blk[c] for c in range(n_osa)]

            # score_aggr = Linear(8,8) -> ReLU -> Linear(8,4), expressed as scalar-broadcast
            # combinations of the channel maps (SMEM scalars, pure VPU work, biases folded).
            hidden = []
            for d in range(n_hidden):
                s = chans[0] * w1_ref[d, 0] + b1_ref[d]
                for c in range(1, H + n_osa):
                    s = s + chans[c] * w1_ref[d, c]
                hidden.append(jnp.maximum(s, 0.0))

            out_acc = None
            for hh in range(H):
                logit = hidden[0] * w2_ref[hh, 0] + b2_ref[hh]
                for d in range(1, n_hidden):
                    logit = logit + hidden[d] * w2_ref[hh, d]
                # Row softmax in f32; denominator via the EUP approx reciprocal (free slot).
                logit = logit - jnp.max(logit, axis=-1, keepdims=True)
                e = jnp.exp(logit)
                p = e * pl.reciprocal(jnp.sum(e, axis=-1, keepdims=True), approx=True)
                head = jnp.dot(p.astype(cdt), v[hh],
                               preferred_element_type=jnp.float32)             # (rb, Vd)
                # Per-head accumulation into the output (out = sum_h head_h @ W_out[h]).
                contrib = jnp.dot(head.astype(cdt), wo[hh],
                                  preferred_element_type=jnp.float32)          # (rb, E)
                out_acc = contrib if out_acc is None else out_acc + contrib

            out_ref[bb, r0:r0 + rb, :] = out_acc.astype(out_ref.dtype)
            r0 += rb


def _pick_vmem_limit_bytes():
    """Generation-aware scoped VMEM limit (cap on v7x, raise on v5e/v6e)."""
    try:
        kind = jax.devices()[0].device_kind.lower()
    except Exception:
        kind = ""
    if "v7" in kind:
        return 56 * 1024 * 1024          # v7x: 64 MiB physical per TC -> leave headroom
    if "v5" in kind or "v6" in kind:
        return 100 * 1024 * 1024         # v5e/v6e: 128 MiB physical
    return 64 * 1024 * 1024


def multi_head_attention_new(h, out_source_attn, W_query, W_key, W_val,
                             W1, b1, W2, b2, W_out, *,
                             use_bf16=False, batch_block=1, row_block=256):
    """h: (B, N, D); out_source_attn: (C_osa, B, N, N). Returns (out, out_source_attn)."""
    B, N, D = h.shape
    H, _, Kd = W_query.shape
    _, _, Vd = W_val.shape
    _, _, E = W_out.shape
    C_osa = out_source_attn.shape[0]
    C_hidden = W1.shape[0]
    C_in = H + C_osa
    # The module contracts heads against W_out.view(H*Kd, E); only valid when key_dim == val_dim.
    assert Kd == Vd, "W_out contraction requires key_dim == val_dim"
    assert W1.shape == (C_hidden, C_in)
    assert W2.shape == (H, C_hidden)
    assert B % batch_block == 0
    Bblk = batch_block
    rblk = max(1, min(row_block, N))

    cdt = jnp.bfloat16 if use_bf16 else jnp.float32

    # Fused per-head [Wq | Wk | Wv] weight (head-major) -> one batched projection in-kernel.
    wqkv = jnp.concatenate([W_query, W_key, W_val], axis=-1).astype(cdt)   # (H, D, 2Kd+Vd)
    wo = W_out.astype(cdt)                                                 # (H, Vd, E)
    x = h.astype(cdt)
    # out_source_attn stays (C_osa, B, N, N): no wrapper-side HBM transpose; the per-batch slab
    # is selected directly by its BlockSpec.

    kernel = functools.partial(
        _mha_new_kernel,
        n_heads=H, key_dim=Kd, val_dim=Vd, n_osa=C_osa, n_hidden=C_hidden, row_block=rblk)

    flops_per_batch = (
        2 * H * N * D * (2 * Kd + Vd)                        # fused QKV projection
        + 2 * H * N * N * Kd                                 # per-head Q @ K^T
        + 2 * N * N * (C_in * C_hidden + C_hidden * H)       # score_aggr MLP
        + 2 * H * N * N * Vd                                 # attn @ V
        + 2 * H * N * Vd * E                                 # per-head output contraction
    )
    itemsize = 2 if use_bf16 else 4
    cost = pl.CostEstimate(
        flops=int(B * flops_per_batch),
        transcendentals=int(B * H * N * N),
        bytes_accessed=int(
            B * N * D * itemsize + 4 * C_osa * B * N * N + 4 * B * N * E
            + itemsize * (H * D * (2 * Kd + Vd) + H * Vd * E)
            + 4 * (C_hidden * C_in + C_hidden + H * C_hidden + H)),
    )

    out = pl.pallas_call(
        kernel,
        out_shape=jax.ShapeDtypeStruct((B, N, E), jnp.float32),
        grid_spec=pltpu.PrefetchScalarGridSpec(
            num_scalar_prefetch=0,
            grid=(B // Bblk,),
            in_specs=[
                pl.BlockSpec((Bblk, N, D), lambda b: (b, 0, 0)),             # h, batch block
                pl.BlockSpec((C_osa, Bblk, N, N), lambda b: (0, b, 0, 0)),   # out_source_attn slab
                pl.BlockSpec((H, D, 2 * Kd + Vd), lambda b: (0, 0, 0)),      # fused Wq|Wk|Wv, resident
                pl.BlockSpec((H, Vd, E), lambda b: (0, 0, 0)),               # W_out, resident
                pl.BlockSpec(memory_space=pltpu.MemorySpace.SMEM),           # score_aggr W1
                pl.BlockSpec(memory_space=pltpu.MemorySpace.SMEM),           # score_aggr b1
                pl.BlockSpec(memory_space=pltpu.MemorySpace.SMEM),           # score_aggr W2
                pl.BlockSpec(memory_space=pltpu.MemorySpace.SMEM),           # score_aggr b2
            ],
            out_specs=pl.BlockSpec((Bblk, N, E), lambda b: (b, 0, 0)),
        ),
        compiler_params=pltpu.CompilerParams(
            dimension_semantics=("parallel",),       # disjoint batch blocks; shards across TCs on v7x
            vmem_limit_bytes=_pick_vmem_limit_bytes(),
        ),
        cost_estimate=cost,
    )(x, out_source_attn, wqkv, wo, W1, b1, W2, b2)

    return out, out_source_attn


def _reference_mha_new(h, osa, Wq, Wk, Wv, W1, b1, W2, b2, Wo):
    Q = jnp.einsum("bnd,hdk->hbnk", h, Wq)
    K = jnp.einsum("bnd,hdk->hbnk", h, Wk)
    V = jnp.einsum("bnd,hdv->hbnv", h, Wv)
    qk = jnp.einsum("hbnk,hbmk->hbnm", Q, K)                 # unscaled, as in the module
    compat = jnp.concatenate([qk, osa], axis=0)              # (8, B, N, N)
    attn_raw = jnp.transpose(compat, (1, 2, 3, 0))           # (B, N, N, 8)
    hid = jax.nn.relu(attn_raw @ W1.T + b1)                  # (B, N, N, 8)
    agg = hid @ W2.T + b2                                    # (B, N, N, 4)
    attn = jnp.transpose(agg, (3, 0, 1, 2))                  # (4, B, N, N)
    attn = jax.nn.softmax(attn, axis=-1)
    heads = jnp.einsum("hbnm,hbmv->hbnv", attn, V)
    out = jnp.einsum("hbnv,hve->bne", heads, Wo)
    return out


if __name__ == "__main__":
    # Module hyperparameters (n_heads = 4 is hard-coded by the module's forward).
    n_heads = 4
    input_dim = 16
    embed_dim = 32
    key_dim = embed_dim // n_heads   # = 8
    val_dim = key_dim

    batch = 2
    graph_size = 8

    key = jax.random.PRNGKey(0)
    kx, ka, kq, kk, kv, ko, k1, kb1, k2, kb2 = jax.random.split(key, 10)

    # init_parameters(): uniform(-stdv, stdv), stdv = 1/sqrt(last_dim).
    def init(k, shape):
        stdv = 1.0 / math.sqrt(shape[-1])
        return jax.random.uniform(k, shape, jnp.float32, -stdv, stdv)

    h = jax.random.normal(kx, (batch, graph_size, input_dim), jnp.float32)
    out_source_attn = jax.random.normal(
        ka, (n_heads, batch, graph_size, graph_size), jnp.float32)

    W_query = init(kq, (n_heads, input_dim, key_dim))
    W_key = init(kk, (n_heads, input_dim, key_dim))
    W_val = init(kv, (n_heads, input_dim, val_dim))
    W_out = init(ko, (n_heads, key_dim, embed_dim))
    # score_aggr = Linear(8, 8) -> ReLU -> Linear(8, 4); PyTorch Linear weight is (out, in).
    W1 = init(k1, (8, 8))
    b1 = init(kb1, (8,))
    W2 = init(k2, (4, 8))
    b2 = init(kb2, (4,))

    ref = _reference_mha_new(h, out_source_attn, W_query, W_key, W_val, W1, b1, W2, b2, W_out)

    # f32 path: tight tolerance (only deviation is the EUP approx reciprocal in the softmax).
    out, osa_out = multi_head_attention_new(
        h, out_source_attn, W_query, W_key, W_val, W1, b1, W2, b2, W_out)
    out = jax.block_until_ready(out)
    assert out.shape == (batch, graph_size, embed_dim)
    assert osa_out.shape == out_source_attn.shape
    assert jnp.allclose(out, ref, atol=2e-3, rtol=2e-3), "f32 kernel mismatch vs reference"

    # bf16 MXU path (v6e/v7x perf mode): f32 accumulation and f32 softmax, loose tolerance.
    out_bf16, _ = multi_head_attention_new(
        h, out_source_attn, W_query, W_key, W_val, W1, b1, W2, b2, W_out, use_bf16=True)
    out_bf16 = jax.block_until_ready(out_bf16)
    assert jnp.allclose(out_bf16, ref, atol=1.5e-1, rtol=1e-1), "bf16 kernel mismatch vs reference"

    print("KERNEL_OK")
</pallas_src>

<mosaic_0001>
module attributes {stable_mosaic.version = 11 : i64} {
  func.func @_mha_new_kernel(%arg0: i32, %arg1: memref<1x8x16xf32, #tpu.memory_space<vmem>>, %arg2: memref<4x1x8x8xf32, #tpu.memory_space<vmem>>, %arg3: memref<4x16x24xf32, #tpu.memory_space<vmem>>, %arg4: memref<4x8x32xf32, #tpu.memory_space<vmem>>, %arg5: memref<8x8xf32, #tpu.memory_space<smem>>, %arg6: memref<8xf32, #tpu.memory_space<smem>>, %arg7: memref<4x8xf32, #tpu.memory_space<smem>>, %arg8: memref<4xf32, #tpu.memory_space<smem>>, %arg9: memref<1x8x32xf32, #tpu.memory_space<vmem>>) attributes {dimension_semantics = [#tpu.dimension_semantics<parallel>], iteration_bounds = array<i64: 2>, scalar_prefetch = 0 : i64, scratch_operands = 0 : i64, tpu.core_type = #tpu.core_type<tc>, window_params = [{transform_indices = @transform_0, window_bounds = array<i64: 1, 8, 16>}, {transform_indices = @transform_1, window_bounds = array<i64: 4, 1, 8, 8>}, {pipeline_mode = #tpu.pipeline_mode<synchronous>, transform_indices = @transform_2, window_bounds = array<i64: 4, 16, 24>}, {pipeline_mode = #tpu.pipeline_mode<synchronous>, transform_indices = @transform_3, window_bounds = array<i64: 4, 8, 32>}, {transform_indices = @transform_4, window_bounds = array<i64: 8, 8>}, {transform_indices = @transform_5, window_bounds = array<i64: 8>}, {transform_indices = @transform_6, window_bounds = array<i64: 4, 8>}, {transform_indices = @transform_7, window_bounds = array<i64: 4>}, {transform_indices = @transform_8, window_bounds = array<i64: 1, 8, 32>}]} {
    %c0 = arith.constant 0 : index
    %c0_0 = arith.constant 0 : index
    %c0_1 = arith.constant 0 : index
    %0 = vector.load %arg3[%c0, %c0_0, %c0_1] : memref<4x16x24xf32, #tpu.memory_space<vmem>>, vector<4x16x24xf32>
    %c0_2 = arith.constant 0 : index
    %c0_3 = arith.constant 0 : index
    %c0_4 = arith.constant 0 : index
    %1 = vector.load %arg4[%c0_2, %c0_3, %c0_4] : memref<4x8x32xf32, #tpu.memory_space<vmem>>, vector<4x8x32xf32>
    %c0_5 = arith.constant 0 : index
    %c0_6 = arith.constant 0 : index
    %c0_7 = arith.constant 0 : index
    %2 = vector.load %arg1[%c0_5, %c0_6, %c0_7] : memref<1x8x16xf32, #tpu.memory_space<vmem>>, vector<1x8x16xf32>
    %3 = vector.shape_cast %2 : vector<1x8x16xf32> to vector<8x16xf32>
    %4 = vector.shape_cast %3 : vector<8x16xf32> to vector<1x8x16xf32>
    %5 = vector.shape_cast %4 : vector<1x8x16xf32> to vector<1x8x16xf32>
    %6 = vector.broadcast %5 : vector<1x8x16xf32> to vector<4x8x16xf32>
    "tpu.trace_start"() <{level = 10 : i32, message = "hnd,hdk->hnk"}> : () -> ()
    %cst = arith.constant dense<0.000000e+00> : vector<4x8x24xf32>
    %7 = tpu.matmul %6, %0, %cst {dimension_numbers = #tpu.dot_dimension_numbers<[2], [1], [1], [2], [0, 0, 0, 1, 1, 2], [0], [0]>} : vector<4x8x16xf32>, vector<4x16x24xf32>, vector<4x8x24xf32> -> vector<4x8x24xf32>
    "tpu.trace_stop"() : () -> ()
    %8 = vector.extract_strided_slice %7 {offsets = [0, 0, 0], sizes = [4, 8, 8], strides = [1, 1, 1]} : vector<4x8x24xf32> to vector<4x8x8xf32>
    %9 = vector.extract_strided_slice %7 {offsets = [0, 0, 8], sizes = [4, 8, 8], strides = [1, 1, 1]} : vector<4x8x24xf32> to vector<4x8x8xf32>
    %10 = vector.extract_strided_slice %7 {offsets = [0, 0, 16], sizes = [4, 8, 8], strides = [1, 1, 1]} : vector<4x8x24xf32> to vector<4x8x8xf32>
    "tpu.trace_start"() <{level = 10 : i32, message = "hrk,hmk->hrm"}> : () -> ()
    %cst_8 = arith.constant dense<0.000000e+00> : vector<4x8x8xf32>
    %11 = tpu.matmul %8, %9, %cst_8 {dimension_numbers = #tpu.dot_dimension_numbers<[2], [2], [1], [1], [0, 0, 0, 1, 1, 1], [0], [0]>} : vector<4x8x8xf32>, vector<4x8x8xf32>, vector<4x8x8xf32> -> vector<4x8x8xf32>
    "tpu.trace_stop"() : () -> ()
    %c0_9 = arith.constant 0 : index
    %c0_10 = arith.constant 0 : index
    %c0_11 = arith.constant 0 : index
    %c0_12 = arith.constant 0 : index
    %12 = vector.load %arg2[%c0_9, %c0_10, %c0_11, %c0_12] : memref<4x1x8x8xf32, #tpu.memory_space<vmem>>, vector<4x1x8x8xf32>
    %13 = vector.shape_cast %12 : vector<4x1x8x8xf32> to vector<4x8x8xf32>
    %14 = vector.extract_strided_slice %11 {offsets = [0, 0, 0], sizes = [1, 8, 8], strides = [1, 1, 1]} : vector<4x8x8xf32> to vector<1x8x8xf32>
    %15 = vector.shape_cast %14 : vector<1x8x8xf32> to vector<8x8xf32>
    %16 = vector.extract_strided_slice %11 {offsets = [1, 0, 0], sizes = [1, 8, 8], strides = [1, 1, 1]} : vector<4x8x8xf32> to vector<1x8x8xf32>
    %17 = vector.shape_cast %16 : vector<1x8x8xf32> to vector<8x8xf32>
    %18 = vector.extract_strided_slice %11 {offsets = [2, 0, 0], sizes = [1, 8, 8], strides = [1, 1, 1]} : vector<4x8x8xf32> to vector<1x8x8xf32>
    %19 = vector.shape_cast %18 : vector<1x8x8xf32> to vector<8x8xf32>
    %20 = vector.extract_strided_slice %11 {offsets = [3, 0, 0], sizes = [1, 8, 8], strides = [1, 1, 1]} : vector<4x8x8xf32> to vector<1x8x8xf32>
    %21 = vector.shape_cast %20 : vector<1x8x8xf32> to vector<8x8xf32>
    %22 = vector.extract_strided_slice %13 {offsets = [0, 0, 0], sizes = [1, 8, 8], strides = [1, 1, 1]} : vector<4x8x8xf32> to vector<1x8x8xf32>
    %23 = vector.shape_cast %22 : vector<1x8x8xf32> to vector<8x8xf32>
    %24 = vector.extract_strided_slice %13 {offsets = [1, 0, 0], sizes = [1, 8, 8], strides = [1, 1, 1]} : vector<4x8x8xf32> to vector<1x8x8xf32>
    %25 = vector.shape_cast %24 : vector<1x8x8xf32> to vector<8x8xf32>
    %26 = vector.extract_strided_slice %13 {offsets = [2, 0, 0], sizes = [1, 8, 8], strides = [1, 1, 1]} : vector<4x8x8xf32> to vector<1x8x8xf32>
    %27 = vector.shape_cast %26 : vector<1x8x8xf32> to vector<8x8xf32>
    %28 = vector.extract_strided_slice %13 {offsets = [3, 0, 0], sizes = [1, 8, 8], strides = [1, 1, 1]} : vector<4x8x8xf32> to vector<1x8x8xf32>
    %29 = vector.shape_cast %28 : vector<1x8x8xf32> to vector<8x8xf32>
    %c0_13 = arith.constant 0 : index
    %c0_14 = arith.constant 0 : index
    %30 = memref.load %arg5[%c0_13, %c0_14] : memref<8x8xf32, #tpu.memory_space<smem>>
    %31 = vector.broadcast %30 : f32 to vector<8x8xf32>
    %32 = arith.mulf %15, %31 : vector<8x8xf32>
    %c0_15 = arith.constant 0 : index
    %33 = memref.load %arg6[%c0_15] : memref<8xf32, #tpu.memory_space<smem>>
    %34 = vector.broadcast %33 : f32 to vector<8x8xf32>
    %35 = arith.addf %32, %34 : vector<8x8xf32>
    %c0_16 = arith.constant 0 : index
    %c1 = arith.constant 1 : index
    %36 = memref.load %arg5[%c0_16, %c1] : memref<8x8xf32, #tpu.memory_space<smem>>
    %37 = vector.broadcast %36 : f32 to vector<8x8xf32>
    %38 = arith.mulf %17, %37 : vector<8x8xf32>
    %39 = arith.addf %35, %38 : vector<8x8xf32>
    %c0_17 = arith.constant 0 : index
    %c2 = arith.constant 2 : index
    %40 = memref.load %arg5[%c0_17, %c2] : memref<8x8xf32, #tpu.memory_space<smem>>
    %41 = vector.broadcast %40 : f32 to vector<8x8xf32>
    %42 = arith.mulf %19, %41 : vector<8x8xf32>
    %43 = arith.addf %39, %42 : vector<8x8xf32>
    %c0_18 = arith.constant 0 : index
    %c3 = arith.constant 3 : index
    %44 = memref.load %arg5[%c0_18, %c3] : memref<8x8xf32, #tpu.memory_space<smem>>
    %45 = vector.broadcast %44 : f32 to vector<8x8xf32>
    %46 = arith.mulf %21, %45 : vector<8x8xf32>
    %47 = arith.addf %43, %46 : vector<8x8xf32>
    %c0_19 = arith.constant 0 : index
    %c4 = arith.constant 4 : index
    %48 = memref.load %arg5[%c0_19, %c4] : memref<8x8xf32, #tpu.memory_space<smem>>
    %49 = vector.broadcast %48 : f32 to vector<8x8xf32>
    %50 = arith.mulf %23, %49 : vector<8x8xf32>
    %51 = arith.addf %47, %50 : vector<8x8xf32>
    %c0_20 = arith.constant 0 : index
    %c5 = arith.constant 5 : index
    %52 = memref.load %arg5[%c0_20, %c5] : memref<8x8xf32, #tpu.memory_space<smem>>
    %53 = vector.broadcast %52 : f32 to vector<8x8xf32>
    %54 = arith.mulf %25, %53 : vector<8x8xf32>
    %55 = arith.addf %51, %54 : vector<8x8xf32>
    %c0_21 = arith.constant 0 : index
    %c6 = arith.constant 6 : index
    %56 = memref.load %arg5[%c0_21, %c6] : memref<8x8xf32, #tpu.memory_space<smem>>
    %57 = vector.broadcast %56 : f32 to vector<8x8xf32>
    %58 = arith.mulf %27, %57 : vector<8x8xf32>
    %59 = arith.addf %55, %58 : vector<8x8xf32>
    %c0_22 = arith.constant 0 : index
    %c7 = arith.constant 7 : index
    %60 = memref.load %arg5[%c0_22, %c7] : memref<8x8xf32, #tpu.memory_space<smem>>
    %61 = vector.broadcast %60 : f32 to vector<8x8xf32>
    %62 = arith.mulf %29, %61 : vector<8x8xf32>
    %63 = arith.addf %59, %62 : vector<8x8xf32>
    %cst_23 = arith.constant 0.000000e+00 : f32
    %64 = vector.broadcast %cst_23 : f32 to vector<8x8xf32>
    %65 = arith.maximumf %63, %64 : vector<8x8xf32>
    %c1_24 = arith.constant 1 : index
    %c0_25 = arith.constant 0 : index
    %66 = memref.load %arg5[%c1_24, %c0_25] : memref<8x8xf32, #tpu.memory_space<smem>>
    %67 = vector.broadcast %66 : f32 to vector<8x8xf32>
    %68 = arith.mulf %15, %67 : vector<8x8xf32>
    %c1_26 = arith.constant 1 : index
    %69 = memref.load %arg6[%c1_26] : memref<8xf32, #tpu.memory_space<smem>>
    %70 = vector.broadcast %69 : f32 to vector<8x8xf32>
    %71 = arith.addf %68, %70 : vector<8x8xf32>
    %c1_27 = arith.constant 1 : index
    %c1_28 = arith.constant 1 : index
    %72 = memref.load %arg5[%c1_27, %c1_28] : memref<8x8xf32, #tpu.memory_space<smem>>
    %73 = vector.broadcast %72 : f32 to vector<8x8xf32>
    %74 = arith.mulf %17, %73 : vector<8x8xf32>
    %75 = arith.addf %71, %74 : vector<8x8xf32>
    %c1_29 = arith.constant 1 : index
    %c2_30 = arith.constant 2 : index
    %76 = memref.load %arg5[%c1_29, %c2_30] : memref<8x8xf32, #tpu.memory_space<smem>>
    %77 = vector.broadcast %76 : f32 to vector<8x8xf32>
    %78 = arith.mulf %19, %77 : vector<8x8xf32>
    %79 = arith.addf %75, %78 : vector<8x8xf32>
    %c1_31 = arith.constant 1 : index
    %c3_32 = arith.constant 3 : index
    %80 = memref.load %arg5[%c1_31, %c3_32] : memref<8x8xf32, #tpu.memory_space<smem>>
    %81 = vector.broadcast %80 : f32 to vector<8x8xf32>
    %82 = arith.mulf %21, %81 : vector<8x8xf32>
    %83 = arith.addf %79, %82 : vector<8x8xf32>
    %c1_33 = arith.constant 1 : index
    %c4_34 = arith.constant 4 : index
    %84 = memref.load %arg5[%c1_33, %c4_34] : memref<8x8xf32, #tpu.memory_space<smem>>
    %85 = vector.broadcast %84 : f32 to vector<8x8xf32>
    %86 = arith.mulf %23, %85 : vector<8x8xf32>
    %87 = arith.addf %83, %86 : vector<8x8xf32>
    %c1_35 = arith.constant 1 : index
    %c5_36 = arith.constant 5 : index
    %88 = memref.load %arg5[%c1_35, %c5_36] : memref<8x8xf32, #tpu.memory_space<smem>>
    %89 = vector.broadcast %88 : f32 to vector<8x8xf32>
    %90 = arith.mulf %25, %89 : vector<8x8xf32>
    %91 = arith.addf %87, %90 : vector<8x8xf32>
    %c1_37 = arith.constant 1 : index
    %c6_38 = arith.constant 6 : index
    %92 = memref.load %arg5[%c1_37, %c6_38] : memref<8x8xf32, #tpu.memory_space<smem>>
    %93 = vector.broadcast %92 : f32 to vector<8x8xf32>
    %94 = arith.mulf %27, %93 : vector<8x8xf32>
    %95 = arith.addf %91, %94 : vector<8x8xf32>
    %c1_39 = arith.constant 1 : index
    %c7_40 = arith.constant 7 : index
    %96 = memref.load %arg5[%c1_39, %c7_40] : memref<8x8xf32, #tpu.memory_space<smem>>
    %97 = vector.broadcast %96 : f32 to vector<8x8xf32>
    %98 = arith.mulf %29, %97 : vector<8x8xf32>
    %99 = arith.addf %95, %98 : vector<8x8xf32>
    %cst_41 = arith.constant 0.000000e+00 : f32
    %100 = vector.broadcast %cst_41 : f32 to vector<8x8xf32>
    %101 = arith.maximumf %99, %100 : vector<8x8xf32>
    %c2_42 = arith.constant 2 : index
    %c0_43 = arith.constant 0 : index
    %102 = memref.load %arg5[%c2_42, %c0_43] : memref<8x8xf32, #tpu.memory_space<smem>>
    %103 = vector.broadcast %102 : f32 to vector<8x8xf32>
    %104 = arith.mulf %15, %103 : vector<8x8xf32>
    %c2_44 = arith.constant 2 : index
    %105 = memref.load %arg6[%c2_44] : memref<8xf32, #tpu.memory_space<smem>>
    %106 = vector.broadcast %105 : f32 to vector<8x8xf32>
    %107 = arith.addf %104, %106 : vector<8x8xf32>
    %c2_45 = arith.constant 2 : index
    %c1_46 = arith.constant 1 : index
    %108 = memref.load %arg5[%c2_45, %c1_46] : memref<8x8xf32, #tpu.memory_space<smem>>
    %109 = vector.broadcast %108 : f32 to vector<8x8xf32>
    %110 = arith.mulf %17, %109 : vector<8x8xf32>
    %111 = arith.addf %107, %110 : vector<8x8xf32>
    %c2_47 = arith.constant 2 : index
    %c2_48 = arith.constant 2 : index
    %112 = memref.load %arg5[%c2_47, %c2_48] : memref<8x8xf32, #tpu.memory_space<smem>>
    %113 = vector.broadcast %112 : f32 to vector<8x8xf32>
    %114 = arith.mulf %19, %113 : vector<8x8xf32>
    %115 = arith.addf %111, %114 : vector<8x8xf32>
    %c2_49 = arith.constant 2 : index
    %c3_50 = arith.constant 3 : index
    %116 = memref.load %arg5[%c2_49, %c3_50] : memref<8x8xf32, #tpu.memory_space<smem>>
    %117 = vector.broadcast %116 : f32 to vector<8x8xf32>
    %118 = arith.mulf %21, %117 : vector<8x8xf32>
    %119 = arith.addf %115, %118 : vector<8x8xf32>
    %c2_51 = arith.constant 2 : index
    %c4_52 = arith.constant 4 : index
    %120 = memref.load %arg5[%c2_51, %c4_52] : memref<8x8xf32, #tpu.memory_space<smem>>
    %121 = vector.broadcast %120 : f32 to vector<8x8xf32>
    %122 = arith.mulf %23, %121 : vector<8x8xf32>
    %123 = arith.addf %119, %122 : vector<8x8xf32>
    %c2_53 = arith.constant 2 : index
    %c5_54 = arith.constant 5 : index
    %124 = memref.load %arg5[%c2_53, %c5_54] : memref<8x8xf32, #tpu.memory_space<smem>>
    %125 = vector.broadcast %124 : f32 to vector<8x8xf32>
    %126 = arith.mulf %25, %125 : vector<8x8xf32>
    %127 = arith.addf %123, %126 : vector<8x8xf32>
    %c2_55 = arith.constant 2 : index
    %c6_56 = arith.constant 6 : index
    %128 = memref.load %arg5[%c2_55, %c6_56] : memref<8x8xf32, #tpu.memory_space<smem>>
    %129 = vector.broadcast %128 : f32 to vector<8x8xf32>
    %130 = arith.mulf %27, %129 : vector<8x8xf32>
    %131 = arith.addf %127, %130 : vector<8x8xf32>
    %c2_57 = arith.constant 2 : index
    %c7_58 = arith.constant 7 : index
    %132 = memref.load %arg5[%c2_57, %c7_58] : memref<8x8xf32, #tpu.memory_space<smem>>
    %133 = vector.broadcast %132 : f32 to vector<8x8xf32>
    %134 = arith.mulf %29, %133 : vector<8x8xf32>
    %135 = arith.addf %131, %134 : vector<8x8xf32>
    %cst_59 = arith.constant 0.000000e+00 : f32
    %136 = vector.broadcast %cst_59 : f32 to vector<8x8xf32>
    %137 = arith.maximumf %135, %136 : vector<8x8xf32>
    %c3_60 = arith.constant 3 : index
    %c0_61 = arith.constant 0 : index
    %138 = memref.load %arg5[%c3_60, %c0_61] : memref<8x8xf32, #tpu.memory_space<smem>>
    %139 = vector.broadcast %138 : f32 to vector<8x8xf32>
    %140 = arith.mulf %15, %139 : vector<8x8xf32>
    %c3_62 = arith.constant 3 : index
    %141 = memref.load %arg6[%c3_62] : memref<8xf32, #tpu.memory_space<smem>>
    %142 = vector.broadcast %141 : f32 to vector<8x8xf32>
    %143 = arith.addf %140, %142 : vector<8x8xf32>
    %c3_63 = arith.constant 3 : index
    %c1_64 = arith.constant 1 : index
    %144 = memref.load %arg5[%c3_63, %c1_64] : memref<8x8xf32, #tpu.memory_space<smem>>
    %145 = vector.broadcast %144 : f32 to vector<8x8xf32>
    %146 = arith.mulf %17, %145 : vector<8x8xf32>
    %147 = arith.addf %143, %146 : vector<8x8xf32>
    %c3_65 = arith.constant 3 : index
    %c2_66 = arith.constant 2 : index
    %148 = memref.load %arg5[%c3_65, %c2_66] : memref<8x8xf32, #tpu.memory_space<smem>>
    %149 = vector.broadcast %148 : f32 to vector<8x8xf32>
    %150 = arith.mulf %19, %149 : vector<8x8xf32>
    %151 = arith.addf %147, %150 : vector<8x8xf32>
    %c3_67 = arith.constant 3 : index
    %c3_68 = arith.constant 3 : index
    %152 = memref.load %arg5[%c3_67, %c3_68] : memref<8x8xf32, #tpu.memory_space<smem>>
    %153 = vector.broadcast %152 : f32 to vector<8x8xf32>
    %154 = arith.mulf %21, %153 : vector<8x8xf32>
    %155 = arith.addf %151, %154 : vector<8x8xf32>
    %c3_69 = arith.constant 3 : index
    %c4_70 = arith.constant 4 : index
    %156 = memref.load %arg5[%c3_69, %c4_70] : memref<8x8xf32, #tpu.memory_space<smem>>
    %157 = vector.broadcast %156 : f32 to vector<8x8xf32>
    %158 = arith.mulf %23, %157 : vector<8x8xf32>
    %159 = arith.addf %155, %158 : vector<8x8xf32>
    %c3_71 = arith.constant 3 : index
    %c5_72 = arith.constant 5 : index
    %160 = memref.load %arg5[%c3_71, %c5_72] : memref<8x8xf32, #tpu.memory_space<smem>>
    %161 = vector.broadcast %160 : f32 to vector<8x8xf32>
    %162 = arith.mulf %25, %161 : vector<8x8xf32>
    %163 = arith.addf %159, %162 : vector<8x8xf32>
    %c3_73 = arith.constant 3 : index
    %c6_74 = arith.constant 6 : index
    %164 = memref.load %arg5[%c3_73, %c6_74] : memref<8x8xf32, #tpu.memory_space<smem>>
    %165 = vector.broadcast %164 : f32 to vector<8x8xf32>
    %166 = arith.mulf %27, %165 : vector<8x8xf32>
    %167 = arith.addf %163, %166 : vector<8x8xf32>
    %c3_75 = arith.constant 3 : index
    %c7_76 = arith.constant 7 : index
    %168 = memref.load %arg5[%c3_75, %c7_76] : memref<8x8xf32, #tpu.memory_space<smem>>
    %169 = vector.broadcast %168 : f32 to vector<8x8xf32>
    %170 = arith.mulf %29, %169 : vector<8x8xf32>
    %171 = arith.addf %167, %170 : vector<8x8xf32>
    %cst_77 = arith.constant 0.000000e+00 : f32
    %172 = vector.broadcast %cst_77 : f32 to vector<8x8xf32>
    %173 = arith.maximumf %171, %172 : vector<8x8xf32>
    %c4_78 = arith.constant 4 : index
    %c0_79 = arith.constant 0 : index
    %174 = memref.load %arg5[%c4_78, %c0_79] : memref<8x8xf32, #tpu.memory_space<smem>>
    %175 = vector.broadcast %174 : f32 to vector<8x8xf32>
    %176 = arith.mulf %15, %175 : vector<8x8xf32>
    %c4_80 = arith.constant 4 : index
    %177 = memref.load %arg6[%c4_80] : memref<8xf32, #tpu.memory_space<smem>>
    %178 = vector.broadcast %177 : f32 to vector<8x8xf32>
    %179 = arith.addf %176, %178 : vector<8x8xf32>
    %c4_81 = arith.constant 4 : index
    %c1_82 = arith.constant 1 : index
    %180 = memref.load %arg5[%c4_81, %c1_82] : memref<8x8xf32, #tpu.memory_space<smem>>
    %181 = vector.broadcast %180 : f32 to vector<8x8xf32>
    %182 = arith.mulf %17, %181 : vector<8x8xf32>
    %183 = arith.addf %179, %182 : vector<8x8xf32>
    %c4_83 = arith.constant 4 : index
    %c2_84 = arith.constant 2 : index
    %184 = memref.load %arg5[%c4_83, %c2_84] : memref<8x8xf32, #tpu.memory_space<smem>>
    %185 = vector.broadcast %184 : f32 to vector<8x8xf32>
    %186 = arith.mulf %19, %185 : vector<8x8xf32>
    %187 = arith.addf %183, %186 : vector<8x8xf32>
    %c4_85 = arith.constant 4 : index
    %c3_86 = arith.constant 3 : index
    %188 = memref.load %arg5[%c4_85, %c3_86] : memref<8x8xf32, #tpu.memory_space<smem>>
    %189 = vector.broadcast %188 : f32 to vector<8x8xf32>
    %190 = arith.mulf %21, %189 : vector<8x8xf32>
    %191 = arith.addf %187, %190 : vector<8x8xf32>
    %c4_87 = arith.constant 4 : index
    %c4_88 = arith.constant 4 : index
    %192 = memref.load %arg5[%c4_87, %c4_88] : memref<8x8xf32, #tpu.memory_space<smem>>
    %193 = vector.broadcast %192 : f32 to vector<8x8xf32>
    %194 = arith.mulf %23, %193 : vector<8x8xf32>
    %195 = arith.addf %191, %194 : vector<8x8xf32>
    %c4_89 = arith.constant 4 : index
    %c5_90 = arith.constant 5 : index
    %196 = memref.load %arg5[%c4_89, %c5_90] : memref<8x8xf32, #tpu.memory_space<smem>>
    %197 = vector.broadcast %196 : f32 to vector<8x8xf32>
    %198 = arith.mulf %25, %197 : vector<8x8xf32>
    %199 = arith.addf %195, %198 : vector<8x8xf32>
    %c4_91 = arith.constant 4 : index
    %c6_92 = arith.constant 6 : index
    %200 = memref.load %arg5[%c4_91, %c6_92] : memref<8x8xf32, #tpu.memory_space<smem>>
    %201 = vector.broadcast %200 : f32 to vector<8x8xf32>
    %202 = arith.mulf %27, %201 : vector<8x8xf32>
    %203 = arith.addf %199, %202 : vector<8x8xf32>
    %c4_93 = arith.constant 4 : index
    %c7_94 = arith.constant 7 : index
    %204 = memref.load %arg5[%c4_93, %c7_94] : memref<8x8xf32, #tpu.memory_space<smem>>
    %205 = vector.broadcast %204 : f32 to vector<8x8xf32>
    %206 = arith.mulf %29, %205 : vector<8x8xf32>
    %207 = arith.addf %203, %206 : vector<8x8xf32>
    %cst_95 = arith.constant 0.000000e+00 : f32
    %208 = vector.broadcast %cst_95 : f32 to vector<8x8xf32>
    %209 = arith.maximumf %207, %208 : vector<8x8xf32>
    %c5_96 = arith.constant 5 : index
    %c0_97 = arith.constant 0 : index
    %210 = memref.load %arg5[%c5_96, %c0_97] : memref<8x8xf32, #tpu.memory_space<smem>>
    %211 = vector.broadcast %210 : f32 to vector<8x8xf32>
    %212 = arith.mulf %15, %211 : vector<8x8xf32>
    %c5_98 = arith.constant 5 : index
    %213 = memref.load %arg6[%c5_98] : memref<8xf32, #tpu.memory_space<smem>>
    %214 = vector.broadcast %213 : f32 to vector<8x8xf32>
    %215 = arith.addf %212, %214 : vector<8x8xf32>
    %c5_99 = arith.constant 5 : index
    %c1_100 = arith.constant 1 : index
    %216 = memref.load %arg5[%c5_99, %c1_100] : memref<8x8xf32, #tpu.memory_space<smem>>
    %217 = vector.broadcast %216 : f32 to vector<8x8xf32>
    %218 = arith.mulf %17, %217 : vector<8x8xf32>
    %219 = arith.addf %215, %218 : vector<8x8xf32>
    %c5_101 = arith.constant 5 : index
    %c2_102 = arith.constant 2 : index
    %220 = memref.load %arg5[%c5_101, %c2_102] : memref<8x8xf32, #tpu.memory_space<smem>>
    %221 = vector.broadcast %220 : f32 to vector<8x8xf32>
    %222 = arith.mulf %19, %221 : vector<8x8xf32>
    %223 = arith.addf %219, %222 : vector<8x8xf32>
    %c5_103 = arith.constant 5 : index
    %c3_104 = arith.constant 3 : index
    %224 = memref.load %arg5[%c5_103, %c3_104] : memref<8x8xf32, #tpu.memory_space<smem>>
    %225 = vector.broadcast %224 : f32 to vector<8x8xf32>
    %226 = arith.mulf %21, %225 : vector<8x8xf32>
    %227 = arith.addf %223, %226 : vector<8x8xf32>
    %c5_105 = arith.constant 5 : index
    %c4_106 = arith.constant 4 : index
    %228 = memref.load %arg5[%c5_105, %c4_106] : memref<8x8xf32, #tpu.memory_space<smem>>
    %229 = vector.broadcast %228 : f32 to vector<8x8xf32>
    %230 = arith.mulf %23, %229 : vector<8x8xf32>
    %231 = arith.addf %227, %230 : vector<8x8xf32>
    %c5_107 = arith.constant 5 : index
    %c5_108 = arith.constant 5 : index
    %232 = memref.load %arg5[%c5_107, %c5_108] : memref<8x8xf32, #tpu.memory_space<smem>>
    %233 = vector.broadcast %232 : f32 to vector<8x8xf32>
    %234 = arith.mulf %25, %233 : vector<8x8xf32>
    %235 = arith.addf %231, %234 : vector<8x8xf32>
    %c5_109 = arith.constant 5 : index
    %c6_110 = arith.constant 6 : index
    %236 = memref.load %arg5[%c5_109, %c6_110] : memref<8x8xf32, #tpu.memory_space<smem>>
    %237 = vector.broadcast %236 : f32 to vector<8x8xf32>
    %238 = arith.mulf %27, %237 : vector<8x8xf32>
    %239 = arith.addf %235, %238 : vector<8x8xf32>
    %c5_111 = arith.constant 5 : index
    %c7_112 = arith.constant 7 : index
    %240 = memref.load %arg5[%c5_111, %c7_112] : memref<8x8xf32, #tpu.memory_space<smem>>
    %241 = vector.broadcast %240 : f32 to vector<8x8xf32>
    %242 = arith.mulf %29, %241 : vector<8x8xf32>
    %243 = arith.addf %239, %242 : vector<8x8xf32>
    %cst_113 = arith.constant 0.000000e+00 : f32
    %244 = vector.broadcast %cst_113 : f32 to vector<8x8xf32>
    %245 = arith.maximumf %243, %244 : vector<8x8xf32>
    %c6_114 = arith.constant 6 : index
    %c0_115 = arith.constant 0 : index
    %246 = memref.load %arg5[%c6_114, %c0_115] : memref<8x8xf32, #tpu.memory_space<smem>>
    %247 = vector.broadcast %246 : f32 to vector<8x8xf32>
    %248 = arith.mulf %15, %247 : vector<8x8xf32>
    %c6_116 = arith.constant 6 : index
    %249 = memref.load %arg6[%c6_116] : memref<8xf32, #tpu.memory_space<smem>>
    %250 = vector.broadcast %249 : f32 to vector<8x8xf32>
    %251 = arith.addf %248, %250 : vector<8x8xf32>
    %c6_117 = arith.constant 6 : index
    %c1_118 = arith.constant 1 : index
    %252 = memref.load %arg5[%c6_117, %c1_118] : memref<8x8xf32, #tpu.memory_space<smem>>
    %253 = vector.broadcast %252 : f32 to vector<8x8xf32>
    %254 = arith.mulf %17, %253 : vector<8x8xf32>
    %255 = arith.addf %251, %254 : vector<8x8xf32>
    %c6_119 = arith.constant 6 : index
    %c2_120 = arith.constant 2 : index
    %256 = memref.load %arg5[%c6_119, %c2_120] : memref<8x8xf32, #tpu.memory_space<smem>>
    %257 = vector.broadcast %256 : f32 to vector<8x8xf32>
    %258 = arith.mulf %19, %257 : vector<8x8xf32>
    %259 = arith.addf %255, %258 : vector<8x8xf32>
    %c6_121 = arith.constant 6 : index
    %c3_122 = arith.constant 3 : index
    %260 = memref.load %arg5[%c6_121, %c3_122] : memref<8x8xf32, #tpu.memory_space<smem>>
    %261 = vector.broadcast %260 : f32 to vector<8x8xf32>
    %262 = arith.mulf %21, %261 : vector<8x8xf32>
    %263 = arith.addf %259, %262 : vector<8x8xf32>
    %c6_123 = arith.constant 6 : index
    %c4_124 = arith.constant 4 : index
    %264 = memref.load %arg5[%c6_123, %c4_124] : memref<8x8xf32, #tpu.memory_space<smem>>
    %265 = vector.broadcast %264 : f32 to vector<8x8xf32>
    %266 = arith.mulf %23, %265 : vector<8x8xf32>
    %267 = arith.addf %263, %266 : vector<8x8xf32>
    %c6_125 = arith.constant 6 : index
    %c5_126 = arith.constant 5 : index
    %268 = memref.load %arg5[%c6_125, %c5_126] : memref<8x8xf32, #tpu.memory_space<smem>>
    %269 = vector.broadcast %268 : f32 to vector<8x8xf32>
    %270 = arith.mulf %25, %269 : vector<8x8xf32>
    %271 = arith.addf %267, %270 : vector<8x8xf32>
    %c6_127 = arith.constant 6 : index
    %c6_128 = arith.constant 6 : index
    %272 = memref.load %arg5[%c6_127, %c6_128] : memref<8x8xf32, #tpu.memory_space<smem>>
    %273 = vector.broadcast %272 : f32 to vector<8x8xf32>
    %274 = arith.mulf %27, %273 : vector<8x8xf32>
    %275 = arith.addf %271, %274 : vector<8x8xf32>
    %c6_129 = arith.constant 6 : index
    %c7_130 = arith.constant 7 : index
    %276 = memref.load %arg5[%c6_129, %c7_130] : memref<8x8xf32, #tpu.memory_space<smem>>
    %277 = vector.broadcast %276 : f32 to vector<8x8xf32>
    %278 = arith.mulf %29, %277 : vector<8x8xf32>
    %279 = arith.addf %275, %278 : vector<8x8xf32>
    %cst_131 = arith.constant 0.000000e+00 : f32
    %280 = vector.broadcast %cst_131 : f32 to vector<8x8xf32>
    %281 = arith.maximumf %279, %280 : vector<8x8xf32>
    %c7_132 = arith.constant 7 : index
    %c0_133 = arith.constant 0 : index
    %282 = memref.load %arg5[%c7_132, %c0_133] : memref<8x8xf32, #tpu.memory_space<smem>>
    %283 = vector.broadcast %282 : f32 to vector<8x8xf32>
    %284 = arith.mulf %15, %283 : vector<8x8xf32>
    %c7_134 = arith.constant 7 : index
    %285 = memref.load %arg6[%c7_134] : memref<8xf32, #tpu.memory_space<smem>>
    %286 = vector.broadcast %285 : f32 to vector<8x8xf32>
    %287 = arith.addf %284, %286 : vector<8x8xf32>
    %c7_135 = arith.constant 7 : index
    %c1_136 = arith.constant 1 : index
    %288 = memref.load %arg5[%c7_135, %c1_136] : memref<8x8xf32, #tpu.memory_space<smem>>
    %289 = vector.broadcast %288 : f32 to vector<8x8xf32>
    %290 = arith.mulf %17, %289 : vector<8x8xf32>
    %291 = arith.addf %287, %290 : vector<8x8xf32>
    %c7_137 = arith.constant 7 : index
    %c2_138 = arith.constant 2 : index
    %292 = memref.load %arg5[%c7_137, %c2_138] : memref<8x8xf32, #tpu.memory_space<smem>>
    %293 = vector.broadcast %292 : f32 to vector<8x8xf32>
    %294 = arith.mulf %19, %293 : vector<8x8xf32>
    %295 = arith.addf %291, %294 : vector<8x8xf32>
    %c7_139 = arith.constant 7 : index
    %c3_140 = arith.constant 3 : index
    %296 = memref.load %arg5[%c7_139, %c3_140] : memref<8x8xf32, #tpu.memory_space<smem>>
    %297 = vector.broadcast %296 : f32 to vector<8x8xf32>
    %298 = arith.mulf %21, %297 : vector<8x8xf32>
    %299 = arith.addf %295, %298 : vector<8x8xf32>
    %c7_141 = arith.constant 7 : index
    %c4_142 = arith.constant 4 : index
    %300 = memref.load %arg5[%c7_141, %c4_142] : memref<8x8xf32, #tpu.memory_space<smem>>
    %301 = vector.broadcast %300 : f32 to vector<8x8xf32>
    %302 = arith.mulf %23, %301 : vector<8x8xf32>
    %303 = arith.addf %299, %302 : vector<8x8xf32>
    %c7_143 = arith.constant 7 : index
    %c5_144 = arith.constant 5 : index
    %304 = memref.load %arg5[%c7_143, %c5_144] : memref<8x8xf32, #tpu.memory_space<smem>>
    %305 = vector.broadcast %304 : f32 to vector<8x8xf32>
    %306 = arith.mulf %25, %305 : vector<8x8xf32>
    %307 = arith.addf %303, %306 : vector<8x8xf32>
    %c7_145 = arith.constant 7 : index
    %c6_146 = arith.constant 6 : index
    %308 = memref.load %arg5[%c7_145, %c6_146] : memref<8x8xf32, #tpu.memory_space<smem>>
    %309 = vector.broadcast %308 : f32 to vector<8x8xf32>
    %310 = arith.mulf %27, %309 : vector<8x8xf32>
    %311 = arith.addf %307, %310 : vector<8x8xf32>
    %c7_147 = arith.constant 7 : index
    %c7_148 = arith.constant 7 : index
    %312 = memref.load %arg5[%c7_147, %c7_148] : memref<8x8xf32, #tpu.memory_space<smem>>
    %313 = vector.broadcast %312 : f32 to vector<8x8xf32>
    %314 = arith.mulf %29, %313 : vector<8x8xf32>
    %315 = arith.addf %311, %314 : vector<8x8xf32>
    %cst_149 = arith.constant 0.000000e+00 : f32
    %316 = vector.broadcast %cst_149 : f32 to vector<8x8xf32>
    %317 = arith.maximumf %315, %316 : vector<8x8xf32>
    %c0_150 = arith.constant 0 : index
    %c0_151 = arith.constant 0 : index
    %318 = memref.load %arg7[%c0_150, %c0_151] : memref<4x8xf32, #tpu.memory_space<smem>>
    %319 = vector.broadcast %318 : f32 to vector<8x8xf32>
    %320 = arith.mulf %65, %319 : vector<8x8xf32>
    %c0_152 = arith.constant 0 : index
    %321 = memref.load %arg8[%c0_152] : memref<4xf32, #tpu.memory_space<smem>>
    %322 = vector.broadcast %321 : f32 to vector<8x8xf32>
    %323 = arith.addf %320, %322 : vector<8x8xf32>
    %c0_153 = arith.constant 0 : index
    %c1_154 = arith.constant 1 : index
    %324 = memref.load %arg7[%c0_153, %c1_154] : memref<4x8xf32, #tpu.memory_space<smem>>
    %325 = vector.broadcast %324 : f32 to vector<8x8xf32>
    %326 = arith.mulf %101, %325 : vector<8x8xf32>
    %327 = arith.addf %323, %326 : vector<8x8xf32>
    %c0_155 = arith.constant 0 : index
    %c2_156 = arith.constant 2 : index
    %328 = memref.load %arg7[%c0_155, %c2_156] : memref<4x8xf32, #tpu.memory_space<smem>>
    %329 = vector.broadcast %328 : f32 to vector<8x8xf32>
    %330 = arith.mulf %137, %329 : vector<8x8xf32>
    %331 = arith.addf %327, %330 : vector<8x8xf32>
    %c0_157 = arith.constant 0 : index
    %c3_158 = arith.constant 3 : index
    %332 = memref.load %arg7[%c0_157, %c3_158] : memref<4x8xf32, #tpu.memory_space<smem>>
    %333 = vector.broadcast %332 : f32 to vector<8x8xf32>
    %334 = arith.mulf %173, %333 : vector<8x8xf32>
    %335 = arith.addf %331, %334 : vector<8x8xf32>
    %c0_159 = arith.constant 0 : index
    %c4_160 = arith.constant 4 : index
    %336 = memref.load %arg7[%c0_159, %c4_160] : memref<4x8xf32, #tpu.memory_space<smem>>
    %337 = vector.broadcast %336 : f32 to vector<8x8xf32>
    %338 = arith.mulf %209, %337 : vector<8x8xf32>
    %339 = arith.addf %335, %338 : vector<8x8xf32>
    %c0_161 = arith.constant 0 : index
    %c5_162 = arith.constant 5 : index
    %340 = memref.load %arg7[%c0_161, %c5_162] : memref<4x8xf32, #tpu.memory_space<smem>>
    %341 = vector.broadcast %340 : f32 to vector<8x8xf32>
    %342 = arith.mulf %245, %341 : vector<8x8xf32>
    %343 = arith.addf %339, %342 : vector<8x8xf32>
    %c0_163 = arith.constant 0 : index
    %c6_164 = arith.constant 6 : index
    %344 = memref.load %arg7[%c0_163, %c6_164] : memref<4x8xf32, #tpu.memory_space<smem>>
    %345 = vector.broadcast %344 : f32 to vector<8x8xf32>
    %346 = arith.mulf %281, %345 : vector<8x8xf32>
    %347 = arith.addf %343, %346 : vector<8x8xf32>
    %c0_165 = arith.constant 0 : index
    %c7_166 = arith.constant 7 : index
    %348 = memref.load %arg7[%c0_165, %c7_166] : memref<4x8xf32, #tpu.memory_space<smem>>
    %349 = vector.broadcast %348 : f32 to vector<8x8xf32>
    %350 = arith.mulf %317, %349 : vector<8x8xf32>
    %351 = arith.addf %347, %350 : vector<8x8xf32>
    %cst_167 = arith.constant dense<0xFF800000> : vector<8xf32>
    %352 = vector.multi_reduction <maximumf>, %351, %cst_167 [1] : vector<8x8xf32> to vector<8xf32>
    %353 = vector.shape_cast %352 : vector<8xf32> to vector<8x1xf32>
    %354 = vector.broadcast %353 : vector<8x1xf32> to vector<8x8xf32>
    %355 = arith.subf %351, %354 : vector<8x8xf32>
    %356 = math.exp %355 : vector<8x8xf32>
    %cst_168 = arith.constant dense<0.000000e+00> : vector<8xf32>
    %357 = vector.multi_reduction <add>, %356, %cst_168 [1] : vector<8x8xf32> to vector<8xf32>
    %358 = vector.shape_cast %357 : vector<8xf32> to vector<8x1xf32>
    %359 = tpu.reciprocal %358 {approx = true} : vector<8x1xf32> -> vector<8x1xf32>
    %360 = vector.broadcast %359 : vector<8x1xf32> to vector<8x8xf32>
    %361 = arith.mulf %356, %360 : vector<8x8xf32>
    %362 = vector.extract_strided_slice %10 {offsets = [0, 0, 0], sizes = [1, 8, 8], strides = [1, 1, 1]} : vector<4x8x8xf32> to vector<1x8x8xf32>
    %363 = vector.shape_cast %362 : vector<1x8x8xf32> to vector<8x8xf32>
    %cst_169 = arith.constant dense<0.000000e+00> : vector<8x8xf32>
    %364 = tpu.matmul %361, %363, %cst_169 {dimension_numbers = #tpu.dot_dimension_numbers<[1], [0], [0], [1], [0, 0, 1, 1], [], []>} : vector<8x8xf32>, vector<8x8xf32>, vector<8x8xf32> -> vector<8x8xf32>
    %365 = vector.extract_strided_slice %1 {offsets = [0, 0, 0], sizes = [1, 8, 32], strides = [1, 1, 1]} : vector<4x8x32xf32> to vector<1x8x32xf32>
    %366 = vector.shape_cast %365 : vector<1x8x32xf32> to vector<8x32xf32>
    %cst_170 = arith.constant dense<0.000000e+00> : vector<8x32xf32>
    %367 = tpu.matmul %364, %366, %cst_170 {dimension_numbers = #tpu.dot_dimension_numbers<[1], [0], [0], [1], [0, 0, 1, 1], [], []>} : vector<8x8xf32>, vector<8x32xf32>, vector<8x32xf32> -> vector<8x32xf32>
    %c1_171 = arith.constant 1 : index
    %c0_172 = arith.constant 0 : index
    %368 = memref.load %arg7[%c1_171, %c0_172] : memref<4x8xf32, #tpu.memory_space<smem>>
    %369 = vector.broadcast %368 : f32 to vector<8x8xf32>
    %370 = arith.mulf %65, %369 : vector<8x8xf32>
    %c1_173 = arith.constant 1 : index
    %371 = memref.load %arg8[%c1_173] : memref<4xf32, #tpu.memory_space<smem>>
    %372 = vector.broadcast %371 : f32 to vector<8x8xf32>
    %373 = arith.addf %370, %372 : vector<8x8xf32>
    %c1_174 = arith.constant 1 : index
    %c1_175 = arith.constant 1 : index
    %374 = memref.load %arg7[%c1_174, %c1_175] : memref<4x8xf32, #tpu.memory_space<smem>>
    %375 = vector.broadcast %374 : f32 to vector<8x8xf32>
    %376 = arith.mulf %101, %375 : vector<8x8xf32>
    %377 = arith.addf %373, %376 : vector<8x8xf32>
    %c1_176 = arith.constant 1 : index
    %c2_177 = arith.constant 2 : index
    %378 = memref.load %arg7[%c1_176, %c2_177] : memref<4x8xf32, #tpu.memory_space<smem>>
    %379 = vector.broadcast %378 : f32 to vector<8x8xf32>
    %380 = arith.mulf %137, %379 : vector<8x8xf32>
    %381 = arith.addf %377, %380 : vector<8x8xf32>
    %c1_178 = arith.constant 1 : index
    %c3_179 = arith.constant 3 : index
    %382 = memref.load %arg7[%c1_178, %c3_179] : memref<4x8xf32, #tpu.memory_space<smem>>
    %383 = vector.broadcast %382 : f32 to vector<8x8xf32>
    %384 = arith.mulf %173, %383 : vector<8x8xf32>
    %385 = arith.addf %381, %384 : vector<8x8xf32>
    %c1_180 = arith.constant 1 : index
    %c4_181 = arith.constant 4 : index
    %386 = memref.load %arg7[%c1_180, %c4_181] : memref<4x8xf32, #tpu.memory_space<smem>>
    %387 = vector.broadcast %386 : f32 to vector<8x8xf32>
    %388 = arith.mulf %209, %387 : vector<8x8xf32>
    %389 = arith.addf %385, %388 : vector<8x8xf32>
    %c1_182 = arith.constant 1 : index
    %c5_183 = arith.constant 5 : index
    %390 = memref.load %arg7[%c1_182, %c5_183] : memref<4x8xf32, #tpu.memory_space<smem>>
    %391 = vector.broadcast %390 : f32 to vector<8x8xf32>
    %392 = arith.mulf %245, %391 : vector<8x8xf32>
    %393 = arith.addf %389, %392 : vector<8x8xf32>
    %c1_184 = arith.constant 1 : index
    %c6_185 = arith.constant 6 : index
    %394 = memref.load %arg7[%c1_184, %c6_185] : memref<4x8xf32, #tpu.memory_space<smem>>
    %395 = vector.broadcast %394 : f32 to vector<8x8xf32>
    %396 = arith.mulf %281, %395 : vector<8x8xf32>
    %397 = arith.addf %393, %396 : vector<8x8xf32>
    %c1_186 = arith.constant 1 : index
    %c7_187 = arith.constant 7 : index
    %398 = memref.load %arg7[%c1_186, %c7_187] : memref<4x8xf32, #tpu.memory_space<smem>>
    %399 = vector.broadcast %398 : f32 to vector<8x8xf32>
    %400 = arith.mulf %317, %399 : vector<8x8xf32>
    %401 = arith.addf %397, %400 : vector<8x8xf32>
    %cst_188 = arith.constant dense<0xFF800000> : vector<8xf32>
    %402 = vector.multi_reduction <maximumf>, %401, %cst_188 [1] : vector<8x8xf32> to vector<8xf32>
    %403 = vector.shape_cast %402 : vector<8xf32> to vector<8x1xf32>
    %404 = vector.broadcast %403 : vector<8x1xf32> to vector<8x8xf32>
    %405 = arith.subf %401, %404 : vector<8x8xf32>
    %406 = math.exp %405 : vector<8x8xf32>
    %cst_189 = arith.constant dense<0.000000e+00> : vector<8xf32>
    %407 = vector.multi_reduction <add>, %406, %cst_189 [1] : vector<8x8xf32> to vector<8xf32>
    %408 = vector.shape_cast %407 : vector<8xf32> to vector<8x1xf32>
    %409 = tpu.reciprocal %408 {approx = true} : vector<8x1xf32> -> vector<8x1xf32>
    %410 = vector.broadcast %409 : vector<8x1xf32> to vector<8x8xf32>
    %411 = arith.mulf %406, %410 : vector<8x8xf32>
    %412 = vector.extract_strided_slice %10 {offsets = [1, 0, 0], sizes = [1, 8, 8], strides = [1, 1, 1]} : vector<4x8x8xf32> to vector<1x8x8xf32>
    %413 = vector.shape_cast %412 : vector<1x8x8xf32> to vector<8x8xf32>
    %cst_190 = arith.constant dense<0.000000e+00> : vector<8x8xf32>
    %414 = tpu.matmul %411, %413, %cst_190 {dimension_numbers = #tpu.dot_dimension_numbers<[1], [0], [0], [1], [0, 0, 1, 1], [], []>} : vector<8x8xf32>, vector<8x8xf32>, vector<8x8xf32> -> vector<8x8xf32>
    %415 = vector.extract_strided_slice %1 {offsets = [1, 0, 0], sizes = [1, 8, 32], strides = [1, 1, 1]} : vector<4x8x32xf32> to vector<1x8x32xf32>
    %416 = vector.shape_cast %415 : vector<1x8x32xf32> to vector<8x32xf32>
    %cst_191 = arith.constant dense<0.000000e+00> : vector<8x32xf32>
    %417 = tpu.matmul %414, %416, %cst_191 {dimension_numbers = #tpu.dot_dimension_numbers<[1], [0], [0], [1], [0, 0, 1, 1], [], []>} : vector<8x8xf32>, vector<8x32xf32>, vector<8x32xf32> -> vector<8x32xf32>
    %418 = arith.addf %367, %417 : vector<8x32xf32>
    %c2_192 = arith.constant 2 : index
    %c0_193 = arith.constant 0 : index
    %419 = memref.load %arg7[%c2_192, %c0_193] : memref<4x8xf32, #tpu.memory_space<smem>>
    %420 = vector.broadcast %419 : f32 to vector<8x8xf32>
    %421 = arith.mulf %65, %420 : vector<8x8xf32>
    %c2_194 = arith.constant 2 : index
    %422 = memref.load %arg8[%c2_194] : memref<4xf32, #tpu.memory_space<smem>>
    %423 = vector.broadcast %422 : f32 to vector<8x8xf32>
    %424 = arith.addf %421, %423 : vector<8x8xf32>
    %c2_195 = arith.constant 2 : index
    %c1_196 = arith.constant 1 : index
    %425 = memref.load %arg7[%c2_195, %c1_196] : memref<4x8xf32, #tpu.memory_space<smem>>
    %426 = vector.broadcast %425 : f32 to vector<8x8xf32>
    %427 = arith.mulf %101, %426 : vector<8x8xf32>
    %428 = arith.addf %424, %427 : vector<8x8xf32>
    %c2_197 = arith.constant 2 : index
    %c2_198 = arith.constant 2 : index
    %429 = memref.load %arg7[%c2_197, %c2_198] : memref<4x8xf32, #tpu.memory_space<smem>>
    %430 = vector.broadcast %429 : f32 to vector<8x8xf32>
    %431 = arith.mulf %137, %430 : vector<8x8xf32>
    %432 = arith.addf %428, %431 : vector<8x8xf32>
    %c2_199 = arith.constant 2 : index
    %c3_200 = arith.constant 3 : index
    %433 = memref.load %arg7[%c2_199, %c3_200] : memref<4x8xf32, #tpu.memory_space<smem>>
    %434 = vector.broadcast %433 : f32 to vector<8x8xf32>
    %435 = arith.mulf %173, %434 : vector<8x8xf32>
    %436 = arith.addf %432, %435 : vector<8x8xf32>
    %c2_201 = arith.constant 2 : index
    %c4_202 = arith.constant 4 : index
    %437 = memref.load %arg7[%c2_201, %c4_202] : memref<4x8xf32, #tpu.memory_space<smem>>
    %438 = vector.broadcast %437 : f32 to vector<8x8xf32>
    %439 = arith.mulf %209, %438 : vector<8x8xf32>
    %440 = arith.addf %436, %439 : vector<8x8xf32>
    %c2_203 = arith.constant 2 : index
    %c5_204 = arith.constant 5 : index
    %441 = memref.load %arg7[%c2_203, %c5_204] : memref<4x8xf32, #tpu.memory_space<smem>>
    %442 = vector.broadcast %441 : f32 to vector<8x8xf32>
    %443 = arith.mulf %245, %442 : vector<8x8xf32>
    %444 = arith.addf %440, %443 : vector<8x8xf32>
    %c2_205 = arith.constant 2 : index
    %c6_206 = arith.constant 6 : index
    %445 = memref.load %arg7[%c2_205, %c6_206] : memref<4x8xf32, #tpu.memory_space<smem>>
    %446 = vector.broadcast %445 : f32 to vector<8x8xf32>
    %447 = arith.mulf %281, %446 : vector<8x8xf32>
    %448 = arith.addf %444, %447 : vector<8x8xf32>
    %c2_207 = arith.constant 2 : index
    %c7_208 = arith.constant 7 : index
    %449 = memref.load %arg7[%c2_207, %c7_208] : memref<4x8xf32, #tpu.memory_space<smem>>
    %450 = vector.broadcast %449 : f32 to vector<8x8xf32>
    %451 = arith.mulf %317, %450 : vector<8x8xf32>
    %452 = arith.addf %448, %451 : vector<8x8xf32>
    %cst_209 = arith.constant dense<0xFF800000> : vector<8xf32>
    %453 = vector.multi_reduction <maximumf>, %452, %cst_209 [1] : vector<8x8xf32> to vector<8xf32>
    %454 = vector.shape_cast %453 : vector<8xf32> to vector<8x1xf32>
    %455 = vector.broadcast %454 : vector<8x1xf32> to vector<8x8xf32>
    %456 = arith.subf %452, %455 : vector<8x8xf32>
    %457 = math.exp %456 : vector<8x8xf32>
    %cst_210 = arith.constant dense<0.000000e+00> : vector<8xf32>
    %458 = vector.multi_reduction <add>, %457, %cst_210 [1] : vector<8x8xf32> to vector<8xf32>
    %459 = vector.shape_cast %458 : vector<8xf32> to vector<8x1xf32>
    %460 = tpu.reciprocal %459 {approx = true} : vector<8x1xf32> -> vector<8x1xf32>
    %461 = vector.broadcast %460 : vector<8x1xf32> to vector<8x8xf32>
    %462 = arith.mulf %457, %461 : vector<8x8xf32>
    %463 = vector.extract_strided_slice %10 {offsets = [2, 0, 0], sizes = [1, 8, 8], strides = [1, 1, 1]} : vector<4x8x8xf32> to vector<1x8x8xf32>
    %464 = vector.shape_cast %463 : vector<1x8x8xf32> to vector<8x8xf32>
    %cst_211 = arith.constant dense<0.000000e+00> : vector<8x8xf32>
    %465 = tpu.matmul %462, %464, %cst_211 {dimension_numbers = #tpu.dot_dimension_numbers<[1], [0], [0], [1], [0, 0, 1, 1], [], []>} : vector<8x8xf32>, vector<8x8xf32>, vector<8x8xf32> -> vector<8x8xf32>
    %466 = vector.extract_strided_slice %1 {offsets = [2, 0, 0], sizes = [1, 8, 32], strides = [1, 1, 1]} : vector<4x8x32xf32> to vector<1x8x32xf32>
    %467 = vector.shape_cast %466 : vector<1x8x32xf32> to vector<8x32xf32>
    %cst_212 = arith.constant dense<0.000000e+00> : vector<8x32xf32>
    %468 = tpu.matmul %465, %467, %cst_212 {dimension_numbers = #tpu.dot_dimension_numbers<[1], [0], [0], [1], [0, 0, 1, 1], [], []>} : vector<8x8xf32>, vector<8x32xf32>, vector<8x32xf32> -> vector<8x32xf32>
    %469 = arith.addf %418, %468 : vector<8x32xf32>
    %c3_213 = arith.constant 3 : index
    %c0_214 = arith.constant 0 : index
    %470 = memref.load %arg7[%c3_213, %c0_214] : memref<4x8xf32, #tpu.memory_space<smem>>
    %471 = vector.broadcast %470 : f32 to vector<8x8xf32>
    %472 = arith.mulf %65, %471 : vector<8x8xf32>
    %c3_215 = arith.constant 3 : index
    %473 = memref.load %arg8[%c3_215] : memref<4xf32, #tpu.memory_space<smem>>
    %474 = vector.broadcast %473 : f32 to vector<8x8xf32>
    %475 = arith.addf %472, %474 : vector<8x8xf32>
    %c3_216 = arith.constant 3 : index
    %c1_217 = arith.constant 1 : index
    %476 = memref.load %arg7[%c3_216, %c1_217] : memref<4x8xf32, #tpu.memory_space<smem>>
    %477 = vector.broadcast %476 : f32 to vector<8x8xf32>
    %478 = arith.mulf %101, %477 : vector<8x8xf32>
    %479 = arith.addf %475, %478 : vector<8x8xf32>
    %c3_218 = arith.constant 3 : index
    %c2_219 = arith.constant 2 : index
    %480 = memref.load %arg7[%c3_218, %c2_219] : memref<4x8xf32, #tpu.memory_space<smem>>
    %481 = vector.broadcast %480 : f32 to vector<8x8xf32>
    %482 = arith.mulf %137, %481 : vector<8x8xf32>
    %483 = arith.addf %479, %482 : vector<8x8xf32>
    %c3_220 = arith.constant 3 : index
    %c3_221 = arith.constant 3 : index
    %484 = memref.load %arg7[%c3_220, %c3_221] : memref<4x8xf32, #tpu.memory_space<smem>>
    %485 = vector.broadcast %484 : f32 to vector<8x8xf32>
    %486 = arith.mulf %173, %485 : vector<8x8xf32>
    %487 = arith.addf %483, %486 : vector<8x8xf32>
    %c3_222 = arith.constant 3 : index
    %c4_223 = arith.constant 4 : index
    %488 = memref.load %arg7[%c3_222, %c4_223] : memref<4x8xf32, #tpu.memory_space<smem>>
    %489 = vector.broadcast %488 : f32 to vector<8x8xf32>
    %490 = arith.mulf %209, %489 : vector<8x8xf32>
    %491 = arith.addf %487, %490 : vector<8x8xf32>
    %c3_224 = arith.constant 3 : index
    %c5_225 = arith.constant 5 : index
    %492 = memref.load %arg7[%c3_224, %c5_225] : memref<4x8xf32, #tpu.memory_space<smem>>
    %493 = vector.broadcast %492 : f32 to vector<8x8xf32>
    %494 = arith.mulf %245, %493 : vector<8x8xf32>
    %495 = arith.addf %491, %494 : vector<8x8xf32>
    %c3_226 = arith.constant 3 : index
    %c6_227 = arith.constant 6 : index
    %496 = memref.load %arg7[%c3_226, %c6_227] : memref<4x8xf32, #tpu.memory_space<smem>>
    %497 = vector.broadcast %496 : f32 to vector<8x8xf32>
    %498 = arith.mulf %281, %497 : vector<8x8xf32>
    %499 = arith.addf %495, %498 : vector<8x8xf32>
    %c3_228 = arith.constant 3 : index
    %c7_229 = arith.constant 7 : index
    %500 = memref.load %arg7[%c3_228, %c7_229] : memref<4x8xf32, #tpu.memory_space<smem>>
    %501 = vector.broadcast %500 : f32 to vector<8x8xf32>
    %502 = arith.mulf %317, %501 : vector<8x8xf32>
    %503 = arith.addf %499, %502 : vector<8x8xf32>
    %cst_230 = arith.constant dense<0xFF800000> : vector<8xf32>
    %504 = vector.multi_reduction <maximumf>, %503, %cst_230 [1] : vector<8x8xf32> to vector<8xf32>
    %505 = vector.shape_cast %504 : vector<8xf32> to vector<8x1xf32>
    %506 = vector.broadcast %505 : vector<8x1xf32> to vector<8x8xf32>
    %507 = arith.subf %503, %506 : vector<8x8xf32>
    %508 = math.exp %507 : vector<8x8xf32>
    %cst_231 = arith.constant dense<0.000000e+00> : vector<8xf32>
    %509 = vector.multi_reduction <add>, %508, %cst_231 [1] : vector<8x8xf32> to vector<8xf32>
    %510 = vector.shape_cast %509 : vector<8xf32> to vector<8x1xf32>
    %511 = tpu.reciprocal %510 {approx = true} : vector<8x1xf32> -> vector<8x1xf32>
    %512 = vector.broadcast %511 : vector<8x1xf32> to vector<8x8xf32>
    %513 = arith.mulf %508, %512 : vector<8x8xf32>
    %514 = vector.extract_strided_slice %10 {offsets = [3, 0, 0], sizes = [1, 8, 8], strides = [1, 1, 1]} : vector<4x8x8xf32> to vector<1x8x8xf32>
    %515 = vector.shape_cast %514 : vector<1x8x8xf32> to vector<8x8xf32>
    %cst_232 = arith.constant dense<0.000000e+00> : vector<8x8xf32>
    %516 = tpu.matmul %513, %515, %cst_232 {dimension_numbers = #tpu.dot_dimension_numbers<[1], [0], [0], [1], [0, 0, 1, 1], [], []>} : vector<8x8xf32>, vector<8x8xf32>, vector<8x8xf32> -> vector<8x8xf32>
    %517 = vector.extract_strided_slice %1 {offsets = [3, 0, 0], sizes = [1, 8, 32], strides = [1, 1, 1]} : vector<4x8x32xf32> to vector<1x8x32xf32>
    %518 = vector.shape_cast %517 : vector<1x8x32xf32> to vector<8x32xf32>
    %cst_233 = arith.constant dense<0.000000e+00> : vector<8x32xf32>
    %519 = tpu.matmul %516, %518, %cst_233 {dimension_numbers = #tpu.dot_dimension_numbers<[1], [0], [0], [1], [0, 0, 1, 1], [], []>} : vector<8x8xf32>, vector<8x32xf32>, vector<8x32xf32> -> vector<8x32xf32>
    %520 = arith.addf %469, %519 : vector<8x32xf32>
    %c0_234 = arith.constant 0 : index
    %c0_235 = arith.constant 0 : index
    %c0_236 = arith.constant 0 : index
    %521 = vector.load %arg9[%c0_234, %c0_235, %c0_236] : memref<1x8x32xf32, #tpu.memory_space<vmem>>, vector<1x8x32xf32>
    %522 = vector.shape_cast %521 : vector<1x8x32xf32> to vector<8x32xf32>
    %523 = vector.shape_cast %520 : vector<8x32xf32> to vector<1x8x32xf32>
    tpu.vector_store %arg9[%c0_234, %c0_235, %c0_236], %523 {strides = array<i32>} : memref<1x8x32xf32, #tpu.memory_space<vmem>>, vector<1x8x32xf32>,
    return
  }
  func.func @transform_0(%arg0: i32) -> (i32, i32, i32) {
    %c0_i32 = arith.constant 0 : i32
    %c0_i32_0 = arith.constant 0 : i32
    %c0_i32_1 = arith.constant 0 : i32
    return %arg0, %c0_i32, %c0_i32_0 : i32, i32, i32
  }
  func.func @transform_1(%arg0: i32) -> (i32, i32, i32, i32) {
    %c0_i32 = arith.constant 0 : i32
    %c0_i32_0 = arith.constant 0 : i32
    %c0_i32_1 = arith.constant 0 : i32
    %c0_i32_2 = arith.constant 0 : i32
    return %c0_i32, %arg0, %c0_i32_0, %c0_i32_1 : i32, i32, i32, i32
  }
  func.func @transform_2(%arg0: i32) -> (i32, i32, i32) {
    %c0_i32 = arith.constant 0 : i32
    %c0_i32_0 = arith.constant 0 : i32
    %c0_i32_1 = arith.constant 0 : i32
    %c0_i32_2 = arith.constant 0 : i32
    return %c0_i32, %c0_i32_0, %c0_i32_1 : i32, i32, i32
  }
  func.func @transform_3(%arg0: i32) -> (i32, i32, i32) {
    %c0_i32 = arith.constant 0 : i32
    %c0_i32_0 = arith.constant 0 : i32
    %c0_i32_1 = arith.constant 0 : i32
    %c0_i32_2 = arith.constant 0 : i32
    return %c0_i32, %c0_i32_0, %c0_i32_1 : i32, i32, i32
  }
  func.func @transform_4(%arg0: i32) -> (i32, i32) {
    %c0_i32 = arith.constant 0 : i32
    %c0_i32_0 = arith.constant 0 : i32
    %c0_i32_1 = arith.constant 0 : i32
    return %c0_i32, %c0_i32_0 : i32, i32
  }
  func.func @transform_5(%arg0: i32) -> i32 {
    %c0_i32 = arith.constant 0 : i32
    %c0_i32_0 = arith.constant 0 : i32
    return %c0_i32 : i32
  }
  func.func @transform_6(%arg0: i32) -> (i32, i32) {
    %c0_i32 = arith.constant 0 : i32
    %c0_i32_0 = arith.constant 0 : i32
    %c0_i32_1 = arith.constant 0 : i32
    return %c0_i32, %c0_i32_0 : i32, i32
  }
  func.func @transform_7(%arg0: i32) -> i32 {
    %c0_i32 = arith.constant 0 : i32
    %c0_i32_0 = arith.constant 0 : i32
    return %c0_i32 : i32
  }
  func.func @transform_8(%arg0: i32) -> (i32, i32, i32) {
    %c0_i32 = arith.constant 0 : i32
    %c0_i32_0 = arith.constant 0 : i32
    %c0_i32_1 = arith.constant 0 : i32
    return %arg0, %c0_i32, %c0_i32_0 : i32, i32, i32
  }
}

</mosaic_0001>

<llo_original>
// kernel: tpu_custom_call.1
$region0: #{tpu_custom_call.1}
  #allocation0 [shape = 'u32[]', space=smem, size = 0x4, offset = 0x4, fixed_abs, tag = 'smem constant byte address 0x4 - core index']
  #allocation1 [shape = 'u32[144,128]{1,0:T(1,128)}', space=vmem, size = 0x12000, scoped, tag = 'internal scratch']
  %s0 = inlined_call_operand.hbm [shape: f32[2,8,16], index: 0, kind: input, shape index: {}]
  %s1 = inlined_call_operand.hbm [shape: f32[4,2,8,8], index: 1, kind: input, shape index: {}]
  %s2 = inlined_call_operand.hbm [shape: f32[4,16,24], index: 2, kind: input, shape index: {}]
  %s3 = inlined_call_operand.hbm [shape: f32[4,8,32], index: 3, kind: input, shape index: {}]
  %s4 = inlined_call_operand.hbm [shape: f32[8,8], index: 4, kind: input, shape index: {}]
  %s5 = inlined_call_operand.hbm [shape: f32[8], index: 5, kind: input, shape index: {}]
  %s6 = inlined_call_operand.hbm [shape: f32[4,8], index: 6, kind: input, shape index: {}]
  %s7 = inlined_call_operand.hbm [shape: f32[4], index: 7, kind: input, shape index: {}]
  %s8 = inlined_call_operand.hbm [shape: f32[2,8,32], index: 8, kind: output, shape index: {}]
  %s9 = sld [smem:[#allocation0]]
  $region97: #{tpu_custom_call.1} parent=0
    _
  %s11 = ssub.s32 1, %s9
  %s12 = scalar_select 0, %s11, %s9
  $region1: #{tpu_custom_call.1} parent=0
    #allocation2 [shape = 'u8[8192]{0}', space=vmem, size = 0x2000, scoped, tag = 'input window, operand 0']
    #allocation3 [shape = 's32[2]{0}', space=sflag, size = 0x8, scoped, tag = 'scoped memory for tpu_custom_call.1']
    #allocation4 [shape = 's32[2]{0}', space=sflag, size = 0x8, scoped, tag = 'scoped memory for tpu_custom_call.1']
    #allocation5 [shape = 's32[2]{0}', space=sflag, size = 0x8, scoped, tag = 'scoped memory for tpu_custom_call.1']
    #allocation6 [shape = 'u8[32768]{0}', space=vmem, size = 0x8000, scoped, tag = 'input window, operand 1']
    #allocation7 [shape = 's32[2]{0}', space=sflag, size = 0x8, scoped, tag = 'scoped memory for tpu_custom_call.1']
    #allocation8 [shape = 'u8[32768]{0}', space=vmem, size = 0x8000, scoped, tag = 'input window, operand 2, single buffered']
    #allocation9 [shape = 'u8[16384]{0}', space=vmem, size = 0x4000, scoped, tag = 'input window, operand 3, single buffered']
    #allocation10 [shape = 's32[1]{0}', space=sflag, size = 0x4, scoped, tag = 'scoped memory for tpu_custom_call.1']
    #allocation11 [shape = 'u8[4096]{0}', space=smem, size = 0x1000, scoped, tag = 'input window, operand 4, single buffered']
    #allocation12 [shape = 'u8[512]{0}', space=smem, size = 0x200, scoped, tag = 'input window, operand 5, single buffered']
    #allocation13 [shape = 's32[1]{0}', space=sflag, size = 0x4, scoped, tag = 'scoped memory for tpu_custom_call.1']
    #allocation14 [shape = 'u8[2048]{0}', space=smem, size = 0x800, scoped, tag = 'input window, operand 6, single buffered']
    #allocation15 [shape = 'u8[512]{0}', space=smem, size = 0x200, scoped, tag = 'input window, operand 7, single buffered']
    #allocation16 [shape = 's32[1]{0}', space=sflag, size = 0x4, scoped, tag = 'scoped memory for tpu_custom_call.1']
    #allocation17 [shape = 'u8[8192]{0}', space=vmem, size = 0x2000, scoped, tag = 'output window, operand 0']
    %13 = vsyncpa [#allocation3], 0
    %s14 = scalar_lea.sflag [#allocation3], 1
    %15 = vsyncpa %s14, 0
    %16 = vsyncpa [#allocation7], 0
    %s17 = scalar_lea.sflag [#allocation7], 1
    %18 = vsyncpa %s17, 0
    %19 = vsyncpa [#allocation10], 0
    %20 = vsyncpa [#allocation5], 0
    %21 = vsyncpa [#allocation13], 0
    %22 = vsyncpa [#allocation16], 0
    %23 = vsyncpa [#allocation4], 0
    %s24 = scalar_lea.sflag [#allocation4], 1
    %25 = vsyncpa %s24, 0
    loop: start=0, step=1, limit=4
    $region2: #{tpu_custom_call.1} parent=1 // loop_pre_header
      _
    $region3: #{tpu_custom_call.1} parent=1 // loop_header
      %s27 = sphi 0, %s31
      %p28 = scmp.ge.s32.totalorder %s27, 4
      %s37 = sphi 0, %s39
      %s40 = sphi 0, %s37
      %s41 = sphi 0, %s40
      %s57 = sphi 0, %s41
      %s63 = sphi 0, %s65
      %s66 = sphi 0, %s63
      %s67 = sphi 0, %s66
      %s83 = sphi 0, %s67
      %s87 = sphi 0, %s87
      %s89 = sphi 0, %s87
      %s90 = sphi 0, %s89
      %s104 = sphi 0, %s90
      %s108 = sphi 0, %s108
      %s110 = sphi 0, %s108
      %s111 = sphi 0, %s110
      %s125 = sphi 0, %s111
      %s129 = sphi 0, %s129
      %s131 = sphi 0, %s129
      %s132 = sphi 0, %s131
      %s146 = sphi 0, %s132
      %s150 = sphi 0, %s150
      %s152 = sphi 0, %s150
      %s153 = sphi 0, %s152
      %s167 = sphi 0, %s153
      %s171 = sphi 0, %s171
      %s173 = sphi 0, %s171
      %s174 = sphi 0, %s173
      %s188 = sphi 0, %s174
      %s192 = sphi 0, %s192
      %s194 = sphi 0, %s192
      %s195 = sphi 0, %s194
      %s209 = sphi 0, %s195
      %s215 = sphi 0, %s217
      %s218 = sphi 0, %s215
      %s219 = sphi 0, %s218
      %s235 = sphi 0, %s219
    $region4: #{tpu_custom_call.1} parent=1 // loop_header_branch
      %30 = sbr.rel (%p28) target = $region8
    $region5: #{tpu_custom_call.1} parent=1 // loop_body
      %s32 = ssub.s32 %s27, 1
      %s33 = ssub.s32 %s27, 2
      %s34 = sadd.s32 %s27, 1
      %s35 = ssub.s32 %s27, %s34
      %p36 = scmp.eq.s32.totalorder %s35, 0
      %s38 = sadd.s32 %s37, 1
      %s39 = scalar_select %p36, %s37, %s38
      %p42 = pneg %p36
      %p43 = scmp.eq.s32.totalorder %s27, 1
      %p44 = por %p42, %p43
      %p45 = scmp.ne.s32.totalorder %s37, %s40
      %p46 = scmp.eq.s32.totalorder %s27, 0
      %p47 = por %p45, %p46
      %p48 = scmp.ne.s32.totalorder %s37, %s40
      %p49 = scmp.eq.s32.totalorder %s32, 1
      %p50 = por %p48, %p49
      %p51 = scmp.ne.s32.totalorder %s40, %s41
      %p52 = scmp.eq.s32.totalorder %s32, 0
      %p53 = por %p51, %p52
      %p54 = scmp.ne.s32.totalorder %s40, %s41
      %p55 = scmp.eq.s32.totalorder %s33, 1
      %p56 = por %p54, %p55
      %p58 = scmp.ne.s32.totalorder %s41, %s57
      %p59 = scmp.eq.s32.totalorder %s33, 0
      %p60 = por %p58, %p59
      %s61 = ssub.s32 %s27, %s34
      %p62 = scmp.eq.s32.totalorder %s61, 0
      %s64 = sadd.s32 %s63, 1
      %s65 = scalar_select %p62, %s63, %s64
      %p68 = pneg %p62
      %p69 = scmp.eq.s32.totalorder %s27, 1
      %p70 = por %p68, %p69
      %p71 = scmp.ne.s32.totalorder %s63, %s66
      %p72 = scmp.eq.s32.totalorder %s27, 0
      %p73 = por %p71, %p72
      %p74 = scmp.ne.s32.totalorder %s63, %s66
      %p75 = scmp.eq.s32.totalorder %s32, 1
      %p76 = por %p74, %p75
      %p77 = scmp.ne.s32.totalorder %s66, %s67
      %p78 = scmp.eq.s32.totalorder %s32, 0
      %p79 = por %p77, %p78
      %p80 = scmp.ne.s32.totalorder %s66, %s67
      %p81 = scmp.eq.s32.totalorder %s33, 1
      %p82 = por %p80, %p81
      %p84 = scmp.ne.s32.totalorder %s67, %s83
      %p85 = scmp.eq.s32.totalorder %s33, 0
      %p86 = por %p84, %p85
      %s88 = sadd.s32 %s87, 1
      %p91 = scmp.eq.s32.totalorder %s27, 1
      %p92 = scmp.ne.s32.totalorder %s87, %s89
      %p93 = scmp.eq.s32.totalorder %s27, 0
      %p94 = por %p92, %p93
      %p95 = scmp.ne.s32.totalorder %s87, %s89
      %p96 = scmp.eq.s32.totalorder %s32, 1
      %p97 = por %p95, %p96
      %p98 = scmp.ne.s32.totalorder %s89, %s90
      %p99 = scmp.eq.s32.totalorder %s32, 0
      %p100 = por %p98, %p99
      %p101 = scmp.ne.s32.totalorder %s89, %s90
      %p102 = scmp.eq.s32.totalorder %s33, 1
      %p103 = por %p101, %p102
      %p105 = scmp.ne.s32.totalorder %s90, %s104
      %p106 = scmp.eq.s32.totalorder %s33, 0
      %p107 = por %p105, %p106
      %s109 = sadd.s32 %s108, 1
      %p112 = scmp.eq.s32.totalorder %s27, 1
      %p113 = scmp.ne.s32.totalorder %s108, %s110
      %p114 = scmp.eq.s32.totalorder %s27, 0
      %p115 = por %p113, %p114
      %p116 = scmp.ne.s32.totalorder %s108, %s110
      %p117 = scmp.eq.s32.totalorder %s32, 1
      %p118 = por %p116, %p117
      %p119 = scmp.ne.s32.totalorder %s110, %s111
      %p120 = scmp.eq.s32.totalorder %s32, 0
      %p121 = por %p119, %p120
      %p122 = scmp.ne.s32.totalorder %s110, %s111
      %p123 = scmp.eq.s32.totalorder %s33, 1
      %p124 = por %p122, %p123
      %p126 = scmp.ne.s32.totalorder %s111, %s125
      %p127 = scmp.eq.s32.totalorder %s33, 0
      %p128 = por %p126, %p127
      %s130 = sadd.s32 %s129, 1
      %p133 = scmp.eq.s32.totalorder %s27, 1
      %p134 = scmp.ne.s32.totalorder %s129, %s131
      %p135 = scmp.eq.s32.totalorder %s27, 0
      %p136 = por %p134, %p135
      %p137 = scmp.ne.s32.totalorder %s129, %s131
      %p138 = scmp.eq.s32.totalorder %s32, 1
      %p139 = por %p137, %p138
      %p140 = scmp.ne.s32.totalorder %s131, %s132
      %p141 = scmp.eq.s32.totalorder %s32, 0
      %p142 = por %p140, %p141
      %p143 = scmp.ne.s32.totalorder %s131, %s132
      %p144 = scmp.eq.s32.totalorder %s33, 1
      %p145 = por %p143, %p144
      %p147 = scmp.ne.s32.totalorder %s132, %s146
      %p148 = scmp.eq.s32.totalorder %s33, 0
      %p149 = por %p147, %p148
      %s151 = sadd.s32 %s150, 1
      %p154 = scmp.eq.s32.totalorder %s27, 1
      %p155 = scmp.ne.s32.totalorder %s150, %s152
      %p156 = scmp.eq.s32.totalorder %s27, 0
      %p157 = por %p155, %p156
      %p158 = scmp.ne.s32.totalorder %s150, %s152
      %p159 = scmp.eq.s32.totalorder %s32, 1
      %p160 = por %p158, %p159
      %p161 = scmp.ne.s32.totalorder %s152, %s153
      %p162 = scmp.eq.s32.totalorder %s32, 0
      %p163 = por %p161, %p162
      %p164 = scmp.ne.s32.totalorder %s152, %s153
      %p165 = scmp.eq.s32.totalorder %s33, 1
      %p166 = por %p164, %p165
      %p168 = scmp.ne.s32.totalorder %s153, %s167
      %p169 = scmp.eq.s32.totalorder %s33, 0
      %p170 = por %p168, %p169
      %s172 = sadd.s32 %s171, 1
      %p175 = scmp.eq.s32.totalorder %s27, 1
      %p176 = scmp.ne.s32.totalorder %s171, %s173
      %p177 = scmp.eq.s32.totalorder %s27, 0
      %p178 = por %p176, %p177
      %p179 = scmp.ne.s32.totalorder %s171, %s173
      %p180 = scmp.eq.s32.totalorder %s32, 1
      %p181 = por %p179, %p180
      %p182 = scmp.ne.s32.totalorder %s173, %s174
      %p183 = scmp.eq.s32.totalorder %s32, 0
      %p184 = por %p182, %p183
      %p185 = scmp.ne.s32.totalorder %s173, %s174
      %p186 = scmp.eq.s32.totalorder %s33, 1
      %p187 = por %p185, %p186
      %p189 = scmp.ne.s32.totalorder %s174, %s188
      %p190 = scmp.eq.s32.totalorder %s33, 0
      %p191 = por %p189, %p190
      %s193 = sadd.s32 %s192, 1
      %p196 = scmp.eq.s32.totalorder %s27, 1
      %p197 = scmp.ne.s32.totalorder %s192, %s194
      %p198 = scmp.eq.s32.totalorder %s27, 0
      %p199 = por %p197, %p198
      %p200 = scmp.ne.s32.totalorder %s192, %s194
      %p201 = scmp.eq.s32.totalorder %s32, 1
      %p202 = por %p200, %p201
      %p203 = scmp.ne.s32.totalorder %s194, %s195
      %p204 = scmp.eq.s32.totalorder %s32, 0
      %p205 = por %p203, %p204
      %p206 = scmp.ne.s32.totalorder %s194, %s195
      %p207 = scmp.eq.s32.totalorder %s33, 1
      %p208 = por %p206, %p207
      %p210 = scmp.ne.s32.totalorder %s195, %s209
      %p211 = scmp.eq.s32.totalorder %s33, 0
      %p212 = por %p210, %p211
      %s213 = ssub.s32 %s27, %s34
      %p214 = scmp.eq.s32.totalorder %s213, 0
      %s216 = sadd.s32 %s215, 1
      %s217 = scalar_select %p214, %s215, %s216
      %p220 = pneg %p214
      %p221 = scmp.eq.s32.totalorder %s27, 1
      %p222 = por %p220, %p221
      %p223 = scmp.ne.s32.totalorder %s215, %s218
      %p224 = scmp.eq.s32.totalorder %s27, 0
      %p225 = por %p223, %p224
      %p226 = scmp.ne.s32.totalorder %s215, %s218
      %p227 = scmp.eq.s32.totalorder %s32, 1
      %p228 = por %p226, %p227
      %p229 = scmp.ne.s32.totalorder %s218, %s219
      %p230 = scmp.eq.s32.totalorder %s32, 0
      %p231 = por %p229, %p230
      %p232 = scmp.ne.s32.totalorder %s218, %s219
      %p233 = scmp.eq.s32.totalorder %s33, 1
      %p234 = por %p232, %p233
      %p236 = scmp.ne.s32.totalorder %s219, %s235
      %p237 = scmp.eq.s32.totalorder %s33, 0
      %p238 = por %p236, %p237
      %p239 = scmp.le.s32.totalorder 1, %s27
      %p240 = scmp.lt.s32.totalorder %s27, 3
      %p241 = pnand %p239, %p240
      %p242 = pneg %p241
      // Predicated region
      $region9: #{tpu_custom_call.1} parent=5 // pred_check
        _
      $region10: #{tpu_custom_call.1} parent=5 // pred_check_branch
        %244 = sbr.rel (%p241) target = $region12
      $region11: #{tpu_custom_call.1} parent=5 // pred_region
        %s245 = ssub.s32 %s27, 1
        // Predicated region
        $region13: #{tpu_custom_call.1} parent=11 // pred_check
          %p246 = pneg %p100
        $region14: #{tpu_custom_call.1} parent=11 // pred_check_branch
          %248 = sbr.rel (%p246) target = $region16
        $region15: #{tpu_custom_call.1} parent=11 // pred_region
          %s250 = ssub.s32 1024, 1024
          %251 = vsyncadd [#allocation7], %s250
          %s252 = sshll.u32 [#allocation8], 4
          %s253 = int_to_ptr.vmem [resolvable:$true] %s252
          %258 = dma.hbm_to_vmem [thread:$0]  %s2, 1024, %s253, [#allocation7], 128, 128, 8
        $region16: #{tpu_custom_call.1} parent=11 // pred_fallthru
          _
        // Predicated region
        $region17: #{tpu_custom_call.1} parent=11 // pred_check
          %p259 = pneg %p121
        $region18: #{tpu_custom_call.1} parent=11 // pred_check_branch
          %261 = sbr.rel (%p259) target = $region20
        $region19: #{tpu_custom_call.1} parent=11 // pred_region
          %s263 = ssub.s32 512, 512
          %264 = vsyncadd [#allocation10], %s263
          %s265 = sshll.u32 [#allocation9], 4
          %s266 = int_to_ptr.vmem [resolvable:$true] %s265
          %271 = dma.hbm_to_vmem [thread:$0]  %s3, 512, %s266, [#allocation10], 128, 128, 8
        $region20: #{tpu_custom_call.1} parent=11 // pred_fallthru
          _
        // Predicated region
        $region21: #{tpu_custom_call.1} parent=11 // pred_check
          %p272 = pneg %p142
        $region22: #{tpu_custom_call.1} parent=11 // pred_check_branch
          %274 = sbr.rel (%p272) target = $region24
        $region23: #{tpu_custom_call.1} parent=11 // pred_region
          %s276 = ssub.s32 128, 128
          %277 = vsyncadd [#allocation5], %s276
          %280 = dma.hbm_to_smem %s4, 128, [#allocation11], [#allocation5]
        $region24: #{tpu_custom_call.1} parent=11 // pred_fallthru
          _
        // Predicated region
        $region25: #{tpu_custom_call.1} parent=11 // pred_check
          %p281 = pneg %p163
        $region26: #{tpu_custom_call.1} parent=11 // pred_check_branch
          %283 = sbr.rel (%p281) target = $region28
        $region27: #{tpu_custom_call.1} parent=11 // pred_region
          %s285 = ssub.s32 16, 16
          %286 = vsyncadd [#allocation13], %s285
          %289 = dma.hbm_to_smem %s5, 16, [#allocation12], [#allocation13]
        $region28: #{tpu_custom_call.1} parent=11 // pred_fallthru
          _
        // Predicated region
        $region29: #{tpu_custom_call.1} parent=11 // pred_check
          %p290 = pneg %p184
        $region30: #{tpu_custom_call.1} parent=11 // pred_check_branch
          %292 = sbr.rel (%p290) target = $region32
        $region31: #{tpu_custom_call.1} parent=11 // pred_region
          %s294 = ssub.s32 64, 64
          %295 = vsyncadd [#allocation13], %s294
          %298 = dma.hbm_to_smem %s6, 64, [#allocation14], [#allocation13]
        $region32: #{tpu_custom_call.1} parent=11 // pred_fallthru
          _
        // Predicated region
        $region33: #{tpu_custom_call.1} parent=11 // pred_check
          %p299 = pneg %p205
        $region34: #{tpu_custom_call.1} parent=11 // pred_check_branch
          %301 = sbr.rel (%p299) target = $region36
        $region35: #{tpu_custom_call.1} parent=11 // pred_region
          %s303 = ssub.s32 16, 16
          %304 = vsyncadd [#allocation16], %s303
          %307 = dma.hbm_to_smem %s7, 16, [#allocation15], [#allocation16]
        $region36: #{tpu_custom_call.1} parent=11 // pred_fallthru
          _
      $region12: #{tpu_custom_call.1} parent=5 // pred_fallthru
        _
      %p308 = scmp.lt.s32.totalorder %s27, 2
      // Predicated region
      $region37: #{tpu_custom_call.1} parent=5 // pred_check
        %p309 = pneg %p308
      $region38: #{tpu_custom_call.1} parent=5 // pred_check_branch
        %311 = sbr.rel (%p309) target = $region40
      $region39: #{tpu_custom_call.1} parent=5 // pred_region
        // Predicated region
        $region41: #{tpu_custom_call.1} parent=39 // pred_check
          %p312 = pneg %p47
        $region42: #{tpu_custom_call.1} parent=39 // pred_check_branch
          %314 = sbr.rel (%p312) target = $region44
        $region43: #{tpu_custom_call.1} parent=39 // pred_region
          %s315 = sand.u32 %s37, 1
          %s316 = scalar_lea.sflag [#allocation3], %s315
          %s317 = sand.u32 %s37, 1
          %s318 = smul.addr %s317, 8
          %s319 = scalar_lea.vmem [#allocation2], %s318
          %s321 = ssub.s32 128, 128
          %322 = vsyncadd %s316, %s321
          %s323 = smul.addr %s27, 128
          %s324 = scalar_lea.hbm %s0, %s323
          %s326 = sshll.u32 %s319, 4
          %s327 = int_to_ptr.vmem [resolvable:$true] %s326
          %329 = dma.hbm_to_vmem [thread:$0]  %s324, 128, %s327, %s316
        $region44: #{tpu_custom_call.1} parent=39 // pred_fallthru
          _
        // Predicated region
        $region45: #{tpu_custom_call.1} parent=39 // pred_check
          %p330 = pneg %p73
        $region46: #{tpu_custom_call.1} parent=39 // pred_check_branch
          %332 = sbr.rel (%p330) target = $region48
        $region47: #{tpu_custom_call.1} parent=39 // pred_region
          %s333 = sand.u32 %s27, 1
          %s334 = scalar_lea.sflag [#allocation7], %s333
          %s335 = sand.u32 %s63, 1
          %s336 = smul.addr %s335, 32
          %s337 = scalar_lea.vmem [#allocation6], %s336
          %s339 = ssub.s32 512, 512
          %340 = vsyncadd %s334, %s339
          %s341 = smul.addr %s27, 128
          %s342 = scalar_lea.hbm %s1, %s341
          %s343 = sshll.u32 %s337, 4
          %s344 = int_to_ptr.vmem [resolvable:$true] %s343
          %349 = dma.hbm_to_vmem [thread:$0]  %s342, 512, %s344, %s334, 256, 128, 8
        $region48: #{tpu_custom_call.1} parent=39 // pred_fallthru
          _
      $region40: #{tpu_custom_call.1} parent=5 // pred_fallthru
        _
      %p350 = scmp.le.s32.totalorder 1, %s27
      %p351 = scmp.lt.s32.totalorder %s27, 3
      %p352 = pnand %p350, %p351
      %p353 = pneg %p352
      // Predicated region
      $region49: #{tpu_custom_call.1} parent=5 // pred_check
        _
      $region50: #{tpu_custom_call.1} parent=5 // pred_check_branch
        %355 = sbr.rel (%p352) target = $region52
      $region51: #{tpu_custom_call.1} parent=5 // pred_region
        %s356 = ssub.s32 %s27, 1
        %s357 = sand.u32 %s40, 1
        %s358 = scalar_lea.sflag [#allocation3], %s357
        %s359 = sand.u32 %s40, 1
        %s360 = smul.addr %s359, 8
        %s361 = scalar_lea.vmem [#allocation2], %s360
        // Predicated region
        $region53: #{tpu_custom_call.1} parent=51 // pred_check
          %p362 = pneg %p53
        $region54: #{tpu_custom_call.1} parent=51 // pred_check_branch
          %364 = sbr.rel (%p362) target = $region56
        $region55: #{tpu_custom_call.1} parent=51 // pred_region
          %365 = dma.done %s358, 128
        $region56: #{tpu_custom_call.1} parent=51 // pred_fallthru
          _
        %s366 = sand.u32 %s32, 1
        %s367 = scalar_lea.sflag [#allocation7], %s366
        %s368 = sand.u32 %s66, 1
        %s369 = smul.addr %s368, 32
        %s370 = scalar_lea.vmem [#allocation6], %s369
        // Predicated region
        $region57: #{tpu_custom_call.1} parent=51 // pred_check
          %p371 = pneg %p79
        $region58: #{tpu_custom_call.1} parent=51 // pred_check_branch
          %373 = sbr.rel (%p371) target = $region60
        $region59: #{tpu_custom_call.1} parent=51 // pred_region
          %374 = dma.done %s367, 512
        $region60: #{tpu_custom_call.1} parent=51 // pred_fallthru
          _
        // Predicated region
        $region61: #{tpu_custom_call.1} parent=51 // pred_check
          %p375 = pneg %p100
        $region62: #{tpu_custom_call.1} parent=51 // pred_check_branch
          %377 = sbr.rel (%p375) target = $region64
        $region63: #{tpu_custom_call.1} parent=51 // pred_region
          %378 = dma.done [#allocation7], 1024
        $region64: #{tpu_custom_call.1} parent=51 // pred_fallthru
          _
        // Predicated region
        $region65: #{tpu_custom_call.1} parent=51 // pred_check
          %p379 = pneg %p121
        $region66: #{tpu_custom_call.1} parent=51 // pred_check_branch
          %381 = sbr.rel (%p379) target = $region68
        $region67: #{tpu_custom_call.1} parent=51 // pred_region
          %382 = dma.done [#allocation10], 512
        $region68: #{tpu_custom_call.1} parent=51 // pred_fallthru
          _
        // Predicated region
        $region69: #{tpu_custom_call.1} parent=51 // pred_check
          %p383 = pneg %p142
        $region70: #{tpu_custom_call.1} parent=51 // pred_check_branch
          %385 = sbr.rel (%p383) target = $region72
        $region71: #{tpu_custom_call.1} parent=51 // pred_region
          %386 = dma.done [#allocation5], 128
        $region72: #{tpu_custom_call.1} parent=51 // pred_fallthru
          _
        // Predicated region
        $region73: #{tpu_custom_call.1} parent=51 // pred_check
          %p387 = pneg %p163
        $region74: #{tpu_custom_call.1} parent=51 // pred_check_branch
          %389 = sbr.rel (%p387) target = $region76
        $region75: #{tpu_custom_call.1} parent=51 // pred_region
          %390 = dma.done [#allocation13], 16
        $region76: #{tpu_custom_call.1} parent=51 // pred_fallthru
          _
        // Predicated region
        $region77: #{tpu_custom_call.1} parent=51 // pred_check
          %p391 = pneg %p184
        $region78: #{tpu_custom_call.1} parent=51 // pred_check_branch
          %393 = sbr.rel (%p391) target = $region80
        $region79: #{tpu_custom_call.1} parent=51 // pred_region
          %394 = dma.done [#allocation13], 64
        $region80: #{tpu_custom_call.1} parent=51 // pred_fallthru
          _
        // Predicated region
        $region81: #{tpu_custom_call.1} parent=51 // pred_check
          %p395 = pneg %p205
        $region82: #{tpu_custom_call.1} parent=51 // pred_check_branch
          %397 = sbr.rel (%p395) target = $region84
        $region83: #{tpu_custom_call.1} parent=51 // pred_region
          %398 = dma.done [#allocation16], 16
        $region84: #{tpu_custom_call.1} parent=51 // pred_fallthru
          _
        %399 = sfence
        %s400 = sand.u32 %s40, 1
        %s401 = scalar_lea.sflag [#allocation3], %s400
        %s402 = sand.u32 %s40, 1
        %s403 = smul.addr %s402, 8
        %s404 = scalar_lea.vmem [#allocation2], %s403
        %p405 = pneg %p53
        %p406 = pneg %p50
        %s407 = sand.u32 %s32, 1
        %s408 = scalar_lea.sflag [#allocation7], %s407
        %s409 = sand.u32 %s66, 1
        %s410 = smul.addr %s409, 32
        %s411 = scalar_lea.vmem [#allocation6], %s410
        %p412 = pneg %p79
        %p413 = pneg %p76
        %p414 = pneg %p100
        %p415 = pneg %p97
        %p416 = pneg %p121
        %p417 = pneg %p118
        %p418 = pneg %p142
        %p419 = pneg %p139
        %p420 = pneg %p163
        %p421 = pneg %p160
        %p422 = pneg %p184
        %p423 = pneg %p181
        %p424 = pneg %p205
        %p425 = pneg %p202
        %p426 = pneg %p231
        %p427 = pneg %p228
        %s428 = sand.u32 %s218, 1
        %s429 = scalar_lea.sflag [#allocation4], %s428
        %s430 = sand.u32 %s218, 1
        %s431 = smul.addr %s430, 8
        %s432 = scalar_lea.vmem [#allocation17], %s431
        %v433 = vld [vmem:[#allocation8] sm:$0xff]
        %v434 = vld [vmem:[#allocation8 + $0x8] sm:$0xff]
        %v435 = vld [vmem:[#allocation8 + $0x10] sm:$0xff]
        %v436 = vld [vmem:[#allocation8 + $0x18] sm:$0xff]
        %v437 = vld [vmem:[#allocation8 + $0x20] sm:$0xff]
        %v438 = vld [vmem:[#allocation8 + $0x28] sm:$0xff]
        %v439 = vld [vmem:[#allocation8 + $0x30] sm:$0xff]
        %v440 = vld [vmem:[#allocation8 + $0x38] sm:$0xff]
        %v441 = vld [vmem:[#allocation9] sm:$0xff]
        %v442 = vld [vmem:[#allocation9 + $0x8] sm:$0xff]
        %v443 = vld [vmem:[#allocation9 + $0x10] sm:$0xff]
        %v444 = vld [vmem:[#allocation9 + $0x18] sm:$0xff]
        %v445 = vld [vmem:[%s361] sm:$0xff]
        %vm446 = vcmask 130048
        %v448 = vsel %vm446, %v445, 0
        %450 = vmatprep.subr.mxu0 0.0
        %451 = vmatpush1.msra.mxu0 %v433
        %452 = vmatprep.subr.mxu0 0.0
        %453 = vmatpush1.msra.mxu0 %v434
        %454 = vmatprep.subr.mxu0 0.0
        %455 = vmatpush1.msra.mxu0 0.0
        %456 = vmatprep.subr.mxu0 0.0
        %457 = vmatpush1.msra.mxu0 0.0
        %458 = vmatprep.subr.mxu0 0.0
        %459 = vmatpush1.msra.mxu0 0.0
        %460 = vmatprep.subr.mxu0 0.0
        %461 = vmatpush1.msra.mxu0 0.0
        %462 = vmatprep.subr.mxu0 0.0
        %463 = vmatpush1.msra.mxu0 0.0
        %464 = vmatprep.subr.mxu0 0.0
        %465 = vmatpush1.msra.mxu0 0.0
        %466 = vmatprep.subr.mxu0 0.0
        %467 = vmatpush1.msra.mxu0 0.0
        %468 = vmatprep.subr.mxu0 0.0
        %469 = vmatpush1.msra.mxu0 0.0
        %470 = vmatprep.subr.mxu0 0.0
        %471 = vmatpush1.msra.mxu0 0.0
        %472 = vmatprep.subr.mxu0 0.0
        %473 = vmatpush1.msra.mxu0 0.0
        %474 = vmatprep.subr.mxu0 0.0
        %475 = vmatpush1.msra.mxu0 0.0
        %476 = vmatprep.subr.mxu0 0.0
        %477 = vmatpush1.msra.mxu0 0.0
        %478 = vmatprep.subr.mxu0 0.0
        %479 = vmatpush1.msra.mxu0 0.0
        %480 = vmatprep.subr.mxu0 0.0
        %481 = vmatpush1.msra.mxu0 0.0
        %482 = vmatprep.subr.mxu0 0.0
        %483 = vmatpush1.msra.mxu0 0.0
        %484 = vmatprep.subr.mxu0 0.0
        %485 = vmatpush1.msra.mxu0 0.0
        %486 = vmatprep.subr.mxu0 0.0
        %487 = vmatpush1.msra.mxu0 0.0
        %488 = vmatprep.subr.mxu0 0.0
        %489 = vmatpush1.msra.mxu0 0.0
        %490 = vmatprep.subr.mxu0 0.0
        %491 = vmatpush1.msra.mxu0 0.0
        %492 = vmatprep.subr.mxu0 0.0
        %493 = vmatpush1.msra.mxu0 0.0
        %494 = vmatprep.subr.mxu0 0.0
        %495 = vmatpush1.msra.mxu0 0.0
        %496 = vmatprep.subr.mxu0 0.0
        %497 = vmatpush1.msra.mxu0 0.0
        %498 = vmatprep.subr.mxu0 0.0
        %499 = vmatpush1.msra.mxu0 0.0
        %500 = vmatprep.subr.mxu0 0.0
        %501 = vmatpush1.msra.mxu0 0.0
        %502 = vmatprep.subr.mxu0 0.0
        %503 = vmatpush1.msra.mxu0 0.0
        %504 = vmatprep.subr.mxu0 0.0
        %505 = vmatpush1.msra.mxu0 0.0
        %506 = vmatprep.subr.mxu0 0.0
        %507 = vmatpush1.msra.mxu0 0.0
        %508 = vmatprep.subr.mxu0 0.0
        %509 = vmatpush1.msra.mxu0 0.0
        %510 = vmatprep.subr.mxu0 0.0
        %511 = vmatpush1.msra.mxu0 0.0
        %512 = vmatprep.subr.mxu0 0.0
        %513 = vmatpush1.msra.mxu0 0.0
        %514 = vmatprep.mubr.f32.mxu0 0.0
        %515 = vmatmul.mubr.f32.gmra.mrb[0].mxu0 %v448
        %v516 = vpop.f32.mrb[0].mxu0
        %v517 = vadd.f32 0.0, %v516
        %v518 = vpop.f32.mrb[0].mxu0
        %519 = vdwg.mxu0
        %520 = vmatprep.subr.mxu0 0.0
        %521 = vmatpush1.msra.mxu0 %v435
        %522 = vmatprep.subr.mxu0 0.0
        %523 = vmatpush1.msra.mxu0 %v436
        %524 = vmatprep.subr.mxu0 0.0
        %525 = vmatpush1.msra.mxu0 0.0
        %526 = vmatprep.subr.mxu0 0.0
        %527 = vmatpush1.msra.mxu0 0.0
        %528 = vmatprep.subr.mxu0 0.0
        %529 = vmatpush1.msra.mxu0 0.0
        %530 = vmatprep.subr.mxu0 0.0
        %531 = vmatpush1.msra.mxu0 0.0
        %532 = vmatprep.subr.mxu0 0.0
        %533 = vmatpush1.msra.mxu0 0.0
        %534 = vmatprep.subr.mxu0 0.0
        %535 = vmatpush1.msra.mxu0 0.0
        %536 = vmatprep.subr.mxu0 0.0
        %537 = vmatpush1.msra.mxu0 0.0
        %538 = vmatprep.subr.mxu0 0.0
        %539 = vmatpush1.msra.mxu0 0.0
        %540 = vmatprep.subr.mxu0 0.0
        %541 = vmatpush1.msra.mxu0 0.0
        %542 = vmatprep.subr.mxu0 0.0
        %543 = vmatpush1.msra.mxu0 0.0
        %544 = vmatprep.subr.mxu0 0.0
        %545 = vmatpush1.msra.mxu0 0.0
        %546 = vmatprep.subr.mxu0 0.0
        %547 = vmatpush1.msra.mxu0 0.0
        %548 = vmatprep.subr.mxu0 0.0
        %549 = vmatpush1.msra.mxu0 0.0
        %550 = vmatprep.subr.mxu0 0.0
        %551 = vmatpush1.msra.mxu0 0.0
        %552 = vmatprep.subr.mxu0 0.0
        %553 = vmatpush1.msra.mxu0 0.0
        %554 = vmatprep.subr.mxu0 0.0
        %555 = vmatpush1.msra.mxu0 0.0
        %556 = vmatprep.subr.mxu0 0.0
        %557 = vmatpush1.msra.mxu0 0.0
        %558 = vmatprep.subr.mxu0 0.0
        %559 = vmatpush1.msra.mxu0 0.0
        %560 = vmatprep.subr.mxu0 0.0
        %561 = vmatpush1.msra.mxu0 0.0
        %562 = vmatprep.subr.mxu0 0.0
        %563 = vmatpush1.msra.mxu0 0.0
        %564 = vmatprep.subr.mxu0 0.0
        %565 = vmatpush1.msra.mxu0 0.0
        %566 = vmatprep.subr.mxu0 0.0
        %567 = vmatpush1.msra.mxu0 0.0
        %568 = vmatprep.subr.mxu0 0.0
        %569 = vmatpush1.msra.mxu0 0.0
        %570 = vmatprep.subr.mxu0 0.0
        %571 = vmatpush1.msra.mxu0 0.0
        %572 = vmatprep.subr.mxu0 0.0
        %573 = vmatpush1.msra.mxu0 0.0
        %574 = vmatprep.subr.mxu0 0.0
        %575 = vmatpush1.msra.mxu0 0.0
        %576 = vmatprep.subr.mxu0 0.0
        %577 = vmatpush1.msra.mxu0 0.0
        %578 = vmatprep.subr.mxu0 0.0
        %579 = vmatpush1.msra.mxu0 0.0
        %580 = vmatprep.subr.mxu0 0.0
        %581 = vmatpush1.msra.mxu0 0.0
        %582 = vmatprep.subr.mxu0 0.0
        %583 = vmatpush1.msra.mxu0 0.0
        %584 = vmatprep.mubr.f32.mxu0 0.0
        %585 = vmatmul.mubr.f32.gmra.mrb[0].mxu0 %v448
        %v586 = vpop.f32.mrb[0].mxu0
        %v587 = vadd.f32 0.0, %v586
        %v588 = vpop.f32.mrb[0].mxu0
        %589 = vdwg.mxu0
        %590 = vmatprep.subr.mxu0 0.0
        %591 = vmatpush1.msra.mxu0 %v437
        %592 = vmatprep.subr.mxu0 0.0
        %593 = vmatpush1.msra.mxu0 %v438
        %594 = vmatprep.subr.mxu0 0.0
        %595 = vmatpush1.msra.mxu0 0.0
        %596 = vmatprep.subr.mxu0 0.0
        %597 = vmatpush1.msra.mxu0 0.0
        %598 = vmatprep.subr.mxu0 0.0
        %599 = vmatpush1.msra.mxu0 0.0
        %600 = vmatprep.subr.mxu0 0.0
        %601 = vmatpush1.msra.mxu0 0.0
        %602 = vmatprep.subr.mxu0 0.0
        %603 = vmatpush1.msra.mxu0 0.0
        %604 = vmatprep.subr.mxu0 0.0
        %605 = vmatpush1.msra.mxu0 0.0
        %606 = vmatprep.subr.mxu0 0.0
        %607 = vmatpush1.msra.mxu0 0.0
        %608 = vmatprep.subr.mxu0 0.0
        %609 = vmatpush1.msra.mxu0 0.0
        %610 = vmatprep.subr.mxu0 0.0
        %611 = vmatpush1.msra.mxu0 0.0
        %612 = vmatprep.subr.mxu0 0.0
        %613 = vmatpush1.msra.mxu0 0.0
        %614 = vmatprep.subr.mxu0 0.0
        %615 = vmatpush1.msra.mxu0 0.0
        %616 = vmatprep.subr.mxu0 0.0
        %617 = vmatpush1.msra.mxu0 0.0
        %618 = vmatprep.subr.mxu0 0.0
        %619 = vmatpush1.msra.mxu0 0.0
        %620 = vmatprep.subr.mxu0 0.0
        %621 = vmatpush1.msra.mxu0 0.0
        %622 = vmatprep.subr.mxu0 0.0
        %623 = vmatpush1.msra.mxu0 0.0
        %624 = vmatprep.subr.mxu0 0.0
        %625 = vmatpush1.msra.mxu0 0.0
        %626 = vmatprep.subr.mxu0 0.0
        %627 = vmatpush1.msra.mxu0 0.0
        %628 = vmatprep.subr.mxu0 0.0
        %629 = vmatpush1.msra.mxu0 0.0
        %630 = vmatprep.subr.mxu0 0.0
        %631 = vmatpush1.msra.mxu0 0.0
        %632 = vmatprep.subr.mxu0 0.0
        %633 = vmatpush1.msra.mxu0 0.0
        %634 = vmatprep.subr.mxu0 0.0
        %635 = vmatpush1.msra.mxu0 0.0
        %636 = vmatprep.subr.mxu0 0.0
        %637 = vmatpush1.msra.mxu0 0.0
        %638 = vmatprep.subr.mxu0 0.0
        %639 = vmatpush1.msra.mxu0 0.0
        %640 = vmatprep.subr.mxu0 0.0
        %641 = vmatpush1.msra.mxu0 0.0
        %642 = vmatprep.subr.mxu0 0.0
        %643 = vmatpush1.msra.mxu0 0.0
        %644 = vmatprep.subr.mxu0 0.0
        %645 = vmatpush1.msra.mxu0 0.0
        %646 = vmatprep.subr.mxu0 0.0
        %647 = vmatpush1.msra.mxu0 0.0
        %648 = vmatprep.subr.mxu0 0.0
        %649 = vmatpush1.msra.mxu0 0.0
        %650 = vmatprep.subr.mxu0 0.0
        %651 = vmatpush1.msra.mxu0 0.0
        %652 = vmatprep.subr.mxu0 0.0
        %653 = vmatpush1.msra.mxu0 0.0
        %654 = vmatprep.mubr.f32.mxu0 0.0
        %655 = vmatmul.mubr.f32.gmra.mrb[0].mxu0 %v448
        %v656 = vpop.f32.mrb[0].mxu0
        %v657 = vadd.f32 0.0, %v656
        %v658 = vpop.f32.mrb[0].mxu0
        %659 = vdwg.mxu0
        %660 = vmatprep.subr.mxu0 0.0
        %661 = vmatpush1.msra.mxu0 %v439
        %662 = vmatprep.subr.mxu0 0.0
        %663 = vmatpush1.msra.mxu0 %v440
        %664 = vmatprep.subr.mxu0 0.0
        %665 = vmatpush1.msra.mxu0 0.0
        %666 = vmatprep.subr.mxu0 0.0
        %667 = vmatpush1.msra.mxu0 0.0
        %668 = vmatprep.subr.mxu0 0.0
        %669 = vmatpush1.msra.mxu0 0.0
        %670 = vmatprep.subr.mxu0 0.0
        %671 = vmatpush1.msra.mxu0 0.0
        %672 = vmatprep.subr.mxu0 0.0
        %673 = vmatpush1.msra.mxu0 0.0
        %674 = vmatprep.subr.mxu0 0.0
        %675 = vmatpush1.msra.mxu0 0.0
        %676 = vmatprep.subr.mxu0 0.0
        %677 = vmatpush1.msra.mxu0 0.0
        %678 = vmatprep.subr.mxu0 0.0
        %679 = vmatpush1.msra.mxu0 0.0
        %680 = vmatprep.subr.mxu0 0.0
        %681 = vmatpush1.msra.mxu0 0.0
        %682 = vmatprep.subr.mxu0 0.0
        %683 = vmatpush1.msra.mxu0 0.0
        %684 = vmatprep.subr.mxu0 0.0
        %685 = vmatpush1.msra.mxu0 0.0
        %686 = vmatprep.subr.mxu0 0.0
        %687 = vmatpush1.msra.mxu0 0.0
        %688 = vmatprep.subr.mxu0 0.0
        %689 = vmatpush1.msra.mxu0 0.0
        %690 = vmatprep.subr.mxu0 0.0
        %691 = vmatpush1.msra.mxu0 0.0
        %692 = vmatprep.subr.mxu0 0.0
        %693 = vmatpush1.msra.mxu0 0.0
        %694 = vmatprep.subr.mxu0 0.0
        %695 = vmatpush1.msra.mxu0 0.0
        %696 = vmatprep.subr.mxu0 0.0
        %697 = vmatpush1.msra.mxu0 0.0
        %698 = vmatprep.subr.mxu0 0.0
        %699 = vmatpush1.msra.mxu0 0.0
        %700 = vmatprep.subr.mxu0 0.0
        %701 = vmatpush1.msra.mxu0 0.0
        %702 = vmatprep.subr.mxu0 0.0
        %703 = vmatpush1.msra.mxu0 0.0
        %704 = vmatprep.subr.mxu0 0.0
        %705 = vmatpush1.msra.mxu0 0.0
        %706 = vmatprep.subr.mxu0 0.0
        %707 = vmatpush1.msra.mxu0 0.0
        %708 = vmatprep.subr.mxu0 0.0
        %709 = vmatpush1.msra.mxu0 0.0
        %710 = vmatprep.subr.mxu0 0.0
        %711 = vmatpush1.msra.mxu0 0.0
        %712 = vmatprep.subr.mxu0 0.0
        %713 = vmatpush1.msra.mxu0 0.0
        %714 = vmatprep.subr.mxu0 0.0
        %715 = vmatpush1.msra.mxu0 0.0
        %716 = vmatprep.subr.mxu0 0.0
        %717 = vmatpush1.msra.mxu0 0.0
        %718 = vmatprep.subr.mxu0 0.0
        %719 = vmatpush1.msra.mxu0 0.0
        %720 = vmatprep.subr.mxu0 0.0
        %721 = vmatpush1.msra.mxu0 0.0
        %722 = vmatprep.subr.mxu0 0.0
        %723 = vmatpush1.msra.mxu0 0.0
        %724 = vmatprep.mubr.f32.mxu0 0.0
        %725 = vmatmul.mubr.f32.gmra.mrb[0].mxu0 %v448
        %v726 = vpop.f32.mrb[0].mxu0
        %v727 = vadd.f32 0.0, %v726
        %v728 = vpop.f32.mrb[0].mxu0
        %729 = vdwg.mxu0
        %731 = vrot.lane.b32.xlu0 %v517, 120
        %v732 = vpop.permute.xlu0 %731
        %vm733 = vcmask 64512
        %v734 = vsel %vm733, %v517, 0
        %v736 = vsel %vm733, %v732, 0
        %738 = vmatprep.subr.mxu0 0.0
        %739 = vmatpush1.xpose.msra.mxu0 %v736
        %740 = vmatprep.subr.mxu0 0.0
        %741 = vmatpush1.xpose.msra.mxu0 0.0
        %742 = vmatprep.subr.mxu0 0.0
        %743 = vmatpush1.xpose.msra.mxu0 0.0
        %744 = vmatprep.subr.mxu0 0.0
        %745 = vmatpush1.xpose.msra.mxu0 0.0
        %746 = vmatprep.subr.mxu0 0.0
        %747 = vmatpush1.xpose.msra.mxu0 0.0
        %748 = vmatprep.subr.mxu0 0.0
        %749 = vmatpush1.xpose.msra.mxu0 0.0
        %750 = vmatprep.subr.mxu0 0.0
        %751 = vmatpush1.xpose.msra.mxu0 0.0
        %752 = vmatprep.subr.mxu0 0.0
        %753 = vmatpush1.xpose.msra.mxu0 0.0
        %754 = vmatprep.subr.mxu0 0.0
        %755 = vmatpush1.xpose.msra.mxu0 0.0
        %756 = vmatprep.subr.mxu0 0.0
        %757 = vmatpush1.xpose.msra.mxu0 0.0
        %758 = vmatprep.subr.mxu0 0.0
        %759 = vmatpush1.xpose.msra.mxu0 0.0
        %760 = vmatprep.subr.mxu0 0.0
        %761 = vmatpush1.xpose.msra.mxu0 0.0
        %762 = vmatprep.subr.mxu0 0.0
        %763 = vmatpush1.xpose.msra.mxu0 0.0
        %764 = vmatprep.subr.mxu0 0.0
        %765 = vmatpush1.xpose.msra.mxu0 0.0
        %766 = vmatprep.subr.mxu0 0.0
        %767 = vmatpush1.xpose.msra.mxu0 0.0
        %768 = vmatprep.subr.mxu0 0.0
        %769 = vmatpush1.xpose.msra.mxu0 0.0
        %770 = vmatprep.subr.mxu0 0.0
        %771 = vmatpush1.xpose.msra.mxu0 0.0
        %772 = vmatprep.subr.mxu0 0.0
        %773 = vmatpush1.xpose.msra.mxu0 0.0
        %774 = vmatprep.subr.mxu0 0.0
        %775 = vmatpush1.xpose.msra.mxu0 0.0
        %776 = vmatprep.subr.mxu0 0.0
        %777 = vmatpush1.xpose.msra.mxu0 0.0
        %778 = vmatprep.subr.mxu0 0.0
        %779 = vmatpush1.xpose.msra.mxu0 0.0
        %780 = vmatprep.subr.mxu0 0.0
        %781 = vmatpush1.xpose.msra.mxu0 0.0
        %782 = vmatprep.subr.mxu0 0.0
        %783 = vmatpush1.xpose.msra.mxu0 0.0
        %784 = vmatprep.subr.mxu0 0.0
        %785 = vmatpush1.xpose.msra.mxu0 0.0
        %786 = vmatprep.subr.mxu0 0.0
        %787 = vmatpush1.xpose.msra.mxu0 0.0
        %788 = vmatprep.subr.mxu0 0.0
        %789 = vmatpush1.xpose.msra.mxu0 0.0
        %790 = vmatprep.subr.mxu0 0.0
        %791 = vmatpush1.xpose.msra.mxu0 0.0
        %792 = vmatprep.subr.mxu0 0.0
        %793 = vmatpush1.xpose.msra.mxu0 0.0
        %794 = vmatprep.subr.mxu0 0.0
        %795 = vmatpush1.xpose.msra.mxu0 0.0
        %796 = vmatprep.subr.mxu0 0.0
        %797 = vmatpush1.xpose.msra.mxu0 0.0
        %798 = vmatprep.subr.mxu0 0.0
        %799 = vmatpush1.xpose.msra.mxu0 0.0
        %800 = vmatprep.subr.mxu0 0.0
        %801 = vmatpush1.xpose.msra.mxu0 0.0
        %802 = vmatprep.mubr.f32.mxu0 0.0
        %803 = vmatmul.mubr.f32.gmra.mrb[0].mxu0 %v734
        %v804 = vpop.f32.mrb[0].mxu0
        %v805 = vadd.f32 0.0, %v804
        %v806 = vpop.f32.mrb[0].mxu0
        %807 = vdwg.mxu0
        %809 = vrot.lane.b32.xlu0 %v587, 120
        %v810 = vpop.permute.xlu0 %809
        %v811 = vsel %vm733, %v587, 0
        %v813 = vsel %vm733, %v810, 0
        %815 = vmatprep.subr.mxu0 0.0
        %816 = vmatpush1.xpose.msra.mxu0 %v813
        %817 = vmatprep.subr.mxu0 0.0
        %818 = vmatpush1.xpose.msra.mxu0 0.0
        %819 = vmatprep.subr.mxu0 0.0
        %820 = vmatpush1.xpose.msra.mxu0 0.0
        %821 = vmatprep.subr.mxu0 0.0
        %822 = vmatpush1.xpose.msra.mxu0 0.0
        %823 = vmatprep.subr.mxu0 0.0
        %824 = vmatpush1.xpose.msra.mxu0 0.0
        %825 = vmatprep.subr.mxu0 0.0
        %826 = vmatpush1.xpose.msra.mxu0 0.0
        %827 = vmatprep.subr.mxu0 0.0
        %828 = vmatpush1.xpose.msra.mxu0 0.0
        %829 = vmatprep.subr.mxu0 0.0
        %830 = vmatpush1.xpose.msra.mxu0 0.0
        %831 = vmatprep.subr.mxu0 0.0
        %832 = vmatpush1.xpose.msra.mxu0 0.0
        %833 = vmatprep.subr.mxu0 0.0
        %834 = vmatpush1.xpose.msra.mxu0 0.0
        %835 = vmatprep.subr.mxu0 0.0
        %836 = vmatpush1.xpose.msra.mxu0 0.0
        %837 = vmatprep.subr.mxu0 0.0
        %838 = vmatpush1.xpose.msra.mxu0 0.0
        %839 = vmatprep.subr.mxu0 0.0
        %840 = vmatpush1.xpose.msra.mxu0 0.0
        %841 = vmatprep.subr.mxu0 0.0
        %842 = vmatpush1.xpose.msra.mxu0 0.0
        %843 = vmatprep.subr.mxu0 0.0
        %844 = vmatpush1.xpose.msra.mxu0 0.0
        %845 = vmatprep.subr.mxu0 0.0
        %846 = vmatpush1.xpose.msra.mxu0 0.0
        %847 = vmatprep.subr.mxu0 0.0
        %848 = vmatpush1.xpose.msra.mxu0 0.0
        %849 = vmatprep.subr.mxu0 0.0
        %850 = vmatpush1.xpose.msra.mxu0 0.0
        %851 = vmatprep.subr.mxu0 0.0
        %852 = vmatpush1.xpose.msra.mxu0 0.0
        %853 = vmatprep.subr.mxu0 0.0
        %854 = vmatpush1.xpose.msra.mxu0 0.0
        %855 = vmatprep.subr.mxu0 0.0
        %856 = vmatpush1.xpose.msra.mxu0 0.0
        %857 = vmatprep.subr.mxu0 0.0
        %858 = vmatpush1.xpose.msra.mxu0 0.0
        %859 = vmatprep.subr.mxu0 0.0
        %860 = vmatpush1.xpose.msra.mxu0 0.0
        %861 = vmatprep.subr.mxu0 0.0
        %862 = vmatpush1.xpose.msra.mxu0 0.0
        %863 = vmatprep.subr.mxu0 0.0
        %864 = vmatpush1.xpose.msra.mxu0 0.0
        %865 = vmatprep.subr.mxu0 0.0
        %866 = vmatpush1.xpose.msra.mxu0 0.0
        %867 = vmatprep.subr.mxu0 0.0
        %868 = vmatpush1.xpose.msra.mxu0 0.0
        %869 = vmatprep.subr.mxu0 0.0
        %870 = vmatpush1.xpose.msra.mxu0 0.0
        %871 = vmatprep.subr.mxu0 0.0
        %872 = vmatpush1.xpose.msra.mxu0 0.0
        %873 = vmatprep.subr.mxu0 0.0
        %874 = vmatpush1.xpose.msra.mxu0 0.0
        %875 = vmatprep.subr.mxu0 0.0
        %876 = vmatpush1.xpose.msra.mxu0 0.0
        %877 = vmatprep.subr.mxu0 0.0
        %878 = vmatpush1.xpose.msra.mxu0 0.0
        %879 = vmatprep.mubr.f32.mxu0 0.0
        %880 = vmatmul.mubr.f32.gmra.mrb[0].mxu0 %v811
        %v881 = vpop.f32.mrb[0].mxu0
        %v882 = vadd.f32 0.0, %v881
        %v883 = vpop.f32.mrb[0].mxu0
        %884 = vdwg.mxu0
        %886 = vrot.lane.b32.xlu0 %v657, 120
        %v887 = vpop.permute.xlu0 %886
        %v888 = vsel %vm733, %v657, 0
        %v890 = vsel %vm733, %v887, 0
        %892 = vmatprep.subr.mxu0 0.0
        %893 = vmatpush1.xpose.msra.mxu0 %v890
        %894 = vmatprep.subr.mxu0 0.0
        %895 = vmatpush1.xpose.msra.mxu0 0.0
        %896 = vmatprep.subr.mxu0 0.0
        %897 = vmatpush1.xpose.msra.mxu0 0.0
        %898 = vmatprep.subr.mxu0 0.0
        %899 = vmatpush1.xpose.msra.mxu0 0.0
        %900 = vmatprep.subr.mxu0 0.0
        %901 = vmatpush1.xpose.msra.mxu0 0.0
        %902 = vmatprep.subr.mxu0 0.0
        %903 = vmatpush1.xpose.msra.mxu0 0.0
        %904 = vmatprep.subr.mxu0 0.0
        %905 = vmatpush1.xpose.msra.mxu0 0.0
        %906 = vmatprep.subr.mxu0 0.0
        %907 = vmatpush1.xpose.msra.mxu0 0.0
        %908 = vmatprep.subr.mxu0 0.0
        %909 = vmatpush1.xpose.msra.mxu0 0.0
        %910 = vmatprep.subr.mxu0 0.0
        %911 = vmatpush1.xpose.msra.mxu0 0.0
        %912 = vmatprep.subr.mxu0 0.0
        %913 = vmatpush1.xpose.msra.mxu0 0.0
        %914 = vmatprep.subr.mxu0 0.0
        %915 = vmatpush1.xpose.msra.mxu0 0.0
        %916 = vmatprep.subr.mxu0 0.0
        %917 = vmatpush1.xpose.msra.mxu0 0.0
        %918 = vmatprep.subr.mxu0 0.0
        %919 = vmatpush1.xpose.msra.mxu0 0.0
        %920 = vmatprep.subr.mxu0 0.0
        %921 = vmatpush1.xpose.msra.mxu0 0.0
        %922 = vmatprep.subr.mxu0 0.0
        %923 = vmatpush1.xpose.msra.mxu0 0.0
        %924 = vmatprep.subr.mxu0 0.0
        %925 = vmatpush1.xpose.msra.mxu0 0.0
        %926 = vmatprep.subr.mxu0 0.0
        %927 = vmatpush1.xpose.msra.mxu0 0.0
        %928 = vmatprep.subr.mxu0 0.0
        %929 = vmatpush1.xpose.msra.mxu0 0.0
        %930 = vmatprep.subr.mxu0 0.0
        %931 = vmatpush1.xpose.msra.mxu0 0.0
        %932 = vmatprep.subr.mxu0 0.0
        %933 = vmatpush1.xpose.msra.mxu0 0.0
        %934 = vmatprep.subr.mxu0 0.0
        %935 = vmatpush1.xpose.msra.mxu0 0.0
        %936 = vmatprep.subr.mxu0 0.0
        %937 = vmatpush1.xpose.msra.mxu0 0.0
        %938 = vmatprep.subr.mxu0 0.0
        %939 = vmatpush1.xpose.msra.mxu0 0.0
        %940 = vmatprep.subr.mxu0 0.0
        %941 = vmatpush1.xpose.msra.mxu0 0.0
        %942 = vmatprep.subr.mxu0 0.0
        %943 = vmatpush1.xpose.msra.mxu0 0.0
        %944 = vmatprep.subr.mxu0 0.0
        %945 = vmatpush1.xpose.msra.mxu0 0.0
        %946 = vmatprep.subr.mxu0 0.0
        %947 = vmatpush1.xpose.msra.mxu0 0.0
        %948 = vmatprep.subr.mxu0 0.0
        %949 = vmatpush1.xpose.msra.mxu0 0.0
        %950 = vmatprep.subr.mxu0 0.0
        %951 = vmatpush1.xpose.msra.mxu0 0.0
        %952 = vmatprep.subr.mxu0 0.0
        %953 = vmatpush1.xpose.msra.mxu0 0.0
        %954 = vmatprep.subr.mxu0 0.0
        %955 = vmatpush1.xpose.msra.mxu0 0.0
        %956 = vmatprep.mubr.f32.mxu0 0.0
        %957 = vmatmul.mubr.f32.gmra.mrb[0].mxu0 %v888
        %v958 = vpop.f32.mrb[0].mxu0
        %v959 = vadd.f32 0.0, %v958
        %v960 = vpop.f32.mrb[0].mxu0
        %961 = vdwg.mxu0
        %963 = vrot.lane.b32.xlu0 %v727, 120
        %v964 = vpop.permute.xlu0 %963
        %v965 = vsel %vm733, %v727, 0
        %v967 = vsel %vm733, %v964, 0
        %969 = vmatprep.subr.mxu0 0.0
        %970 = vmatpush1.xpose.msra.mxu0 %v967
        %971 = vmatprep.subr.mxu0 0.0
        %972 = vmatpush1.xpose.msra.mxu0 0.0
        %973 = vmatprep.subr.mxu0 0.0
        %974 = vmatpush1.xpose.msra.mxu0 0.0
        %975 = vmatprep.subr.mxu0 0.0
        %976 = vmatpush1.xpose.msra.mxu0 0.0
        %977 = vmatprep.subr.mxu0 0.0
        %978 = vmatpush1.xpose.msra.mxu0 0.0
        %979 = vmatprep.subr.mxu0 0.0
        %980 = vmatpush1.xpose.msra.mxu0 0.0
        %981 = vmatprep.subr.mxu0 0.0
        %982 = vmatpush1.xpose.msra.mxu0 0.0
        %983 = vmatprep.subr.mxu0 0.0
        %984 = vmatpush1.xpose.msra.mxu0 0.0
        %985 = vmatprep.subr.mxu0 0.0
        %986 = vmatpush1.xpose.msra.mxu0 0.0
        %987 = vmatprep.subr.mxu0 0.0
        %988 = vmatpush1.xpose.msra.mxu0 0.0
        %989 = vmatprep.subr.mxu0 0.0
        %990 = vmatpush1.xpose.msra.mxu0 0.0
        %991 = vmatprep.subr.mxu0 0.0
        %992 = vmatpush1.xpose.msra.mxu0 0.0
        %993 = vmatprep.subr.mxu0 0.0
        %994 = vmatpush1.xpose.msra.mxu0 0.0
        %995 = vmatprep.subr.mxu0 0.0
        %996 = vmatpush1.xpose.msra.mxu0 0.0
        %997 = vmatprep.subr.mxu0 0.0
        %998 = vmatpush1.xpose.msra.mxu0 0.0
        %999 = vmatprep.subr.mxu0 0.0
        %1000 = vmatpush1.xpose.msra.mxu0 0.0
        %1001 = vmatprep.subr.mxu0 0.0
        %1002 = vmatpush1.xpose.msra.mxu0 0.0
        %1003 = vmatprep.subr.mxu0 0.0
        %1004 = vmatpush1.xpose.msra.mxu0 0.0
        %1005 = vmatprep.subr.mxu0 0.0
        %1006 = vmatpush1.xpose.msra.mxu0 0.0
        %1007 = vmatprep.subr.mxu0 0.0
        %1008 = vmatpush1.xpose.msra.mxu0 0.0
        %1009 = vmatprep.subr.mxu0 0.0
        %1010 = vmatpush1.xpose.msra.mxu0 0.0
        %1011 = vmatprep.subr.mxu0 0.0
        %1012 = vmatpush1.xpose.msra.mxu0 0.0
        %1013 = vmatprep.subr.mxu0 0.0
        %1014 = vmatpush1.xpose.msra.mxu0 0.0
        %1015 = vmatprep.subr.mxu0 0.0
        %1016 = vmatpush1.xpose.msra.mxu0 0.0
        %1017 = vmatprep.subr.mxu0 0.0
        %1018 = vmatpush1.xpose.msra.mxu0 0.0
        %1019 = vmatprep.subr.mxu0 0.0
        %1020 = vmatpush1.xpose.msra.mxu0 0.0
        %1021 = vmatprep.subr.mxu0 0.0
        %1022 = vmatpush1.xpose.msra.mxu0 0.0
        %1023 = vmatprep.subr.mxu0 0.0
        %1024 = vmatpush1.xpose.msra.mxu0 0.0
        %1025 = vmatprep.subr.mxu0 0.0
        %1026 = vmatpush1.xpose.msra.mxu0 0.0
        %1027 = vmatprep.subr.mxu0 0.0
        %1028 = vmatpush1.xpose.msra.mxu0 0.0
        %1029 = vmatprep.subr.mxu0 0.0
        %1030 = vmatpush1.xpose.msra.mxu0 0.0
        %1031 = vmatprep.subr.mxu0 0.0
        %1032 = vmatpush1.xpose.msra.mxu0 0.0
        %1033 = vmatprep.mubr.f32.mxu0 0.0
        %1034 = vmatmul.mubr.f32.gmra.mrb[0].mxu0 %v965
        %v1035 = vpop.f32.mrb[0].mxu0
        %v1036 = vadd.f32 0.0, %v1035
        %v1037 = vpop.f32.mrb[0].mxu0
        %1038 = vdwg.mxu0
        %v1039 = vld [vmem:[%s370] sm:$0xff]
        %v1040 = vld [vmem:[%s370 + $0x8] sm:$0xff]
        %v1041 = vld [vmem:[%s370 + $0x10] sm:$0xff]
        %v1042 = vld [vmem:[%s370 + $0x18] sm:$0xff]
        %s1043 = sld [smem:[#allocation11]]
        %v1044 = vstv %s1043
        %v1045 = vmul.f32 %v805, %v1044
        %s1046 = sld [smem:[#allocation12]]
        %v1047 = vstv %s1046
        %v1048 = vadd.f32 %v1045, %v1047
        %s1049 = sld [smem:[#allocation11 + $0x1]]
        %v1050 = vstv %s1049
        %v1051 = vmul.f32 %v882, %v1050
        %v1052 = vadd.f32 %v1048, %v1051
        %s1053 = sld [smem:[#allocation11 + $0x2]]
        %v1054 = vstv %s1053
        %v1055 = vmul.f32 %v959, %v1054
        %v1056 = vadd.f32 %v1052, %v1055
        %s1057 = sld [smem:[#allocation11 + $0x3]]
        %v1058 = vstv %s1057
        %v1059 = vmul.f32 %v1036, %v1058
        %v1060 = vadd.f32 %v1056, %v1059
        %s1061 = sld [smem:[#allocation11 + $0x4]]
        %v1062 = vstv %s1061
        %v1063 = vmul.f32 %v1039, %v1062
        %v1064 = vadd.f32 %v1060, %v1063
        %s1065 = sld [smem:[#allocation11 + $0x5]]
        %v1066 = vstv %s1065
        %v1067 = vmul.f32 %v1040, %v1066
        %v1068 = vadd.f32 %v1064, %v1067
        %s1069 = sld [smem:[#allocation11 + $0x6]]
        %v1070 = vstv %s1069
        %v1071 = vmul.f32 %v1041, %v1070
        %v1072 = vadd.f32 %v1068, %v1071
        %s1073 = sld [smem:[#allocation11 + $0x7]]
        %v1074 = vstv %s1073
        %v1075 = vmul.f32 %v1042, %v1074
        %v1076 = vadd.f32 %v1072, %v1075
        %v1077 = vmax.f32 %v1076, 0.0
        %s1078 = sld [smem:[#allocation11 + $0x80]]
        %v1079 = vstv %s1078
        %v1080 = vmul.f32 %v805, %v1079
        %s1081 = sld [smem:[#allocation12 + $0x1]]
        %v1082 = vstv %s1081
        %v1083 = vadd.f32 %v1080, %v1082
        %s1084 = sld [smem:[#allocation11 + $0x81]]
        %v1085 = vstv %s1084
        %v1086 = vmul.f32 %v882, %v1085
        %v1087 = vadd.f32 %v1083, %v1086
        %s1088 = sld [smem:[#allocation11 + $0x82]]
        %v1089 = vstv %s1088
        %v1090 = vmul.f32 %v959, %v1089
        %v1091 = vadd.f32 %v1087, %v1090
        %s1092 = sld [smem:[#allocation11 + $0x83]]
        %v1093 = vstv %s1092
        %v1094 = vmul.f32 %v1036, %v1093
        %v1095 = vadd.f32 %v1091, %v1094
        %s1096 = sld [smem:[#allocation11 + $0x84]]
        %v1097 = vstv %s1096
        %v1098 = vmul.f32 %v1039, %v1097
        %v1099 = vadd.f32 %v1095, %v1098
        %s1100 = sld [smem:[#allocation11 + $0x85]]
        %v1101 = vstv %s1100
        %v1102 = vmul.f32 %v1040, %v1101
        %v1103 = vadd.f32 %v1099, %v1102
        %s1104 = sld [smem:[#allocation11 + $0x86]]
        %v1105 = vstv %s1104
        %v1106 = vmul.f32 %v1041, %v1105
        %v1107 = vadd.f32 %v1103, %v1106
        %s1108 = sld [smem:[#allocation11 + $0x87]]
        %v1109 = vstv %s1108
        %v1110 = vmul.f32 %v1042, %v1109
        %v1111 = vadd.f32 %v1107, %v1110
        %v1112 = vmax.f32 %v1111, 0.0
        %s1113 = sld [smem:[#allocation11 + $0x100]]
        %v1114 = vstv %s1113
        %v1115 = vmul.f32 %v805, %v1114
        %s1116 = sld [smem:[#allocation12 + $0x2]]
        %v1117 = vstv %s1116
        %v1118 = vadd.f32 %v1115, %v1117
        %s1119 = sld [smem:[#allocation11 + $0x101]]
        %v1120 = vstv %s1119
        %v1121 = vmul.f32 %v882, %v1120
        %v1122 = vadd.f32 %v1118, %v1121
        %s1123 = sld [smem:[#allocation11 + $0x102]]
        %v1124 = vstv %s1123
        %v1125 = vmul.f32 %v959, %v1124
        %v1126 = vadd.f32 %v1122, %v1125
        %s1127 = sld [smem:[#allocation11 + $0x103]]
        %v1128 = vstv %s1127
        %v1129 = vmul.f32 %v1036, %v1128
        %v1130 = vadd.f32 %v1126, %v1129
        %s1131 = sld [smem:[#allocation11 + $0x104]]
        %v1132 = vstv %s1131
        %v1133 = vmul.f32 %v1039, %v1132
        %v1134 = vadd.f32 %v1130, %v1133
        %s1135 = sld [smem:[#allocation11 + $0x105]]
        %v1136 = vstv %s1135
        %v1137 = vmul.f32 %v1040, %v1136
        %v1138 = vadd.f32 %v1134, %v1137
        %s1139 = sld [smem:[#allocation11 + $0x106]]
        %v1140 = vstv %s1139
        %v1141 = vmul.f32 %v1041, %v1140
        %v1142 = vadd.f32 %v1138, %v1141
        %s1143 = sld [smem:[#allocation11 + $0x107]]
        %v1144 = vstv %s1143
        %v1145 = vmul.f32 %v1042, %v1144
        %v1146 = vadd.f32 %v1142, %v1145
        %v1147 = vmax.f32 %v1146, 0.0
        %s1148 = sld [smem:[#allocation11 + $0x180]]
        %v1149 = vstv %s1148
        %v1150 = vmul.f32 %v805, %v1149
        %s1151 = sld [smem:[#allocation12 + $0x3]]
        %v1152 = vstv %s1151
        %v1153 = vadd.f32 %v1150, %v1152
        %s1154 = sld [smem:[#allocation11 + $0x181]]
        %v1155 = vstv %s1154
        %v1156 = vmul.f32 %v882, %v1155
        %v1157 = vadd.f32 %v1153, %v1156
        %s1158 = sld [smem:[#allocation11 + $0x182]]
        %v1159 = vstv %s1158
        %v1160 = vmul.f32 %v959, %v1159
        %v1161 = vadd.f32 %v1157, %v1160
        %s1162 = sld [smem:[#allocation11 + $0x183]]
        %v1163 = vstv %s1162
        %v1164 = vmul.f32 %v1036, %v1163
        %v1165 = vadd.f32 %v1161, %v1164
        %s1166 = sld [smem:[#allocation11 + $0x184]]
        %v1167 = vstv %s1166
        %v1168 = vmul.f32 %v1039, %v1167
        %v1169 = vadd.f32 %v1165, %v1168
        %s1170 = sld [smem:[#allocation11 + $0x185]]
        %v1171 = vstv %s1170
        %v1172 = vmul.f32 %v1040, %v1171
        %v1173 = vadd.f32 %v1169, %v1172
        %s1174 = sld [smem:[#allocation11 + $0x186]]
        %v1175 = vstv %s1174
        %v1176 = vmul.f32 %v1041, %v1175
        %v1177 = vadd.f32 %v1173, %v1176
        %s1178 = sld [smem:[#allocation11 + $0x187]]
        %v1179 = vstv %s1178
        %v1180 = vmul.f32 %v1042, %v1179
        %v1181 = vadd.f32 %v1177, %v1180
        %v1182 = vmax.f32 %v1181, 0.0
        %s1183 = sld [smem:[#allocation11 + $0x200]]
        %v1184 = vstv %s1183
        %v1185 = vmul.f32 %v805, %v1184
        %s1186 = sld [smem:[#allocation12 + $0x4]]
        %v1187 = vstv %s1186
        %v1188 = vadd.f32 %v1185, %v1187
        %s1189 = sld [smem:[#allocation11 + $0x201]]
        %v1190 = vstv %s1189
        %v1191 = vmul.f32 %v882, %v1190
        %v1192 = vadd.f32 %v1188, %v1191
        %s1193 = sld [smem:[#allocation11 + $0x202]]
        %v1194 = vstv %s1193
        %v1195 = vmul.f32 %v959, %v1194
        %v1196 = vadd.f32 %v1192, %v1195
        %s1197 = sld [smem:[#allocation11 + $0x203]]
        %v1198 = vstv %s1197
        %v1199 = vmul.f32 %v1036, %v1198
        %v1200 = vadd.f32 %v1196, %v1199
        %s1201 = sld [smem:[#allocation11 + $0x204]]
        %v1202 = vstv %s1201
        %v1203 = vmul.f32 %v1039, %v1202
        %v1204 = vadd.f32 %v1200, %v1203
        %s1205 = sld [smem:[#allocation11 + $0x205]]
        %v1206 = vstv %s1205
        %v1207 = vmul.f32 %v1040, %v1206
        %v1208 = vadd.f32 %v1204, %v1207
        %s1209 = sld [smem:[#allocation11 + $0x206]]
        %v1210 = vstv %s1209
        %v1211 = vmul.f32 %v1041, %v1210
        %v1212 = vadd.f32 %v1208, %v1211
        %s1213 = sld [smem:[#allocation11 + $0x207]]
        %v1214 = vstv %s1213
        %v1215 = vmul.f32 %v1042, %v1214
        %v1216 = vadd.f32 %v1212, %v1215
        %v1217 = vmax.f32 %v1216, 0.0
        %s1218 = sld [smem:[#allocation11 + $0x280]]
        %v1219 = vstv %s1218
        %v1220 = vmul.f32 %v805, %v1219
        %s1221 = sld [smem:[#allocation12 + $0x5]]
        %v1222 = vstv %s1221
        %v1223 = vadd.f32 %v1220, %v1222
        %s1224 = sld [smem:[#allocation11 + $0x281]]
        %v1225 = vstv %s1224
        %v1226 = vmul.f32 %v882, %v1225
        %v1227 = vadd.f32 %v1223, %v1226
        %s1228 = sld [smem:[#allocation11 + $0x282]]
        %v1229 = vstv %s1228
        %v1230 = vmul.f32 %v959, %v1229
        %v1231 = vadd.f32 %v1227, %v1230
        %s1232 = sld [smem:[#allocation11 + $0x283]]
        %v1233 = vstv %s1232
        %v1234 = vmul.f32 %v1036, %v1233
        %v1235 = vadd.f32 %v1231, %v1234
        %s1236 = sld [smem:[#allocation11 + $0x284]]
        %v1237 = vstv %s1236
        %v1238 = vmul.f32 %v1039, %v1237
        %v1239 = vadd.f32 %v1235, %v1238
        %s1240 = sld [smem:[#allocation11 + $0x285]]
        %v1241 = vstv %s1240
        %v1242 = vmul.f32 %v1040, %v1241
        %v1243 = vadd.f32 %v1239, %v1242
        %s1244 = sld [smem:[#allocation11 + $0x286]]
        %v1245 = vstv %s1244
        %v1246 = vmul.f32 %v1041, %v1245
        %v1247 = vadd.f32 %v1243, %v1246
        %s1248 = sld [smem:[#allocation11 + $0x287]]
        %v1249 = vstv %s1248
        %v1250 = vmul.f32 %v1042, %v1249
        %v1251 = vadd.f32 %v1247, %v1250
        %v1252 = vmax.f32 %v1251, 0.0
        %s1253 = sld [smem:[#allocation11 + $0x300]]
        %v1254 = vstv %s1253
        %v1255 = vmul.f32 %v805, %v1254
        %s1256 = sld [smem:[#allocation12 + $0x6]]
        %v1257 = vstv %s1256
        %v1258 = vadd.f32 %v1255, %v1257
        %s1259 = sld [smem:[#allocation11 + $0x301]]
        %v1260 = vstv %s1259
        %v1261 = vmul.f32 %v882, %v1260
        %v1262 = vadd.f32 %v1258, %v1261
        %s1263 = sld [smem:[#allocation11 + $0x302]]
        %v1264 = vstv %s1263
        %v1265 = vmul.f32 %v959, %v1264
        %v1266 = vadd.f32 %v1262, %v1265
        %s1267 = sld [smem:[#allocation11 + $0x303]]
        %v1268 = vstv %s1267
        %v1269 = vmul.f32 %v1036, %v1268
        %v1270 = vadd.f32 %v1266, %v1269
        %s1271 = sld [smem:[#allocation11 + $0x304]]
        %v1272 = vstv %s1271
        %v1273 = vmul.f32 %v1039, %v1272
        %v1274 = vadd.f32 %v1270, %v1273
        %s1275 = sld [smem:[#allocation11 + $0x305]]
        %v1276 = vstv %s1275
        %v1277 = vmul.f32 %v1040, %v1276
        %v1278 = vadd.f32 %v1274, %v1277
        %s1279 = sld [smem:[#allocation11 + $0x306]]
        %v1280 = vstv %s1279
        %v1281 = vmul.f32 %v1041, %v1280
        %v1282 = vadd.f32 %v1278, %v1281
        %s1283 = sld [smem:[#allocation11 + $0x307]]
        %v1284 = vstv %s1283
        %v1285 = vmul.f32 %v1042, %v1284
        %v1286 = vadd.f32 %v1282, %v1285
        %v1287 = vmax.f32 %v1286, 0.0
        %s1288 = sld [smem:[#allocation11 + $0x380]]
        %v1289 = vstv %s1288
        %v1290 = vmul.f32 %v805, %v1289
        %s1291 = sld [smem:[#allocation12 + $0x7]]
        %v1292 = vstv %s1291
        %v1293 = vadd.f32 %v1290, %v1292
        %s1294 = sld [smem:[#allocation11 + $0x381]]
        %v1295 = vstv %s1294
        %v1296 = vmul.f32 %v882, %v1295
        %v1297 = vadd.f32 %v1293, %v1296
        %s1298 = sld [smem:[#allocation11 + $0x382]]
        %v1299 = vstv %s1298
        %v1300 = vmul.f32 %v959, %v1299
        %v1301 = vadd.f32 %v1297, %v1300
        %s1302 = sld [smem:[#allocation11 + $0x383]]
        %v1303 = vstv %s1302
        %v1304 = vmul.f32 %v1036, %v1303
        %v1305 = vadd.f32 %v1301, %v1304
        %s1306 = sld [smem:[#allocation11 + $0x384]]
        %v1307 = vstv %s1306
        %v1308 = vmul.f32 %v1039, %v1307
        %v1309 = vadd.f32 %v1305, %v1308
        %s1310 = sld [smem:[#allocation11 + $0x385]]
        %v1311 = vstv %s1310
        %v1312 = vmul.f32 %v1040, %v1311
        %v1313 = vadd.f32 %v1309, %v1312
        %s1314 = sld [smem:[#allocation11 + $0x386]]
        %v1315 = vstv %s1314
        %v1316 = vmul.f32 %v1041, %v1315
        %v1317 = vadd.f32 %v1313, %v1316
        %s1318 = sld [smem:[#allocation11 + $0x387]]
        %v1319 = vstv %s1318
        %v1320 = vmul.f32 %v1042, %v1319
        %v1321 = vadd.f32 %v1317, %v1320
        %v1322 = vmax.f32 %v1321, 0.0
        %s1323 = sld [smem:[#allocation14]]
        %v1324 = vstv %s1323
        %v1325 = vmul.f32 %v1077, %v1324
        %s1326 = sld [smem:[#allocation15]]
        %v1327 = vstv %s1326
        %v1328 = vadd.f32 %v1325, %v1327
        %s1329 = sld [smem:[#allocation14 + $0x1]]
        %v1330 = vstv %s1329
        %v1331 = vmul.f32 %v1112, %v1330
        %v1332 = vadd.f32 %v1328, %v1331
        %s1333 = sld [smem:[#allocation14 + $0x2]]
        %v1334 = vstv %s1333
        %v1335 = vmul.f32 %v1147, %v1334
        %v1336 = vadd.f32 %v1332, %v1335
        %s1337 = sld [smem:[#allocation14 + $0x3]]
        %v1338 = vstv %s1337
        %v1339 = vmul.f32 %v1182, %v1338
        %v1340 = vadd.f32 %v1336, %v1339
        %s1341 = sld [smem:[#allocation14 + $0x4]]
        %v1342 = vstv %s1341
        %v1343 = vmul.f32 %v1217, %v1342
        %v1344 = vadd.f32 %v1340, %v1343
        %s1345 = sld [smem:[#allocation14 + $0x5]]
        %v1346 = vstv %s1345
        %v1347 = vmul.f32 %v1252, %v1346
        %v1348 = vadd.f32 %v1344, %v1347
        %s1349 = sld [smem:[#allocation14 + $0x6]]
        %v1350 = vstv %s1349
        %v1351 = vmul.f32 %v1287, %v1350
        %v1352 = vadd.f32 %v1348, %v1351
        %s1353 = sld [smem:[#allocation14 + $0x7]]
        %v1354 = vstv %s1353
        %v1355 = vmul.f32 %v1322, %v1354
        %v1356 = vadd.f32 %v1352, %v1355
        %v1357 = vsel %vm733, %v1356, -inf
        %1358 = vmax.xlane.f32.xlu0 %v1357
        %v1359 = vpop.xlane.xlu0 %1358
        %v1360 = vsub.f32 %v1356, %v1359
        %v1361 = vmul.f32 %v1360, 1.442695
        %v1362 = vpow.pop %v1361
        %v1363 = vsel %vm733, %v1362, 0.0
        %1364 = vadd.xlane.f32.xlu0 %v1363
        %v1365 = vpop.xlane.xlu0 %1364
        %v1366 = vrcp.pop %v1365
        %v1367 = vmul.f32 %v1362, %v1366
        %1368 = vrot.lane.b32.xlu0 %v517, 112
        %v1369 = vpop.permute.xlu0 %1368
        %v1372 = vsel %vm733, %v1367, 0
        %1374 = vmatprep.subr.mxu0 0.0
        %1375 = vmatpush1.msra.mxu0 %v1369
        %1376 = vmatprep.subr.mxu0 0.0
        %1377 = vmatpush1.msra.mxu0 0.0
        %1378 = vmatprep.subr.mxu0 0.0
        %1379 = vmatpush1.msra.mxu0 0.0
        %1380 = vmatprep.subr.mxu0 0.0
        %1381 = vmatpush1.msra.mxu0 0.0
        %1382 = vmatprep.subr.mxu0 0.0
        %1383 = vmatpush1.msra.mxu0 0.0
        %1384 = vmatprep.subr.mxu0 0.0
        %1385 = vmatpush1.msra.mxu0 0.0
        %1386 = vmatprep.subr.mxu0 0.0
        %1387 = vmatpush1.msra.mxu0 0.0
        %1388 = vmatprep.subr.mxu0 0.0
        %1389 = vmatpush1.msra.mxu0 0.0
        %1390 = vmatprep.subr.mxu0 0.0
        %1391 = vmatpush1.msra.mxu0 0.0
        %1392 = vmatprep.subr.mxu0 0.0
        %1393 = vmatpush1.msra.mxu0 0.0
        %1394 = vmatprep.subr.mxu0 0.0
        %1395 = vmatpush1.msra.mxu0 0.0
        %1396 = vmatprep.subr.mxu0 0.0
        %1397 = vmatpush1.msra.mxu0 0.0
        %1398 = vmatprep.subr.mxu0 0.0
        %1399 = vmatpush1.msra.mxu0 0.0
        %1400 = vmatprep.subr.mxu0 0.0
        %1401 = vmatpush1.msra.mxu0 0.0
        %1402 = vmatprep.subr.mxu0 0.0
        %1403 = vmatpush1.msra.mxu0 0.0
        %1404 = vmatprep.subr.mxu0 0.0
        %1405 = vmatpush1.msra.mxu0 0.0
        %1406 = vmatprep.subr.mxu0 0.0
        %1407 = vmatpush1.msra.mxu0 0.0
        %1408 = vmatprep.subr.mxu0 0.0
        %1409 = vmatpush1.msra.mxu0 0.0
        %1410 = vmatprep.subr.mxu0 0.0
        %1411 = vmatpush1.msra.mxu0 0.0
        %1412 = vmatprep.subr.mxu0 0.0
        %1413 = vmatpush1.msra.mxu0 0.0
        %1414 = vmatprep.subr.mxu0 0.0
        %1415 = vmatpush1.msra.mxu0 0.0
        %1416 = vmatprep.subr.mxu0 0.0
        %1417 = vmatpush1.msra.mxu0 0.0
        %1418 = vmatprep.subr.mxu0 0.0
        %1419 = vmatpush1.msra.mxu0 0.0
        %1420 = vmatprep.subr.mxu0 0.0
        %1421 = vmatpush1.msra.mxu0 0.0
        %1422 = vmatprep.subr.mxu0 0.0
        %1423 = vmatpush1.msra.mxu0 0.0
        %1424 = vmatprep.subr.mxu0 0.0
        %1425 = vmatpush1.msra.mxu0 0.0
        %1426 = vmatprep.subr.mxu0 0.0
        %1427 = vmatpush1.msra.mxu0 0.0
        %1428 = vmatprep.subr.mxu0 0.0
        %1429 = vmatpush1.msra.mxu0 0.0
        %1430 = vmatprep.subr.mxu0 0.0
        %1431 = vmatpush1.msra.mxu0 0.0
        %1432 = vmatprep.subr.mxu0 0.0
        %1433 = vmatpush1.msra.mxu0 0.0
        %1434 = vmatprep.subr.mxu0 0.0
        %1435 = vmatpush1.msra.mxu0 0.0
        %1436 = vmatprep.subr.mxu0 0.0
        %1437 = vmatpush1.msra.mxu0 0.0
        %1438 = vmatprep.mubr.f32.mxu0 0.0
        %1439 = vmatmul.mubr.f32.gmra.mrb[0].mxu0 %v1372
        %v1440 = vpop.f32.mrb[0].mxu0
        %v1441 = vadd.f32 0.0, %v1440
        %v1442 = vpop.f32.mrb[0].mxu0
        %1443 = vdwg.mxu0
        %s1444 = sld [smem:[#allocation14 + $0x80]]
        %v1445 = vstv %s1444
        %v1446 = vmul.f32 %v1077, %v1445
        %s1447 = sld [smem:[#allocation15 + $0x1]]
        %v1448 = vstv %s1447
        %v1449 = vadd.f32 %v1446, %v1448
        %s1450 = sld [smem:[#allocation14 + $0x81]]
        %v1451 = vstv %s1450
        %v1452 = vmul.f32 %v1112, %v1451
        %v1453 = vadd.f32 %v1449, %v1452
        %s1454 = sld [smem:[#allocation14 + $0x82]]
        %v1455 = vstv %s1454
        %v1456 = vmul.f32 %v1147, %v1455
        %v1457 = vadd.f32 %v1453, %v1456
        %s1458 = sld [smem:[#allocation14 + $0x83]]
        %v1459 = vstv %s1458
        %v1460 = vmul.f32 %v1182, %v1459
        %v1461 = vadd.f32 %v1457, %v1460
        %s1462 = sld [smem:[#allocation14 + $0x84]]
        %v1463 = vstv %s1462
        %v1464 = vmul.f32 %v1217, %v1463
        %v1465 = vadd.f32 %v1461, %v1464
        %s1466 = sld [smem:[#allocation14 + $0x85]]
        %v1467 = vstv %s1466
        %v1468 = vmul.f32 %v1252, %v1467
        %v1469 = vadd.f32 %v1465, %v1468
        %s1470 = sld [smem:[#allocation14 + $0x86]]
        %v1471 = vstv %s1470
        %v1472 = vmul.f32 %v1287, %v1471
        %v1473 = vadd.f32 %v1469, %v1472
        %s1474 = sld [smem:[#allocation14 + $0x87]]
        %v1475 = vstv %s1474
        %v1476 = vmul.f32 %v1322, %v1475
        %v1477 = vadd.f32 %v1473, %v1476
        %v1478 = vsel %vm733, %v1477, -inf
        %1479 = vmax.xlane.f32.xlu0 %v1478
        %v1480 = vpop.xlane.xlu0 %1479
        %v1481 = vsub.f32 %v1477, %v1480
        %v1482 = vmul.f32 %v1481, 1.442695
        %v1483 = vpow.pop %v1482
        %v1484 = vsel %vm733, %v1483, 0.0
        %1485 = vadd.xlane.f32.xlu0 %v1484
        %v1486 = vpop.xlane.xlu0 %1485
        %v1487 = vrcp.pop %v1486
        %v1488 = vmul.f32 %v1483, %v1487
        %1489 = vrot.lane.b32.xlu0 %v587, 112
        %v1490 = vpop.permute.xlu0 %1489
        %v1493 = vsel %vm733, %v1488, 0
        %1495 = vmatprep.subr.mxu0 0.0
        %1496 = vmatpush1.msra.mxu0 %v1490
        %1497 = vmatprep.subr.mxu0 0.0
        %1498 = vmatpush1.msra.mxu0 0.0
        %1499 = vmatprep.subr.mxu0 0.0
        %1500 = vmatpush1.msra.mxu0 0.0
        %1501 = vmatprep.subr.mxu0 0.0
        %1502 = vmatpush1.msra.mxu0 0.0
        %1503 = vmatprep.subr.mxu0 0.0
        %1504 = vmatpush1.msra.mxu0 0.0
        %1505 = vmatprep.subr.mxu0 0.0
        %1506 = vmatpush1.msra.mxu0 0.0
        %1507 = vmatprep.subr.mxu0 0.0
        %1508 = vmatpush1.msra.mxu0 0.0
        %1509 = vmatprep.subr.mxu0 0.0
        %1510 = vmatpush1.msra.mxu0 0.0
        %1511 = vmatprep.subr.mxu0 0.0
        %1512 = vmatpush1.msra.mxu0 0.0
        %1513 = vmatprep.subr.mxu0 0.0
        %1514 = vmatpush1.msra.mxu0 0.0
        %1515 = vmatprep.subr.mxu0 0.0
        %1516 = vmatpush1.msra.mxu0 0.0
        %1517 = vmatprep.subr.mxu0 0.0
        %1518 = vmatpush1.msra.mxu0 0.0
        %1519 = vmatprep.subr.mxu0 0.0
        %1520 = vmatpush1.msra.mxu0 0.0
        %1521 = vmatprep.subr.mxu0 0.0
        %1522 = vmatpush1.msra.mxu0 0.0
        %1523 = vmatprep.subr.mxu0 0.0
        %1524 = vmatpush1.msra.mxu0 0.0
        %1525 = vmatprep.subr.mxu0 0.0
        %1526 = vmatpush1.msra.mxu0 0.0
        %1527 = vmatprep.subr.mxu0 0.0
        %1528 = vmatpush1.msra.mxu0 0.0
        %1529 = vmatprep.subr.mxu0 0.0
        %1530 = vmatpush1.msra.mxu0 0.0
        %1531 = vmatprep.subr.mxu0 0.0
        %1532 = vmatpush1.msra.mxu0 0.0
        %1533 = vmatprep.subr.mxu0 0.0
        %1534 = vmatpush1.msra.mxu0 0.0
        %1535 = vmatprep.subr.mxu0 0.0
        %1536 = vmatpush1.msra.mxu0 0.0
        %1537 = vmatprep.subr.mxu0 0.0
        %1538 = vmatpush1.msra.mxu0 0.0
        %1539 = vmatprep.subr.mxu0 0.0
        %1540 = vmatpush1.msra.mxu0 0.0
        %1541 = vmatprep.subr.mxu0 0.0
        %1542 = vmatpush1.msra.mxu0 0.0
        %1543 = vmatprep.subr.mxu0 0.0
        %1544 = vmatpush1.msra.mxu0 0.0
        %1545 = vmatprep.subr.mxu0 0.0
        %1546 = vmatpush1.msra.mxu0 0.0
        %1547 = vmatprep.subr.mxu0 0.0
        %1548 = vmatpush1.msra.mxu0 0.0
        %1549 = vmatprep.subr.mxu0 0.0
        %1550 = vmatpush1.msra.mxu0 0.0
        %1551 = vmatprep.subr.mxu0 0.0
        %1552 = vmatpush1.msra.mxu0 0.0
        %1553 = vmatprep.subr.mxu0 0.0
        %1554 = vmatpush1.msra.mxu0 0.0
        %1555 = vmatprep.subr.mxu0 0.0
        %1556 = vmatpush1.msra.mxu0 0.0
        %1557 = vmatprep.subr.mxu0 0.0
        %1558 = vmatpush1.msra.mxu0 0.0
        %1559 = vmatprep.mubr.f32.mxu0 0.0
        %1560 = vmatmul.mubr.f32.gmra.mrb[0].mxu0 %v1493
        %v1561 = vpop.f32.mrb[0].mxu0
        %v1562 = vadd.f32 0.0, %v1561
        %v1563 = vpop.f32.mrb[0].mxu0
        %1564 = vdwg.mxu0
        %v1566 = vsel %vm733, %v1562, 0
        %1568 = vmatprep.subr.mxu0 0.0
        %1569 = vmatpush1.msra.mxu0 %v442
        %1570 = vmatprep.subr.mxu0 0.0
        %1571 = vmatpush1.msra.mxu0 0.0
        %1572 = vmatprep.subr.mxu0 0.0
        %1573 = vmatpush1.msra.mxu0 0.0
        %1574 = vmatprep.subr.mxu0 0.0
        %1575 = vmatpush1.msra.mxu0 0.0
        %1576 = vmatprep.subr.mxu0 0.0
        %1577 = vmatpush1.msra.mxu0 0.0
        %1578 = vmatprep.subr.mxu0 0.0
        %1579 = vmatpush1.msra.mxu0 0.0
        %1580 = vmatprep.subr.mxu0 0.0
        %1581 = vmatpush1.msra.mxu0 0.0
        %1582 = vmatprep.subr.mxu0 0.0
        %1583 = vmatpush1.msra.mxu0 0.0
        %1584 = vmatprep.subr.mxu0 0.0
        %1585 = vmatpush1.msra.mxu0 0.0
        %1586 = vmatprep.subr.mxu0 0.0
        %1587 = vmatpush1.msra.mxu0 0.0
        %1588 = vmatprep.subr.mxu0 0.0
        %1589 = vmatpush1.msra.mxu0 0.0
        %1590 = vmatprep.subr.mxu0 0.0
        %1591 = vmatpush1.msra.mxu0 0.0
        %1592 = vmatprep.subr.mxu0 0.0
        %1593 = vmatpush1.msra.mxu0 0.0
        %1594 = vmatprep.subr.mxu0 0.0
        %1595 = vmatpush1.msra.mxu0 0.0
        %1596 = vmatprep.subr.mxu0 0.0
        %1597 = vmatpush1.msra.mxu0 0.0
        %1598 = vmatprep.subr.mxu0 0.0
        %1599 = vmatpush1.msra.mxu0 0.0
        %1600 = vmatprep.subr.mxu0 0.0
        %1601 = vmatpush1.msra.mxu0 0.0
        %1602 = vmatprep.subr.mxu0 0.0
        %1603 = vmatpush1.msra.mxu0 0.0
        %1604 = vmatprep.subr.mxu0 0.0
        %1605 = vmatpush1.msra.mxu0 0.0
        %1606 = vmatprep.subr.mxu0 0.0
        %1607 = vmatpush1.msra.mxu0 0.0
        %1608 = vmatprep.subr.mxu0 0.0
        %1609 = vmatpush1.msra.mxu0 0.0
        %1610 = vmatprep.subr.mxu0 0.0
        %1611 = vmatpush1.msra.mxu0 0.0
        %1612 = vmatprep.subr.mxu0 0.0
        %1613 = vmatpush1.msra.mxu0 0.0
        %1614 = vmatprep.subr.mxu0 0.0
        %1615 = vmatpush1.msra.mxu0 0.0
        %1616 = vmatprep.subr.mxu0 0.0
        %1617 = vmatpush1.msra.mxu0 0.0
        %1618 = vmatprep.subr.mxu0 0.0
        %1619 = vmatpush1.msra.mxu0 0.0
        %1620 = vmatprep.subr.mxu0 0.0
        %1621 = vmatpush1.msra.mxu0 0.0
        %1622 = vmatprep.subr.mxu0 0.0
        %1623 = vmatpush1.msra.mxu0 0.0
        %1624 = vmatprep.subr.mxu0 0.0
        %1625 = vmatpush1.msra.mxu0 0.0
        %1626 = vmatprep.subr.mxu0 0.0
        %1627 = vmatpush1.msra.mxu0 0.0
        %1628 = vmatprep.subr.mxu0 0.0
        %1629 = vmatpush1.msra.mxu0 0.0
        %1630 = vmatprep.subr.mxu0 0.0
        %1631 = vmatpush1.msra.mxu0 0.0
        %1632 = vmatprep.mubr.f32.mxu0 0.0
        %1633 = vmatmul.mubr.f32.gmra.mrb[0].mxu0 %v1566
        %v1634 = vpop.f32.mrb[0].mxu0
        %v1635 = vadd.f32 0.0, %v1634
        %v1636 = vpop.f32.mrb[0].mxu0
        %1637 = vdwg.mxu0
        %v1639 = vsel %vm733, %v1441, 0
        %1641 = vmatprep.subr.mxu0 0.0
        %1642 = vmatpush1.msra.mxu0 %v441
        %1643 = vmatprep.subr.mxu0 0.0
        %1644 = vmatpush1.msra.mxu0 0.0
        %1645 = vmatprep.subr.mxu0 0.0
        %1646 = vmatpush1.msra.mxu0 0.0
        %1647 = vmatprep.subr.mxu0 0.0
        %1648 = vmatpush1.msra.mxu0 0.0
        %1649 = vmatprep.subr.mxu0 0.0
        %1650 = vmatpush1.msra.mxu0 0.0
        %1651 = vmatprep.subr.mxu0 0.0
        %1652 = vmatpush1.msra.mxu0 0.0
        %1653 = vmatprep.subr.mxu0 0.0
        %1654 = vmatpush1.msra.mxu0 0.0
        %1655 = vmatprep.subr.mxu0 0.0
        %1656 = vmatpush1.msra.mxu0 0.0
        %1657 = vmatprep.subr.mxu0 0.0
        %1658 = vmatpush1.msra.mxu0 0.0
        %1659 = vmatprep.subr.mxu0 0.0
        %1660 = vmatpush1.msra.mxu0 0.0
        %1661 = vmatprep.subr.mxu0 0.0
        %1662 = vmatpush1.msra.mxu0 0.0
        %1663 = vmatprep.subr.mxu0 0.0
        %1664 = vmatpush1.msra.mxu0 0.0
        %1665 = vmatprep.subr.mxu0 0.0
        %1666 = vmatpush1.msra.mxu0 0.0
        %1667 = vmatprep.subr.mxu0 0.0
        %1668 = vmatpush1.msra.mxu0 0.0
        %1669 = vmatprep.subr.mxu0 0.0
        %1670 = vmatpush1.msra.mxu0 0.0
        %1671 = vmatprep.subr.mxu0 0.0
        %1672 = vmatpush1.msra.mxu0 0.0
        %1673 = vmatprep.subr.mxu0 0.0
        %1674 = vmatpush1.msra.mxu0 0.0
        %1675 = vmatprep.subr.mxu0 0.0
        %1676 = vmatpush1.msra.mxu0 0.0
        %1677 = vmatprep.subr.mxu0 0.0
        %1678 = vmatpush1.msra.mxu0 0.0
        %1679 = vmatprep.subr.mxu0 0.0
        %1680 = vmatpush1.msra.mxu0 0.0
        %1681 = vmatprep.subr.mxu0 0.0
        %1682 = vmatpush1.msra.mxu0 0.0
        %1683 = vmatprep.subr.mxu0 0.0
        %1684 = vmatpush1.msra.mxu0 0.0
        %1685 = vmatprep.subr.mxu0 0.0
        %1686 = vmatpush1.msra.mxu0 0.0
        %1687 = vmatprep.subr.mxu0 0.0
        %1688 = vmatpush1.msra.mxu0 0.0
        %1689 = vmatprep.subr.mxu0 0.0
        %1690 = vmatpush1.msra.mxu0 0.0
        %1691 = vmatprep.subr.mxu0 0.0
        %1692 = vmatpush1.msra.mxu0 0.0
        %1693 = vmatprep.subr.mxu0 0.0
        %1694 = vmatpush1.msra.mxu0 0.0
        %1695 = vmatprep.subr.mxu0 0.0
        %1696 = vmatpush1.msra.mxu0 0.0
        %1697 = vmatprep.subr.mxu0 0.0
        %1698 = vmatpush1.msra.mxu0 0.0
        %1699 = vmatprep.subr.mxu0 0.0
        %1700 = vmatpush1.msra.mxu0 0.0
        %1701 = vmatprep.subr.mxu0 0.0
        %1702 = vmatpush1.msra.mxu0 0.0
        %1703 = vmatprep.subr.mxu0 0.0
        %1704 = vmatpush1.msra.mxu0 0.0
        %1705 = vmatprep.mubr.f32.mxu0 0.0
        %1706 = vmatmul.mubr.f32.gmra.mrb[0].mxu0 %v1639
        %v1707 = vpop.f32.mrb[0].mxu0
        %v1708 = vadd.f32 %v1635, %v1707
        %v1709 = vpop.f32.mrb[0].mxu0
        %1710 = vdwg.mxu0
        %s1711 = sld [smem:[#allocation14 + $0x100]]
        %v1712 = vstv %s1711
        %v1713 = vmul.f32 %v1077, %v1712
        %s1714 = sld [smem:[#allocation15 + $0x2]]
        %v1715 = vstv %s1714
        %v1716 = vadd.f32 %v1713, %v1715
        %s1717 = sld [smem:[#allocation14 + $0x101]]
        %v1718 = vstv %s1717
        %v1719 = vmul.f32 %v1112, %v1718
        %v1720 = vadd.f32 %v1716, %v1719
        %s1721 = sld [smem:[#allocation14 + $0x102]]
        %v1722 = vstv %s1721
        %v1723 = vmul.f32 %v1147, %v1722
        %v1724 = vadd.f32 %v1720, %v1723
        %s1725 = sld [smem:[#allocation14 + $0x103]]
        %v1726 = vstv %s1725
        %v1727 = vmul.f32 %v1182, %v1726
        %v1728 = vadd.f32 %v1724, %v1727
        %s1729 = sld [smem:[#allocation14 + $0x104]]
        %v1730 = vstv %s1729
        %v1731 = vmul.f32 %v1217, %v1730
        %v1732 = vadd.f32 %v1728, %v1731
        %s1733 = sld [smem:[#allocation14 + $0x105]]
        %v1734 = vstv %s1733
        %v1735 = vmul.f32 %v1252, %v1734
        %v1736 = vadd.f32 %v1732, %v1735
        %s1737 = sld [smem:[#allocation14 + $0x106]]
        %v1738 = vstv %s1737
        %v1739 = vmul.f32 %v1287, %v1738
        %v1740 = vadd.f32 %v1736, %v1739
        %s1741 = sld [smem:[#allocation14 + $0x107]]
        %v1742 = vstv %s1741
        %v1743 = vmul.f32 %v1322, %v1742
        %v1744 = vadd.f32 %v1740, %v1743
        %v1745 = vsel %vm733, %v1744, -inf
        %1746 = vmax.xlane.f32.xlu0 %v1745
        %v1747 = vpop.xlane.xlu0 %1746
        %v1748 = vsub.f32 %v1744, %v1747
        %v1749 = vmul.f32 %v1748, 1.442695
        %v1750 = vpow.pop %v1749
        %v1751 = vsel %vm733, %v1750, 0.0
        %1752 = vadd.xlane.f32.xlu0 %v1751
        %v1753 = vpop.xlane.xlu0 %1752
        %v1754 = vrcp.pop %v1753
        %v1755 = vmul.f32 %v1750, %v1754
        %1756 = vrot.lane.b32.xlu0 %v657, 112
        %v1757 = vpop.permute.xlu0 %1756
        %v1760 = vsel %vm733, %v1755, 0
        %1762 = vmatprep.subr.mxu0 0.0
        %1763 = vmatpush1.msra.mxu0 %v1757
        %1764 = vmatprep.subr.mxu0 0.0
        %1765 = vmatpush1.msra.mxu0 0.0
        %1766 = vmatprep.subr.mxu0 0.0
        %1767 = vmatpush1.msra.mxu0 0.0
        %1768 = vmatprep.subr.mxu0 0.0
        %1769 = vmatpush1.msra.mxu0 0.0
        %1770 = vmatprep.subr.mxu0 0.0
        %1771 = vmatpush1.msra.mxu0 0.0
        %1772 = vmatprep.subr.mxu0 0.0
        %1773 = vmatpush1.msra.mxu0 0.0
        %1774 = vmatprep.subr.mxu0 0.0
        %1775 = vmatpush1.msra.mxu0 0.0
        %1776 = vmatprep.subr.mxu0 0.0
        %1777 = vmatpush1.msra.mxu0 0.0
        %1778 = vmatprep.subr.mxu0 0.0
        %1779 = vmatpush1.msra.mxu0 0.0
        %1780 = vmatprep.subr.mxu0 0.0
        %1781 = vmatpush1.msra.mxu0 0.0
        %1782 = vmatprep.subr.mxu0 0.0
        %1783 = vmatpush1.msra.mxu0 0.0
        %1784 = vmatprep.subr.mxu0 0.0
        %1785 = vmatpush1.msra.mxu0 0.0
        %1786 = vmatprep.subr.mxu0 0.0
        %1787 = vmatpush1.msra.mxu0 0.0
        %1788 = vmatprep.subr.mxu0 0.0
        %1789 = vmatpush1.msra.mxu0 0.0
        %1790 = vmatprep.subr.mxu0 0.0
        %1791 = vmatpush1.msra.mxu0 0.0
        %1792 = vmatprep.subr.mxu0 0.0
        %1793 = vmatpush1.msra.mxu0 0.0
        %1794 = vmatprep.subr.mxu0 0.0
        %1795 = vmatpush1.msra.mxu0 0.0
        %1796 = vmatprep.subr.mxu0 0.0
        %1797 = vmatpush1.msra.mxu0 0.0
        %1798 = vmatprep.subr.mxu0 0.0
        %1799 = vmatpush1.msra.mxu0 0.0
        %1800 = vmatprep.subr.mxu0 0.0
        %1801 = vmatpush1.msra.mxu0 0.0
        %1802 = vmatprep.subr.mxu0 0.0
        %1803 = vmatpush1.msra.mxu0 0.0
        %1804 = vmatprep.subr.mxu0 0.0
        %1805 = vmatpush1.msra.mxu0 0.0
        %1806 = vmatprep.subr.mxu0 0.0
        %1807 = vmatpush1.msra.mxu0 0.0
        %1808 = vmatprep.subr.mxu0 0.0
        %1809 = vmatpush1.msra.mxu0 0.0
        %1810 = vmatprep.subr.mxu0 0.0
        %1811 = vmatpush1.msra.mxu0 0.0
        %1812 = vmatprep.subr.mxu0 0.0
        %1813 = vmatpush1.msra.mxu0 0.0
        %1814 = vmatprep.subr.mxu0 0.0
        %1815 = vmatpush1.msra.mxu0 0.0
        %1816 = vmatprep.subr.mxu0 0.0
        %1817 = vmatpush1.msra.mxu0 0.0
        %1818 = vmatprep.subr.mxu0 0.0
        %1819 = vmatpush1.msra.mxu0 0.0
        %1820 = vmatprep.subr.mxu0 0.0
        %1821 = vmatpush1.msra.mxu0 0.0
        %1822 = vmatprep.subr.mxu0 0.0
        %1823 = vmatpush1.msra.mxu0 0.0
        %1824 = vmatprep.subr.mxu0 0.0
        %1825 = vmatpush1.msra.mxu0 0.0
        %1826 = vmatprep.mubr.f32.mxu0 0.0
        %1827 = vmatmul.mubr.f32.gmra.mrb[0].mxu0 %v1760
        %v1828 = vpop.f32.mrb[0].mxu0
        %v1829 = vadd.f32 0.0, %v1828
        %v1830 = vpop.f32.mrb[0].mxu0
        %1831 = vdwg.mxu0
        %v1833 = vsel %vm733, %v1829, 0
        %1835 = vmatprep.subr.mxu0 0.0
        %1836 = vmatpush1.msra.mxu0 %v443
        %1837 = vmatprep.subr.mxu0 0.0
        %1838 = vmatpush1.msra.mxu0 0.0
        %1839 = vmatprep.subr.mxu0 0.0
        %1840 = vmatpush1.msra.mxu0 0.0
        %1841 = vmatprep.subr.mxu0 0.0
        %1842 = vmatpush1.msra.mxu0 0.0
        %1843 = vmatprep.subr.mxu0 0.0
        %1844 = vmatpush1.msra.mxu0 0.0
        %1845 = vmatprep.subr.mxu0 0.0
        %1846 = vmatpush1.msra.mxu0 0.0
        %1847 = vmatprep.subr.mxu0 0.0
        %1848 = vmatpush1.msra.mxu0 0.0
        %1849 = vmatprep.subr.mxu0 0.0
        %1850 = vmatpush1.msra.mxu0 0.0
        %1851 = vmatprep.subr.mxu0 0.0
        %1852 = vmatpush1.msra.mxu0 0.0
        %1853 = vmatprep.subr.mxu0 0.0
        %1854 = vmatpush1.msra.mxu0 0.0
        %1855 = vmatprep.subr.mxu0 0.0
        %1856 = vmatpush1.msra.mxu0 0.0
        %1857 = vmatprep.subr.mxu0 0.0
        %1858 = vmatpush1.msra.mxu0 0.0
        %1859 = vmatprep.subr.mxu0 0.0
        %1860 = vmatpush1.msra.mxu0 0.0
        %1861 = vmatprep.subr.mxu0 0.0
        %1862 = vmatpush1.msra.mxu0 0.0
        %1863 = vmatprep.subr.mxu0 0.0
        %1864 = vmatpush1.msra.mxu0 0.0
        %1865 = vmatprep.subr.mxu0 0.0
        %1866 = vmatpush1.msra.mxu0 0.0
        %1867 = vmatprep.subr.mxu0 0.0
        %1868 = vmatpush1.msra.mxu0 0.0
        %1869 = vmatprep.subr.mxu0 0.0
        %1870 = vmatpush1.msra.mxu0 0.0
        %1871 = vmatprep.subr.mxu0 0.0
        %1872 = vmatpush1.msra.mxu0 0.0
        %1873 = vmatprep.subr.mxu0 0.0
        %1874 = vmatpush1.msra.mxu0 0.0
        %1875 = vmatprep.subr.mxu0 0.0
        %1876 = vmatpush1.msra.mxu0 0.0
        %1877 = vmatprep.subr.mxu0 0.0
        %1878 = vmatpush1.msra.mxu0 0.0
        %1879 = vmatprep.subr.mxu0 0.0
        %1880 = vmatpush1.msra.mxu0 0.0
        %1881 = vmatprep.subr.mxu0 0.0
        %1882 = vmatpush1.msra.mxu0 0.0
        %1883 = vmatprep.subr.mxu0 0.0
        %1884 = vmatpush1.msra.mxu0 0.0
        %1885 = vmatprep.subr.mxu0 0.0
        %1886 = vmatpush1.msra.mxu0 0.0
        %1887 = vmatprep.subr.mxu0 0.0
        %1888 = vmatpush1.msra.mxu0 0.0
        %1889 = vmatprep.subr.mxu0 0.0
        %1890 = vmatpush1.msra.mxu0 0.0
        %1891 = vmatprep.subr.mxu0 0.0
        %1892 = vmatpush1.msra.mxu0 0.0
        %1893 = vmatprep.subr.mxu0 0.0
        %1894 = vmatpush1.msra.mxu0 0.0
        %1895 = vmatprep.subr.mxu0 0.0
        %1896 = vmatpush1.msra.mxu0 0.0
        %1897 = vmatprep.subr.mxu0 0.0
        %1898 = vmatpush1.msra.mxu0 0.0
        %1899 = vmatprep.mubr.f32.mxu0 0.0
        %1900 = vmatmul.mubr.f32.gmra.mrb[0].mxu0 %v1833
        %v1901 = vpop.f32.mrb[0].mxu0
        %v1902 = vadd.f32 0.0, %v1901
        %v1903 = vpop.f32.mrb[0].mxu0
        %1904 = vdwg.mxu0
        %v1905 = vadd.f32 %v1708, %v1902
        %s1906 = sld [smem:[#allocation14 + $0x180]]
        %v1907 = vstv %s1906
        %v1908 = vmul.f32 %v1077, %v1907
        %s1909 = sld [smem:[#allocation15 + $0x3]]
        %v1910 = vstv %s1909
        %v1911 = vadd.f32 %v1908, %v1910
        %s1912 = sld [smem:[#allocation14 + $0x181]]
        %v1913 = vstv %s1912
        %v1914 = vmul.f32 %v1112, %v1913
        %v1915 = vadd.f32 %v1911, %v1914
        %s1916 = sld [smem:[#allocation14 + $0x182]]
        %v1917 = vstv %s1916
        %v1918 = vmul.f32 %v1147, %v1917
        %v1919 = vadd.f32 %v1915, %v1918
        %s1920 = sld [smem:[#allocation14 + $0x183]]
        %v1921 = vstv %s1920
        %v1922 = vmul.f32 %v1182, %v1921
        %v1923 = vadd.f32 %v1919, %v1922
        %s1924 = sld [smem:[#allocation14 + $0x184]]
        %v1925 = vstv %s1924
        %v1926 = vmul.f32 %v1217, %v1925
        %v1927 = vadd.f32 %v1923, %v1926
        %s1928 = sld [smem:[#allocation14 + $0x185]]
        %v1929 = vstv %s1928
        %v1930 = vmul.f32 %v1252, %v1929
        %v1931 = vadd.f32 %v1927, %v1930
        %s1932 = sld [smem:[#allocation14 + $0x186]]
        %v1933 = vstv %s1932
        %v1934 = vmul.f32 %v1287, %v1933
        %v1935 = vadd.f32 %v1931, %v1934
        %s1936 = sld [smem:[#allocation14 + $0x187]]
        %v1937 = vstv %s1936
        %v1938 = vmul.f32 %v1322, %v1937
        %v1939 = vadd.f32 %v1935, %v1938
        %v1940 = vsel %vm733, %v1939, -inf
        %1941 = vmax.xlane.f32.xlu0 %v1940
        %v1942 = vpop.xlane.xlu0 %1941
        %v1943 = vsub.f32 %v1939, %v1942
        %v1944 = vmul.f32 %v1943, 1.442695
        %v1945 = vpow.pop %v1944
        %v1946 = vsel %vm733, %v1945, 0.0
        %1947 = vadd.xlane.f32.xlu0 %v1946
        %v1948 = vpop.xlane.xlu0 %1947
        %v1949 = vrcp.pop %v1948
        %v1950 = vmul.f32 %v1945, %v1949
        %1951 = vrot.lane.b32.xlu0 %v727, 112
        %v1952 = vpop.permute.xlu0 %1951
        %v1955 = vsel %vm733, %v1950, 0
        %1957 = vmatprep.subr.mxu0 0.0
        %1958 = vmatpush1.msra.mxu0 %v1952
        %1959 = vmatprep.subr.mxu0 0.0
        %1960 = vmatpush1.msra.mxu0 0.0
        %1961 = vmatprep.subr.mxu0 0.0
        %1962 = vmatpush1.msra.mxu0 0.0
        %1963 = vmatprep.subr.mxu0 0.0
        %1964 = vmatpush1.msra.mxu0 0.0
        %1965 = vmatprep.subr.mxu0 0.0
        %1966 = vmatpush1.msra.mxu0 0.0
        %1967 = vmatprep.subr.mxu0 0.0
        %1968 = vmatpush1.msra.mxu0 0.0
        %1969 = vmatprep.subr.mxu0 0.0
        %1970 = vmatpush1.msra.mxu0 0.0
        %1971 = vmatprep.subr.mxu0 0.0
        %1972 = vmatpush1.msra.mxu0 0.0
        %1973 = vmatprep.subr.mxu0 0.0
        %1974 = vmatpush1.msra.mxu0 0.0
        %1975 = vmatprep.subr.mxu0 0.0
        %1976 = vmatpush1.msra.mxu0 0.0
        %1977 = vmatprep.subr.mxu0 0.0
        %1978 = vmatpush1.msra.mxu0 0.0
        %1979 = vmatprep.subr.mxu0 0.0
        %1980 = vmatpush1.msra.mxu0 0.0
        %1981 = vmatprep.subr.mxu0 0.0
        %1982 = vmatpush1.msra.mxu0 0.0
        %1983 = vmatprep.subr.mxu0 0.0
        %1984 = vmatpush1.msra.mxu0 0.0
        %1985 = vmatprep.subr.mxu0 0.0
        %1986 = vmatpush1.msra.mxu0 0.0
        %1987 = vmatprep.subr.mxu0 0.0
        %1988 = vmatpush1.msra.mxu0 0.0
        %1989 = vmatprep.subr.mxu0 0.0
        %1990 = vmatpush1.msra.mxu0 0.0
        %1991 = vmatprep.subr.mxu0 0.0
        %1992 = vmatpush1.msra.mxu0 0.0
        %1993 = vmatprep.subr.mxu0 0.0
        %1994 = vmatpush1.msra.mxu0 0.0
        %1995 = vmatprep.subr.mxu0 0.0
        %1996 = vmatpush1.msra.mxu0 0.0
        %1997 = vmatprep.subr.mxu0 0.0
        %1998 = vmatpush1.msra.mxu0 0.0
        %1999 = vmatprep.subr.mxu0 0.0
        %2000 = vmatpush1.msra.mxu0 0.0
        %2001 = vmatprep.subr.mxu0 0.0
        %2002 = vmatpush1.msra.mxu0 0.0
        %2003 = vmatprep.subr.mxu0 0.0
        %2004 = vmatpush1.msra.mxu0 0.0
        %2005 = vmatprep.subr.mxu0 0.0
        %2006 = vmatpush1.msra.mxu0 0.0
        %2007 = vmatprep.subr.mxu0 0.0
        %2008 = vmatpush1.msra.mxu0 0.0
        %2009 = vmatprep.subr.mxu0 0.0
        %2010 = vmatpush1.msra.mxu0 0.0
        %2011 = vmatprep.subr.mxu0 0.0
        %2012 = vmatpush1.msra.mxu0 0.0
        %2013 = vmatprep.subr.mxu0 0.0
        %2014 = vmatpush1.msra.mxu0 0.0
        %2015 = vmatprep.subr.mxu0 0.0
        %2016 = vmatpush1.msra.mxu0 0.0
        %2017 = vmatprep.subr.mxu0 0.0
        %2018 = vmatpush1.msra.mxu0 0.0
        %2019 = vmatprep.subr.mxu0 0.0
        %2020 = vmatpush1.msra.mxu0 0.0
        %2021 = vmatprep.mubr.f32.mxu0 0.0
        %2022 = vmatmul.mubr.f32.gmra.mrb[0].mxu0 %v1955
        %v2023 = vpop.f32.mrb[0].mxu0
        %v2024 = vadd.f32 0.0, %v2023
        %v2025 = vpop.f32.mrb[0].mxu0
        %2026 = vdwg.mxu0
        %v2028 = vsel %vm733, %v2024, 0
        %2030 = vmatprep.subr.mxu0 0.0
        %2031 = vmatpush1.msra.mxu0 %v444
        %2032 = vmatprep.subr.mxu0 0.0
        %2033 = vmatpush1.msra.mxu0 0.0
        %2034 = vmatprep.subr.mxu0 0.0
        %2035 = vmatpush1.msra.mxu0 0.0
        %2036 = vmatprep.subr.mxu0 0.0
        %2037 = vmatpush1.msra.mxu0 0.0
        %2038 = vmatprep.subr.mxu0 0.0
        %2039 = vmatpush1.msra.mxu0 0.0
        %2040 = vmatprep.subr.mxu0 0.0
        %2041 = vmatpush1.msra.mxu0 0.0
        %2042 = vmatprep.subr.mxu0 0.0
        %2043 = vmatpush1.msra.mxu0 0.0
        %2044 = vmatprep.subr.mxu0 0.0
        %2045 = vmatpush1.msra.mxu0 0.0
        %2046 = vmatprep.subr.mxu0 0.0
        %2047 = vmatpush1.msra.mxu0 0.0
        %2048 = vmatprep.subr.mxu0 0.0
        %2049 = vmatpush1.msra.mxu0 0.0
        %2050 = vmatprep.subr.mxu0 0.0
        %2051 = vmatpush1.msra.mxu0 0.0
        %2052 = vmatprep.subr.mxu0 0.0
        %2053 = vmatpush1.msra.mxu0 0.0
        %2054 = vmatprep.subr.mxu0 0.0
        %2055 = vmatpush1.msra.mxu0 0.0
        %2056 = vmatprep.subr.mxu0 0.0
        %2057 = vmatpush1.msra.mxu0 0.0
        %2058 = vmatprep.subr.mxu0 0.0
        %2059 = vmatpush1.msra.mxu0 0.0
        %2060 = vmatprep.subr.mxu0 0.0
        %2061 = vmatpush1.msra.mxu0 0.0
        %2062 = vmatprep.subr.mxu0 0.0
        %2063 = vmatpush1.msra.mxu0 0.0
        %2064 = vmatprep.subr.mxu0 0.0
        %2065 = vmatpush1.msra.mxu0 0.0
        %2066 = vmatprep.subr.mxu0 0.0
        %2067 = vmatpush1.msra.mxu0 0.0
        %2068 = vmatprep.subr.mxu0 0.0
        %2069 = vmatpush1.msra.mxu0 0.0
        %2070 = vmatprep.subr.mxu0 0.0
        %2071 = vmatpush1.msra.mxu0 0.0
        %2072 = vmatprep.subr.mxu0 0.0
        %2073 = vmatpush1.msra.mxu0 0.0
        %2074 = vmatprep.subr.mxu0 0.0
        %2075 = vmatpush1.msra.mxu0 0.0
        %2076 = vmatprep.subr.mxu0 0.0
        %2077 = vmatpush1.msra.mxu0 0.0
        %2078 = vmatprep.subr.mxu0 0.0
        %2079 = vmatpush1.msra.mxu0 0.0
        %2080 = vmatprep.subr.mxu0 0.0
        %2081 = vmatpush1.msra.mxu0 0.0
        %2082 = vmatprep.subr.mxu0 0.0
        %2083 = vmatpush1.msra.mxu0 0.0
        %2084 = vmatprep.subr.mxu0 0.0
        %2085 = vmatpush1.msra.mxu0 0.0
        %2086 = vmatprep.subr.mxu0 0.0
        %2087 = vmatpush1.msra.mxu0 0.0
        %2088 = vmatprep.subr.mxu0 0.0
        %2089 = vmatpush1.msra.mxu0 0.0
        %2090 = vmatprep.subr.mxu0 0.0
        %2091 = vmatpush1.msra.mxu0 0.0
        %2092 = vmatprep.subr.mxu0 0.0
        %2093 = vmatpush1.msra.mxu0 0.0
        %2094 = vmatprep.mubr.f32.mxu0 0.0
        %2095 = vmatmul.mubr.f32.gmra.mrb[0].mxu0 %v2028
        %v2096 = vpop.f32.mrb[0].mxu0
        %v2097 = vadd.f32 0.0, %v2096
        %v2098 = vpop.f32.mrb[0].mxu0
        %2099 = vdwg.mxu0
        %v2100 = vadd.f32 %v1905, %v2097
        %vm2101 = vcmask 261120
        %2102 = vst.msk [vmem:[%s432] sm:$0xff] %vm2101, %v2100
        %s2103 = sand.u32 %s218, 1
        %s2104 = scalar_lea.sflag [#allocation4], %s2103
        %s2105 = sand.u32 %s218, 1
        %s2106 = smul.addr %s2105, 8
        %s2107 = scalar_lea.vmem [#allocation17], %s2106
        // Predicated region
        $region85: #{tpu_custom_call.1} parent=51 // pred_check
          %p2108 = pneg %p228
        $region86: #{tpu_custom_call.1} parent=51 // pred_check_branch
          %2110 = sbr.rel (%p2108) target = $region88
        $region87: #{tpu_custom_call.1} parent=51 // pred_region
          %s2112 = ssub.s32 128, 128
          %2113 = vsyncadd %s2104, %s2112
          %s2114 = smul.addr %s32, 128
          %s2115 = scalar_lea.hbm %s8, %s2114
          %s2117 = sshll.u32 %s2107, 4
          %s2118 = int_to_ptr.vmem [resolvable:$true] %s2117
          %2120 = dma.vmem_to_hbm [thread:$0]  %s2118, 128, %s2115, %s2104
        $region88: #{tpu_custom_call.1} parent=51 // pred_fallthru
          _
      $region52: #{tpu_custom_call.1} parent=5 // pred_fallthru
        _
      %p2121 = scmp.le.s32.totalorder 2, %s27
      // Predicated region
      $region89: #{tpu_custom_call.1} parent=5 // pred_check
        %p2122 = pneg %p2121
      $region90: #{tpu_custom_call.1} parent=5 // pred_check_branch
        %2124 = sbr.rel (%p2122) target = $region92
      $region91: #{tpu_custom_call.1} parent=5 // pred_region
        %s2125 = ssub.s32 %s27, 2
        // Predicated region
        $region93: #{tpu_custom_call.1} parent=91 // pred_check
          %p2126 = pneg %p234
        $region94: #{tpu_custom_call.1} parent=91 // pred_check_branch
          %2128 = sbr.rel (%p2126) target = $region96
        $region95: #{tpu_custom_call.1} parent=91 // pred_region
          %s2129 = sand.u32 %s219, 1
          %s2130 = scalar_lea.sflag [#allocation4], %s2129
          %s2131 = sand.u32 %s219, 1
          %s2132 = smul.addr %s2131, 8
          %s2133 = scalar_lea.vmem [#allocation17], %s2132
          %2134 = dma.done %s2130, 128
        $region96: #{tpu_custom_call.1} parent=91 // pred_fallthru
          _
      $region92: #{tpu_custom_call.1} parent=5 // pred_fallthru
        _
    $region6: #{tpu_custom_call.1} parent=1 // loop_footer
      %s31 = sadd.s32 1, %s27
    $region7: #{tpu_custom_call.1} parent=1 // loop_footer_branch
      %26 = sbr.rel target = $region3
    $region8: #{tpu_custom_call.1} parent=1 // loop_exit
      _
    %2135 = vsyncpa [#allocation3], 1
    %s2136 = scalar_lea.sflag [#allocation3], 1
    %2137 = vsyncpa %s2136, 1
    %2138 = vsyncpa [#allocation7], 1
    %s2139 = scalar_lea.sflag [#allocation7], 1
    %2140 = vsyncpa %s2139, 1
    %2141 = vsyncpa [#allocation10], 1
    %2142 = vsyncpa [#allocation4], 1
    %s2143 = scalar_lea.sflag [#allocation4], 1
    %2144 = vsyncpa %s2143, 1
    %2145 = vsyncpa [#allocation5], 1
    %s2146 = scalar_lea.sflag [#allocation5], 1
    %2147 = vsyncpa %s2146, 1
    %2148 = vsyncpa [#allocation13], 1
    %2149 = vsyncpa [#allocation16], 1

</llo_original>
